<compile_context>
chip_gen: v7x
topology: tpu7x:2x2x1
jax: 0.10.0
libtpu: 0.0.40
codegen_flags: <defaults>
</compile_context>

<pallas_src>
import numpy as np
import jax
import jax.numpy as jnp
from jax.experimental import pallas as pl
from jax.experimental.pallas import tpu as pltpu

IN_CHANNELS = 9
HIDDEN = 192
OUT_CHANNELS = 1
NUM_LAYERS = 4
DROPOUT = 0.2      # inference mode (training=False) -> dropout is identity

IN_PAD = 16        # layer-1 contraction padded 9 -> 16 (bf16 sublane pack), not 256
HPAD = 256         # hidden padded 192 -> 256 (2 lane tiles; full 256-wide MXU on v6e/v7x)
                   # TODO(synk): on v5e sweep HPAD=192 vs 256 (HBM-BW vs masked-store tradeoff)
OUT_PAD = 128      # final Linear out padded 1 -> 128 (lane-dense output stores)
NB = 256           # nodes per block  (matmul M = full MXU height on v6e/v7x, 2x128 on v5e)
GB = 8             # graphs per block (8 sublane rows for pooled / out)


# --------------------------- fused Pallas kernel -----------------------------

def _graphsage_block_kernel(a_ref, dinv_ref, x_ref, p_ref, cinv_ref,
                            wl1_ref, wr1_ref, wl2_ref, wr2_ref,
                            wl3_ref, wr3_ref, wl4_ref, wr4_ref,
                            b1_ref, b2_ref, b3_ref, b4_ref,
                            lw_ref, lb_ref,
                            out_ref, pooled_ref):
    """One block of GB graphs / NB nodes: 4x (SAGEConv+ReLU), mean-pool, Linear.

    a_ref    : [NB, NB]      bf16  block-diagonal edge counts (A[i, j] = #edges j->i)
    dinv_ref : [NB, 1]       f32   1 / max(in-degree, 1)
    x_ref    : [NB, IN_PAD]  bf16  node features (9 real channels, rest zero)
    p_ref    : [GB, NB]      bf16  graph-membership one-hot
    cinv_ref : [GB, 1]       f32   1 / max(#nodes in graph, 1)
    w*_ref   : bf16 weights (zero-padded);  b*_ref / lb_ref : f32 biases (zero-padded)
    out_ref  : [GB, OUT_PAD] f32;  pooled_ref : [GB, HPAD] f32
    """
    dinv = dinv_ref[...]                                       # [NB, 1] f32

    def sage_layer(h, wl_ref, wr_ref, b_ref):
        # mean aggregation: f32-accumulated count matmul, then f32 1/deg scaling
        agg = jnp.dot(a_ref[...], h, preferred_element_type=jnp.float32) * dinv
        # merged SAGEConv projection as two MXU matmuls (no VMEM concat round-trip)
        z = (jnp.dot(agg.astype(jnp.bfloat16), wl_ref[...],
                     preferred_element_type=jnp.float32)
             + jnp.dot(h, wr_ref[...], preferred_element_type=jnp.float32)
             + b_ref[...])
        # ReLU in f32; dropout(p=0.2, training=False) is the identity
        return jnp.maximum(z, 0.0).astype(jnp.bfloat16)

    h = x_ref[...]
    h = sage_layer(h, wl1_ref, wr1_ref, b1_ref)
    h = sage_layer(h, wl2_ref, wr2_ref, b2_ref)
    h = sage_layer(h, wl3_ref, wr3_ref, b3_ref)
    h = sage_layer(h, wl4_ref, wr4_ref, b4_ref)

    # global_mean_pool: one-hot matmul + f32 1/count scaling, then the final Linear
    pooled = jnp.dot(p_ref[...], h, preferred_element_type=jnp.float32) * cinv_ref[...]
    pooled_ref[...] = pooled
    out_ref[...] = (jnp.dot(pooled.astype(jnp.bfloat16), lw_ref[...],
                            preferred_element_type=jnp.float32) + lb_ref[...])


# --------------------------- pallas_call wrapper ------------------------------

def graphsage_forward(a, dinv, x, p, cinv, params):
    """Runs all graph blocks in ONE pallas_call.

    Returns (out [num_blocks*GB, OUT_CHANNELS], pooled [num_blocks*GB, HIDDEN]);
    trailing padded graph rows (if any) are sliced off by the caller.
    """
    num_blocks = a.shape[0]

    def blk(shape):     # per-block tiled operand (leading block axis squeezed)
        return pl.BlockSpec((None,) + shape, lambda i: (i, 0, 0))

    def resident(arr):  # full array, constant index_map -> fetched once, VMEM-resident
        return pl.BlockSpec(arr.shape, lambda i: (0, 0))

    weights = []
    for l in range(NUM_LAYERS):
        weights += [params["wl"][l], params["wr"][l]]
    weights += list(params["bias"]) + [params["lin_w"], params["lin_b"]]

    out, pooled = pl.pallas_call(
        _graphsage_block_kernel,
        grid=(num_blocks,),
        in_specs=[blk((NB, NB)), blk((NB, 1)), blk((NB, IN_PAD)),
                  blk((GB, NB)), blk((GB, 1))] + [resident(w) for w in weights],
        out_specs=(blk((GB, OUT_PAD)), blk((GB, HPAD))),
        out_shape=(jax.ShapeDtypeStruct((num_blocks, GB, OUT_PAD), jnp.float32),
                   jax.ShapeDtypeStruct((num_blocks, GB, HPAD), jnp.float32)),
        compiler_params=pltpu.CompilerParams(
            dimension_semantics=("parallel",),       # shards blocks across v7x's 2 TCs
            vmem_limit_bytes=32 * 1024 * 1024),
    )(a, dinv, x, p, cinv, *weights)

    out = out.reshape(num_blocks * GB, OUT_PAD)[:, :OUT_CHANNELS]
    pooled = pooled.reshape(num_blocks * GB, HPAD)[:, :HIDDEN]
    return out, pooled


# --------------------------- host-side packing (built ONCE, outside jit) ------

def build_blocks(x, edge_index, batch, num_graphs):
    """Pack a PyG-style batch (x, edge_index, batch) into fixed-size graph blocks.

    Each block holds up to GB graphs / NB nodes; the adjacency is block-diagonal
    because edges never cross graphs in a PyG batch.
    """
    # TODO(synk): graphs with more than NB nodes need a row-tiled / scalar-prefetch
    #             gather formulation instead of a dense per-block adjacency.
    x = np.asarray(x, np.float32)
    src = np.asarray(edge_index[0])
    dst = np.asarray(edge_index[1])
    batch = np.asarray(batch)
    num_blocks = -(-num_graphs // GB)

    A = np.zeros((num_blocks, NB, NB), np.float32)
    X = np.zeros((num_blocks, NB, IN_PAD), np.float32)
    P = np.zeros((num_blocks, GB, NB), np.float32)
    cinv = np.zeros((num_blocks, GB, 1), np.float32)

    node_row = np.zeros(x.shape[0], np.int64)
    fill = np.zeros(num_blocks, np.int64)
    for g in range(num_graphs):
        b, slot = g // GB, g % GB
        idx = np.nonzero(batch == g)[0]
        rows = fill[b] + np.arange(idx.size)
        assert idx.size == 0 or rows[-1] < NB, "graph block node capacity exceeded"
        node_row[idx] = rows
        fill[b] += idx.size
        X[b, rows, :IN_CHANNELS] = x[idx]
        P[b, slot, rows] = 1.0
        cinv[b, slot, 0] = 1.0 / max(idx.size, 1)
    for s, d in zip(src, dst):                    # messages flow src -> dst
        b = int(batch[d]) // GB
        A[b, node_row[d], node_row[s]] += 1.0
    dinv = 1.0 / np.maximum(A.sum(axis=2, keepdims=True), 1.0)

    return (jnp.asarray(A, jnp.bfloat16), jnp.asarray(dinv, jnp.float32),
            jnp.asarray(X, jnp.bfloat16), jnp.asarray(P, jnp.bfloat16),
            jnp.asarray(cinv, jnp.float32))


def init_params(key):
    """Glorot-uniform-ish init mirroring the torch module's shapes, pre-padded."""
    def glorot(k, fan_in, fan_out):
        lim = jnp.sqrt(6.0 / (fan_in + fan_out))
        return jax.random.uniform(k, (fan_in, fan_out), jnp.float32, -lim, lim)

    keys = jax.random.split(key, 3 * NUM_LAYERS + 2)
    wl_list, wr_list, b_list = [], [], []
    cin, cin_pad = IN_CHANNELS, IN_PAD
    ki = 0
    for _ in range(NUM_LAYERS):
        wl = glorot(keys[ki], cin, HIDDEN); ki += 1       # lin_l: torch [H,Cin].T
        wr = glorot(keys[ki], cin, HIDDEN); ki += 1       # lin_r
        bl = jax.random.uniform(keys[ki], (HIDDEN,), jnp.float32, -0.1, 0.1); ki += 1
        wl_list.append(jnp.zeros((cin_pad, HPAD), jnp.float32)
                       .at[:cin, :HIDDEN].set(wl).astype(jnp.bfloat16))
        wr_list.append(jnp.zeros((cin_pad, HPAD), jnp.float32)
                       .at[:cin, :HIDDEN].set(wr).astype(jnp.bfloat16))
        b_list.append(jnp.zeros((1, HPAD), jnp.float32).at[0, :HIDDEN].set(bl))
        cin, cin_pad = HIDDEN, HPAD
    lw = glorot(keys[ki], HIDDEN, OUT_CHANNELS); ki += 1
    lin_w = (jnp.zeros((HPAD, OUT_PAD), jnp.float32)
             .at[:HIDDEN, :OUT_CHANNELS].set(lw).astype(jnp.bfloat16))
    lin_b = jnp.zeros((1, OUT_PAD), jnp.float32).at[0, :OUT_CHANNELS].set(
        jax.random.uniform(keys[ki], (OUT_CHANNELS,), jnp.float32, -0.1, 0.1))
    return {"wl": tuple(wl_list), "wr": tuple(wr_list), "bias": tuple(b_list),
            "lin_w": lin_w, "lin_b": lin_b}


def reference_forward(x, edge_index, batch, num_graphs, params):
    """Pure-JAX f32 reference (same bf16-rounded weights) for a loose tolerance check."""
    n = x.shape[0]
    A = jnp.zeros((n, n), jnp.float32).at[edge_index[1], edge_index[0]].add(1.0)
    dinv = 1.0 / jnp.maximum(A.sum(axis=1, keepdims=True), 1.0)
    h = x
    cin = IN_CHANNELS
    for l in range(NUM_LAYERS):
        wl = params["wl"][l].astype(jnp.float32)[:cin, :HIDDEN]
        wr = params["wr"][l].astype(jnp.float32)[:cin, :HIDDEN]
        b = params["bias"][l][0, :HIDDEN]
        h = jnp.maximum(((A @ h) * dinv) @ wl + h @ wr + b, 0.0)
        cin = HIDDEN
    onehot = (batch[None, :] == jnp.arange(num_graphs)[:, None]).astype(jnp.float32)
    pooled = (onehot @ h) / jnp.maximum(onehot.sum(1, keepdims=True), 1.0)
    lw = params["lin_w"].astype(jnp.float32)[:HIDDEN, :OUT_CHANNELS]
    lb = params["lin_b"][0, :OUT_CHANNELS]
    return pooled @ lw + lb, pooled


# --------------------------- main ---------------------------------------------

if __name__ == "__main__":
    NODES_PER_GRAPH, EDGES_PER_GRAPH, N_GRAPHS = 32, 96, 16   # 2 blocks of 8 graphs x 256 nodes

    key = jax.random.PRNGKey(0)
    k_x, k_e, k_p = jax.random.split(key, 3)

    n_nodes = N_GRAPHS * NODES_PER_GRAPH
    x = jax.random.normal(k_x, (n_nodes, IN_CHANNELS), jnp.float32)
    batch = jnp.repeat(jnp.arange(N_GRAPHS, dtype=jnp.int32), NODES_PER_GRAPH)
    srcs, dsts = [], []
    for g, kg in enumerate(jax.random.split(k_e, N_GRAPHS)):   # intra-graph random edges
        ks, kd = jax.random.split(kg)
        base = g * NODES_PER_GRAPH
        srcs.append(base + jax.random.randint(ks, (EDGES_PER_GRAPH,), 0, NODES_PER_GRAPH, jnp.int32))
        dsts.append(base + jax.random.randint(kd, (EDGES_PER_GRAPH,), 0, NODES_PER_GRAPH, jnp.int32))
    edge_index = jnp.stack([jnp.concatenate(srcs), jnp.concatenate(dsts)], axis=0)

    params = init_params(k_p)
    blocks = build_blocks(x, edge_index, batch, N_GRAPHS)      # host-side, built once

    fwd = jax.jit(graphsage_forward)
    out, pooled = fwd(*blocks, params)
    out = jax.block_until_ready(out)[:N_GRAPHS]
    pooled = jax.block_until_ready(pooled)[:N_GRAPHS]

    assert out.shape == (N_GRAPHS, OUT_CHANNELS)
    assert pooled.shape == (N_GRAPHS, HIDDEN)

    out_ref, pooled_ref = reference_forward(x, edge_index, batch, N_GRAPHS, params)
    assert jnp.allclose(pooled, pooled_ref, rtol=1e-1, atol=1e-1)
    assert jnp.allclose(out, out_ref, rtol=1e-1, atol=1e-1)
    print("KERNEL_OK")
</pallas_src>

<mosaic_0001>
module attributes {stable_mosaic.version = 11 : i64} {
  func.func @_graphsage_block_kernel(%arg0: i32, %arg1: memref<1x256x256xbf16, #tpu.memory_space<vmem>>, %arg2: memref<1x256x1xf32, #tpu.memory_space<vmem>>, %arg3: memref<1x256x16xbf16, #tpu.memory_space<vmem>>, %arg4: memref<1x8x256xbf16, #tpu.memory_space<vmem>>, %arg5: memref<1x8x1xf32, #tpu.memory_space<vmem>>, %arg6: memref<16x256xbf16, #tpu.memory_space<vmem>>, %arg7: memref<16x256xbf16, #tpu.memory_space<vmem>>, %arg8: memref<256x256xbf16, #tpu.memory_space<vmem>>, %arg9: memref<256x256xbf16, #tpu.memory_space<vmem>>, %arg10: memref<256x256xbf16, #tpu.memory_space<vmem>>, %arg11: memref<256x256xbf16, #tpu.memory_space<vmem>>, %arg12: memref<256x256xbf16, #tpu.memory_space<vmem>>, %arg13: memref<256x256xbf16, #tpu.memory_space<vmem>>, %arg14: memref<1x256xf32, #tpu.memory_space<vmem>>, %arg15: memref<1x256xf32, #tpu.memory_space<vmem>>, %arg16: memref<1x256xf32, #tpu.memory_space<vmem>>, %arg17: memref<1x256xf32, #tpu.memory_space<vmem>>, %arg18: memref<256x128xbf16, #tpu.memory_space<vmem>>, %arg19: memref<1x128xf32, #tpu.memory_space<vmem>>, %arg20: memref<1x8x128xf32, #tpu.memory_space<vmem>>, %arg21: memref<1x8x256xf32, #tpu.memory_space<vmem>>) attributes {dimension_semantics = [#tpu.dimension_semantics<parallel>], iteration_bounds = array<i64: 2>, scalar_prefetch = 0 : i64, scratch_operands = 0 : i64, tpu.core_type = #tpu.core_type<tc>, window_params = [{transform_indices = @transform_0, window_bounds = array<i64: 1, 256, 256>}, {transform_indices = @transform_1, window_bounds = array<i64: 1, 256, 1>}, {transform_indices = @transform_2, window_bounds = array<i64: 1, 256, 16>}, {transform_indices = @transform_3, window_bounds = array<i64: 1, 8, 256>}, {transform_indices = @transform_4, window_bounds = array<i64: 1, 8, 1>}, {pipeline_mode = #tpu.pipeline_mode<synchronous>, transform_indices = @transform_5, window_bounds = array<i64: 16, 256>}, {pipeline_mode = #tpu.pipeline_mode<synchronous>, transform_indices = @transform_6, window_bounds = array<i64: 16, 256>}, {pipeline_mode = #tpu.pipeline_mode<synchronous>, transform_indices = @transform_7, window_bounds = array<i64: 256, 256>}, {pipeline_mode = #tpu.pipeline_mode<synchronous>, transform_indices = @transform_8, window_bounds = array<i64: 256, 256>}, {pipeline_mode = #tpu.pipeline_mode<synchronous>, transform_indices = @transform_9, window_bounds = array<i64: 256, 256>}, {pipeline_mode = #tpu.pipeline_mode<synchronous>, transform_indices = @transform_10, window_bounds = array<i64: 256, 256>}, {pipeline_mode = #tpu.pipeline_mode<synchronous>, transform_indices = @transform_11, window_bounds = array<i64: 256, 256>}, {pipeline_mode = #tpu.pipeline_mode<synchronous>, transform_indices = @transform_12, window_bounds = array<i64: 256, 256>}, {pipeline_mode = #tpu.pipeline_mode<synchronous>, transform_indices = @transform_13, window_bounds = array<i64: 1, 256>}, {pipeline_mode = #tpu.pipeline_mode<synchronous>, transform_indices = @transform_14, window_bounds = array<i64: 1, 256>}, {pipeline_mode = #tpu.pipeline_mode<synchronous>, transform_indices = @transform_15, window_bounds = array<i64: 1, 256>}, {pipeline_mode = #tpu.pipeline_mode<synchronous>, transform_indices = @transform_16, window_bounds = array<i64: 1, 256>}, {pipeline_mode = #tpu.pipeline_mode<synchronous>, transform_indices = @transform_17, window_bounds = array<i64: 256, 128>}, {pipeline_mode = #tpu.pipeline_mode<synchronous>, transform_indices = @transform_18, window_bounds = array<i64: 1, 128>}, {transform_indices = @transform_19, window_bounds = array<i64: 1, 8, 128>}, {transform_indices = @transform_20, window_bounds = array<i64: 1, 8, 256>}]} {
    %c0 = arith.constant 0 : index
    %c0_0 = arith.constant 0 : index
    %c0_1 = arith.constant 0 : index
    %0 = vector.load %arg2[%c0, %c0_0, %c0_1] : memref<1x256x1xf32, #tpu.memory_space<vmem>>, vector<1x256x1xf32>
    %1 = vector.shape_cast %0 : vector<1x256x1xf32> to vector<256x1xf32>
    %c0_2 = arith.constant 0 : index
    %c0_3 = arith.constant 0 : index
    %c0_4 = arith.constant 0 : index
    %2 = vector.load %arg3[%c0_2, %c0_3, %c0_4] : memref<1x256x16xbf16, #tpu.memory_space<vmem>>, vector<1x256x16xbf16>
    %3 = vector.shape_cast %2 : vector<1x256x16xbf16> to vector<256x16xbf16>
    %c0_5 = arith.constant 0 : index
    %c0_6 = arith.constant 0 : index
    %c0_7 = arith.constant 0 : index
    %4 = vector.load %arg1[%c0_5, %c0_6, %c0_7] : memref<1x256x256xbf16, #tpu.memory_space<vmem>>, vector<1x256x256xbf16>
    %5 = vector.shape_cast %4 : vector<1x256x256xbf16> to vector<256x256xbf16>
    %cst = arith.constant dense<0.000000e+00> : vector<256x16xf32>
    %6 = tpu.matmul %5, %3, %cst {dimension_numbers = #tpu.dot_dimension_numbers<[1], [0], [0], [1], [0, 0, 1, 1], [], []>} : vector<256x256xbf16>, vector<256x16xbf16>, vector<256x16xf32> -> vector<256x16xf32>
    %7 = vector.broadcast %1 : vector<256x1xf32> to vector<256x16xf32>
    %8 = arith.mulf %6, %7 : vector<256x16xf32>
    %9 = arith.truncf %8 : vector<256x16xf32> to vector<256x16xbf16>
    %c0_8 = arith.constant 0 : index
    %c0_9 = arith.constant 0 : index
    %10 = vector.load %arg6[%c0_8, %c0_9] : memref<16x256xbf16, #tpu.memory_space<vmem>>, vector<16x256xbf16>
    %cst_10 = arith.constant dense<0.000000e+00> : vector<256x256xf32>
    %11 = tpu.matmul %9, %10, %cst_10 {dimension_numbers = #tpu.dot_dimension_numbers<[1], [0], [0], [1], [0, 0, 1, 1], [], []>} : vector<256x16xbf16>, vector<16x256xbf16>, vector<256x256xf32> -> vector<256x256xf32>
    %c0_11 = arith.constant 0 : index
    %c0_12 = arith.constant 0 : index
    %12 = vector.load %arg7[%c0_11, %c0_12] : memref<16x256xbf16, #tpu.memory_space<vmem>>, vector<16x256xbf16>
    %cst_13 = arith.constant dense<0.000000e+00> : vector<256x256xf32>
    %13 = tpu.matmul %3, %12, %cst_13 {dimension_numbers = #tpu.dot_dimension_numbers<[1], [0], [0], [1], [0, 0, 1, 1], [], []>} : vector<256x16xbf16>, vector<16x256xbf16>, vector<256x256xf32> -> vector<256x256xf32>
    %14 = arith.addf %11, %13 : vector<256x256xf32>
    %c0_14 = arith.constant 0 : index
    %c0_15 = arith.constant 0 : index
    %15 = vector.load %arg14[%c0_14, %c0_15] : memref<1x256xf32, #tpu.memory_space<vmem>>, vector<1x256xf32>
    %16 = vector.broadcast %15 : vector<1x256xf32> to vector<256x256xf32>
    %17 = arith.addf %14, %16 : vector<256x256xf32>
    %cst_16 = arith.constant 0.000000e+00 : f32
    %18 = vector.broadcast %cst_16 : f32 to vector<256x256xf32>
    %19 = arith.maximumf %17, %18 : vector<256x256xf32>
    %20 = arith.truncf %19 : vector<256x256xf32> to vector<256x256xbf16>
    %c0_17 = arith.constant 0 : index
    %c0_18 = arith.constant 0 : index
    %c0_19 = arith.constant 0 : index
    %21 = vector.load %arg1[%c0_17, %c0_18, %c0_19] : memref<1x256x256xbf16, #tpu.memory_space<vmem>>, vector<1x256x256xbf16>
    %22 = vector.shape_cast %21 : vector<1x256x256xbf16> to vector<256x256xbf16>
    %cst_20 = arith.constant dense<0.000000e+00> : vector<256x256xf32>
    %23 = tpu.matmul %22, %20, %cst_20 {dimension_numbers = #tpu.dot_dimension_numbers<[1], [0], [0], [1], [0, 0, 1, 1], [], []>} : vector<256x256xbf16>, vector<256x256xbf16>, vector<256x256xf32> -> vector<256x256xf32>
    %24 = vector.broadcast %1 : vector<256x1xf32> to vector<256x256xf32>
    %25 = arith.mulf %23, %24 : vector<256x256xf32>
    %26 = arith.truncf %25 : vector<256x256xf32> to vector<256x256xbf16>
    %c0_21 = arith.constant 0 : index
    %c0_22 = arith.constant 0 : index
    %27 = vector.load %arg8[%c0_21, %c0_22] : memref<256x256xbf16, #tpu.memory_space<vmem>>, vector<256x256xbf16>
    %cst_23 = arith.constant dense<0.000000e+00> : vector<256x256xf32>
    %28 = tpu.matmul %26, %27, %cst_23 {dimension_numbers = #tpu.dot_dimension_numbers<[1], [0], [0], [1], [0, 0, 1, 1], [], []>} : vector<256x256xbf16>, vector<256x256xbf16>, vector<256x256xf32> -> vector<256x256xf32>
    %c0_24 = arith.constant 0 : index
    %c0_25 = arith.constant 0 : index
    %29 = vector.load %arg9[%c0_24, %c0_25] : memref<256x256xbf16, #tpu.memory_space<vmem>>, vector<256x256xbf16>
    %cst_26 = arith.constant dense<0.000000e+00> : vector<256x256xf32>
    %30 = tpu.matmul %20, %29, %cst_26 {dimension_numbers = #tpu.dot_dimension_numbers<[1], [0], [0], [1], [0, 0, 1, 1], [], []>} : vector<256x256xbf16>, vector<256x256xbf16>, vector<256x256xf32> -> vector<256x256xf32>
    %31 = arith.addf %28, %30 : vector<256x256xf32>
    %c0_27 = arith.constant 0 : index
    %c0_28 = arith.constant 0 : index
    %32 = vector.load %arg15[%c0_27, %c0_28] : memref<1x256xf32, #tpu.memory_space<vmem>>, vector<1x256xf32>
    %33 = vector.broadcast %32 : vector<1x256xf32> to vector<256x256xf32>
    %34 = arith.addf %31, %33 : vector<256x256xf32>
    %cst_29 = arith.constant 0.000000e+00 : f32
    %35 = vector.broadcast %cst_29 : f32 to vector<256x256xf32>
    %36 = arith.maximumf %34, %35 : vector<256x256xf32>
    %37 = arith.truncf %36 : vector<256x256xf32> to vector<256x256xbf16>
    %c0_30 = arith.constant 0 : index
    %c0_31 = arith.constant 0 : index
    %c0_32 = arith.constant 0 : index
    %38 = vector.load %arg1[%c0_30, %c0_31, %c0_32] : memref<1x256x256xbf16, #tpu.memory_space<vmem>>, vector<1x256x256xbf16>
    %39 = vector.shape_cast %38 : vector<1x256x256xbf16> to vector<256x256xbf16>
    %cst_33 = arith.constant dense<0.000000e+00> : vector<256x256xf32>
    %40 = tpu.matmul %39, %37, %cst_33 {dimension_numbers = #tpu.dot_dimension_numbers<[1], [0], [0], [1], [0, 0, 1, 1], [], []>} : vector<256x256xbf16>, vector<256x256xbf16>, vector<256x256xf32> -> vector<256x256xf32>
    %41 = vector.broadcast %1 : vector<256x1xf32> to vector<256x256xf32>
    %42 = arith.mulf %40, %41 : vector<256x256xf32>
    %43 = arith.truncf %42 : vector<256x256xf32> to vector<256x256xbf16>
    %c0_34 = arith.constant 0 : index
    %c0_35 = arith.constant 0 : index
    %44 = vector.load %arg10[%c0_34, %c0_35] : memref<256x256xbf16, #tpu.memory_space<vmem>>, vector<256x256xbf16>
    %cst_36 = arith.constant dense<0.000000e+00> : vector<256x256xf32>
    %45 = tpu.matmul %43, %44, %cst_36 {dimension_numbers = #tpu.dot_dimension_numbers<[1], [0], [0], [1], [0, 0, 1, 1], [], []>} : vector<256x256xbf16>, vector<256x256xbf16>, vector<256x256xf32> -> vector<256x256xf32>
    %c0_37 = arith.constant 0 : index
    %c0_38 = arith.constant 0 : index
    %46 = vector.load %arg11[%c0_37, %c0_38] : memref<256x256xbf16, #tpu.memory_space<vmem>>, vector<256x256xbf16>
    %cst_39 = arith.constant dense<0.000000e+00> : vector<256x256xf32>
    %47 = tpu.matmul %37, %46, %cst_39 {dimension_numbers = #tpu.dot_dimension_numbers<[1], [0], [0], [1], [0, 0, 1, 1], [], []>} : vector<256x256xbf16>, vector<256x256xbf16>, vector<256x256xf32> -> vector<256x256xf32>
    %48 = arith.addf %45, %47 : vector<256x256xf32>
    %c0_40 = arith.constant 0 : index
    %c0_41 = arith.constant 0 : index
    %49 = vector.load %arg16[%c0_40, %c0_41] : memref<1x256xf32, #tpu.memory_space<vmem>>, vector<1x256xf32>
    %50 = vector.broadcast %49 : vector<1x256xf32> to vector<256x256xf32>
    %51 = arith.addf %48, %50 : vector<256x256xf32>
    %cst_42 = arith.constant 0.000000e+00 : f32
    %52 = vector.broadcast %cst_42 : f32 to vector<256x256xf32>
    %53 = arith.maximumf %51, %52 : vector<256x256xf32>
    %54 = arith.truncf %53 : vector<256x256xf32> to vector<256x256xbf16>
    %c0_43 = arith.constant 0 : index
    %c0_44 = arith.constant 0 : index
    %c0_45 = arith.constant 0 : index
    %55 = vector.load %arg1[%c0_43, %c0_44, %c0_45] : memref<1x256x256xbf16, #tpu.memory_space<vmem>>, vector<1x256x256xbf16>
    %56 = vector.shape_cast %55 : vector<1x256x256xbf16> to vector<256x256xbf16>
    %cst_46 = arith.constant dense<0.000000e+00> : vector<256x256xf32>
    %57 = tpu.matmul %56, %54, %cst_46 {dimension_numbers = #tpu.dot_dimension_numbers<[1], [0], [0], [1], [0, 0, 1, 1], [], []>} : vector<256x256xbf16>, vector<256x256xbf16>, vector<256x256xf32> -> vector<256x256xf32>
    %58 = vector.broadcast %1 : vector<256x1xf32> to vector<256x256xf32>
    %59 = arith.mulf %57, %58 : vector<256x256xf32>
    %60 = arith.truncf %59 : vector<256x256xf32> to vector<256x256xbf16>
    %c0_47 = arith.constant 0 : index
    %c0_48 = arith.constant 0 : index
    %61 = vector.load %arg12[%c0_47, %c0_48] : memref<256x256xbf16, #tpu.memory_space<vmem>>, vector<256x256xbf16>
    %cst_49 = arith.constant dense<0.000000e+00> : vector<256x256xf32>
    %62 = tpu.matmul %60, %61, %cst_49 {dimension_numbers = #tpu.dot_dimension_numbers<[1], [0], [0], [1], [0, 0, 1, 1], [], []>} : vector<256x256xbf16>, vector<256x256xbf16>, vector<256x256xf32> -> vector<256x256xf32>
    %c0_50 = arith.constant 0 : index
    %c0_51 = arith.constant 0 : index
    %63 = vector.load %arg13[%c0_50, %c0_51] : memref<256x256xbf16, #tpu.memory_space<vmem>>, vector<256x256xbf16>
    %cst_52 = arith.constant dense<0.000000e+00> : vector<256x256xf32>
    %64 = tpu.matmul %54, %63, %cst_52 {dimension_numbers = #tpu.dot_dimension_numbers<[1], [0], [0], [1], [0, 0, 1, 1], [], []>} : vector<256x256xbf16>, vector<256x256xbf16>, vector<256x256xf32> -> vector<256x256xf32>
    %65 = arith.addf %62, %64 : vector<256x256xf32>
    %c0_53 = arith.constant 0 : index
    %c0_54 = arith.constant 0 : index
    %66 = vector.load %arg17[%c0_53, %c0_54] : memref<1x256xf32, #tpu.memory_space<vmem>>, vector<1x256xf32>
    %67 = vector.broadcast %66 : vector<1x256xf32> to vector<256x256xf32>
    %68 = arith.addf %65, %67 : vector<256x256xf32>
    %cst_55 = arith.constant 0.000000e+00 : f32
    %69 = vector.broadcast %cst_55 : f32 to vector<256x256xf32>
    %70 = arith.maximumf %68, %69 : vector<256x256xf32>
    %71 = arith.truncf %70 : vector<256x256xf32> to vector<256x256xbf16>
    %c0_56 = arith.constant 0 : index
    %c0_57 = arith.constant 0 : index
    %c0_58 = arith.constant 0 : index
    %72 = vector.load %arg4[%c0_56, %c0_57, %c0_58] : memref<1x8x256xbf16, #tpu.memory_space<vmem>>, vector<1x8x256xbf16>
    %73 = vector.shape_cast %72 : vector<1x8x256xbf16> to vector<8x256xbf16>
    %cst_59 = arith.constant dense<0.000000e+00> : vector<8x256xf32>
    %74 = tpu.matmul %73, %71, %cst_59 {dimension_numbers = #tpu.dot_dimension_numbers<[1], [0], [0], [1], [0, 0, 1, 1], [], []>} : vector<8x256xbf16>, vector<256x256xbf16>, vector<8x256xf32> -> vector<8x256xf32>
    %c0_60 = arith.constant 0 : index
    %c0_61 = arith.constant 0 : index
    %c0_62 = arith.constant 0 : index
    %75 = vector.load %arg5[%c0_60, %c0_61, %c0_62] : memref<1x8x1xf32, #tpu.memory_space<vmem>>, vector<1x8x1xf32>
    %76 = vector.shape_cast %75 : vector<1x8x1xf32> to vector<8x1xf32>
    %77 = vector.broadcast %76 : vector<8x1xf32> to vector<8x256xf32>
    %78 = arith.mulf %74, %77 : vector<8x256xf32>
    %c0_63 = arith.constant 0 : index
    %c0_64 = arith.constant 0 : index
    %c0_65 = arith.constant 0 : index
    %79 = vector.load %arg21[%c0_63, %c0_64, %c0_65] : memref<1x8x256xf32, #tpu.memory_space<vmem>>, vector<1x8x256xf32>
    %80 = vector.shape_cast %79 : vector<1x8x256xf32> to vector<8x256xf32>
    %81 = vector.shape_cast %78 : vector<8x256xf32> to vector<1x8x256xf32>
    tpu.vector_store %arg21[%c0_63, %c0_64, %c0_65], %81 {strides = array<i32>} : memref<1x8x256xf32, #tpu.memory_space<vmem>>, vector<1x8x256xf32>,
    %82 = arith.truncf %78 : vector<8x256xf32> to vector<8x256xbf16>
    %c0_66 = arith.constant 0 : index
    %c0_67 = arith.constant 0 : index
    %83 = vector.load %arg18[%c0_66, %c0_67] : memref<256x128xbf16, #tpu.memory_space<vmem>>, vector<256x128xbf16>
    %cst_68 = arith.constant dense<0.000000e+00> : vector<8x128xf32>
    %84 = tpu.matmul %82, %83, %cst_68 {dimension_numbers = #tpu.dot_dimension_numbers<[1], [0], [0], [1], [0, 0, 1, 1], [], []>} : vector<8x256xbf16>, vector<256x128xbf16>, vector<8x128xf32> -> vector<8x128xf32>
    %c0_69 = arith.constant 0 : index
    %c0_70 = arith.constant 0 : index
    %85 = vector.load %arg19[%c0_69, %c0_70] : memref<1x128xf32, #tpu.memory_space<vmem>>, vector<1x128xf32>
    %86 = vector.broadcast %85 : vector<1x128xf32> to vector<8x128xf32>
    %87 = arith.addf %84, %86 : vector<8x128xf32>
    %c0_71 = arith.constant 0 : index
    %c0_72 = arith.constant 0 : index
    %c0_73 = arith.constant 0 : index
    %88 = vector.load %arg20[%c0_71, %c0_72, %c0_73] : memref<1x8x128xf32, #tpu.memory_space<vmem>>, vector<1x8x128xf32>
    %89 = vector.shape_cast %88 : vector<1x8x128xf32> to vector<8x128xf32>
    %90 = vector.shape_cast %87 : vector<8x128xf32> to vector<1x8x128xf32>
    tpu.vector_store %arg20[%c0_71, %c0_72, %c0_73], %90 {strides = array<i32>} : memref<1x8x128xf32, #tpu.memory_space<vmem>>, vector<1x8x128xf32>,
    return
  }
  func.func @transform_0(%arg0: i32) -> (i32, i32, i32) {
    %c0_i32 = arith.constant 0 : i32
    %c0_i32_0 = arith.constant 0 : i32
    %c0_i32_1 = arith.constant 0 : i32
    return %arg0, %c0_i32, %c0_i32_0 : i32, i32, i32
  }
  func.func @transform_1(%arg0: i32) -> (i32, i32, i32) {
    %c0_i32 = arith.constant 0 : i32
    %c0_i32_0 = arith.constant 0 : i32
    %c0_i32_1 = arith.constant 0 : i32
    return %arg0, %c0_i32, %c0_i32_0 : i32, i32, i32
  }
  func.func @transform_2(%arg0: i32) -> (i32, i32, i32) {
    %c0_i32 = arith.constant 0 : i32
    %c0_i32_0 = arith.constant 0 : i32
    %c0_i32_1 = arith.constant 0 : i32
    return %arg0, %c0_i32, %c0_i32_0 : i32, i32, i32
  }
  func.func @transform_3(%arg0: i32) -> (i32, i32, i32) {
    %c0_i32 = arith.constant 0 : i32
    %c0_i32_0 = arith.constant 0 : i32
    %c0_i32_1 = arith.constant 0 : i32
    return %arg0, %c0_i32, %c0_i32_0 : i32, i32, i32
  }
  func.func @transform_4(%arg0: i32) -> (i32, i32, i32) {
    %c0_i32 = arith.constant 0 : i32
    %c0_i32_0 = arith.constant 0 : i32
    %c0_i32_1 = arith.constant 0 : i32
    return %arg0, %c0_i32, %c0_i32_0 : i32, i32, i32
  }
  func.func @transform_5(%arg0: i32) -> (i32, i32) {
    %c0_i32 = arith.constant 0 : i32
    %c0_i32_0 = arith.constant 0 : i32
    %c0_i32_1 = arith.constant 0 : i32
    return %c0_i32, %c0_i32_0 : i32, i32
  }
  func.func @transform_6(%arg0: i32) -> (i32, i32) {
    %c0_i32 = arith.constant 0 : i32
    %c0_i32_0 = arith.constant 0 : i32
    %c0_i32_1 = arith.constant 0 : i32
    return %c0_i32, %c0_i32_0 : i32, i32
  }
  func.func @transform_7(%arg0: i32) -> (i32, i32) {
    %c0_i32 = arith.constant 0 : i32
    %c0_i32_0 = arith.constant 0 : i32
    %c0_i32_1 = arith.constant 0 : i32
    return %c0_i32, %c0_i32_0 : i32, i32
  }
  func.func @transform_8(%arg0: i32) -> (i32, i32) {
    %c0_i32 = arith.constant 0 : i32
    %c0_i32_0 = arith.constant 0 : i32
    %c0_i32_1 = arith.constant 0 : i32
    return %c0_i32, %c0_i32_0 : i32, i32
  }
  func.func @transform_9(%arg0: i32) -> (i32, i32) {
    %c0_i32 = arith.constant 0 : i32
    %c0_i32_0 = arith.constant 0 : i32
    %c0_i32_1 = arith.constant 0 : i32
    return %c0_i32, %c0_i32_0 : i32, i32
  }
  func.func @transform_10(%arg0: i32) -> (i32, i32) {
    %c0_i32 = arith.constant 0 : i32
    %c0_i32_0 = arith.constant 0 : i32
    %c0_i32_1 = arith.constant 0 : i32
    return %c0_i32, %c0_i32_0 : i32, i32
  }
  func.func @transform_11(%arg0: i32) -> (i32, i32) {
    %c0_i32 = arith.constant 0 : i32
    %c0_i32_0 = arith.constant 0 : i32
    %c0_i32_1 = arith.constant 0 : i32
    return %c0_i32, %c0_i32_0 : i32, i32
  }
  func.func @transform_12(%arg0: i32) -> (i32, i32) {
    %c0_i32 = arith.constant 0 : i32
    %c0_i32_0 = arith.constant 0 : i32
    %c0_i32_1 = arith.constant 0 : i32
    return %c0_i32, %c0_i32_0 : i32, i32
  }
  func.func @transform_13(%arg0: i32) -> (i32, i32) {
    %c0_i32 = arith.constant 0 : i32
    %c0_i32_0 = arith.constant 0 : i32
    %c0_i32_1 = arith.constant 0 : i32
    return %c0_i32, %c0_i32_0 : i32, i32
  }
  func.func @transform_14(%arg0: i32) -> (i32, i32) {
    %c0_i32 = arith.constant 0 : i32
    %c0_i32_0 = arith.constant 0 : i32
    %c0_i32_1 = arith.constant 0 : i32
    return %c0_i32, %c0_i32_0 : i32, i32
  }
  func.func @transform_15(%arg0: i32) -> (i32, i32) {
    %c0_i32 = arith.constant 0 : i32
    %c0_i32_0 = arith.constant 0 : i32
    %c0_i32_1 = arith.constant 0 : i32
    return %c0_i32, %c0_i32_0 : i32, i32
  }
  func.func @transform_16(%arg0: i32) -> (i32, i32) {
    %c0_i32 = arith.constant 0 : i32
    %c0_i32_0 = arith.constant 0 : i32
    %c0_i32_1 = arith.constant 0 : i32
    return %c0_i32, %c0_i32_0 : i32, i32
  }
  func.func @transform_17(%arg0: i32) -> (i32, i32) {
    %c0_i32 = arith.constant 0 : i32
    %c0_i32_0 = arith.constant 0 : i32
    %c0_i32_1 = arith.constant 0 : i32
    return %c0_i32, %c0_i32_0 : i32, i32
  }
  func.func @transform_18(%arg0: i32) -> (i32, i32) {
    %c0_i32 = arith.constant 0 : i32
    %c0_i32_0 = arith.constant 0 : i32
    %c0_i32_1 = arith.constant 0 : i32
    return %c0_i32, %c0_i32_0 : i32, i32
  }
  func.func @transform_19(%arg0: i32) -> (i32, i32, i32) {
    %c0_i32 = arith.constant 0 : i32
    %c0_i32_0 = arith.constant 0 : i32
    %c0_i32_1 = arith.constant 0 : i32
    return %arg0, %c0_i32, %c0_i32_0 : i32, i32, i32
  }
  func.func @transform_20(%arg0: i32) -> (i32, i32, i32) {
    %c0_i32 = arith.constant 0 : i32
    %c0_i32_0 = arith.constant 0 : i32
    %c0_i32_1 = arith.constant 0 : i32
    return %arg0, %c0_i32, %c0_i32_0 : i32, i32, i32
  }
}

</mosaic_0001>

<llo_original>
// kernel: graphsage_forward.1
$region0: #{graphsage_forward.1}
  #allocation0 [shape = 'u32[]', space=smem, size = 0x4, offset = 0x4, fixed_abs, tag = 'smem constant byte address 0x4 - core index']
  #allocation1 [shape = 'u32[144,128]{1,0:T(1,128)}', space=vmem, size = 0x12000, scoped, tag = 'internal scratch']
  %s0 = inlined_call_operand.vmem [shape: bf16[2,256,256], index: 0, kind: input, shape index: {}]
  %s1 = inlined_call_operand.vmem [shape: f32[2,256,1], index: 1, kind: input, shape index: {}]
  %s2 = inlined_call_operand.vmem [shape: bf16[2,256,16], index: 2, kind: input, shape index: {}]
  %s3 = inlined_call_operand.vmem [shape: bf16[2,8,256], index: 3, kind: input, shape index: {}]
  %s4 = inlined_call_operand.vmem [shape: f32[2,8,1], index: 4, kind: input, shape index: {}]
  %s5 = inlined_call_operand.vmem [shape: bf16[16,256], index: 5, kind: input, shape index: {}]
  %s6 = inlined_call_operand.vmem [shape: bf16[16,256], index: 6, kind: input, shape index: {}]
  %s7 = inlined_call_operand.vmem [shape: bf16[256,256], index: 7, kind: input, shape index: {}]
  %s8 = inlined_call_operand.hbm [shape: bf16[256,256], index: 8, kind: input, shape index: {}]
  %s9 = inlined_call_operand.hbm [shape: bf16[256,256], index: 9, kind: input, shape index: {}]
  %s10 = inlined_call_operand.hbm [shape: bf16[256,256], index: 10, kind: input, shape index: {}]
  %s11 = inlined_call_operand.hbm [shape: bf16[256,256], index: 11, kind: input, shape index: {}]
  %s12 = inlined_call_operand.hbm [shape: bf16[256,256], index: 12, kind: input, shape index: {}]
  %s13 = inlined_call_operand.vmem [shape: f32[1,256], index: 13, kind: input, shape index: {}]
  %s14 = inlined_call_operand.vmem [shape: f32[1,256], index: 14, kind: input, shape index: {}]
  %s15 = inlined_call_operand.vmem [shape: f32[1,256], index: 15, kind: input, shape index: {}]
  %s16 = inlined_call_operand.vmem [shape: f32[1,256], index: 16, kind: input, shape index: {}]
  %s17 = inlined_call_operand.hbm [shape: bf16[256,128], index: 17, kind: input, shape index: {}]
  %s18 = inlined_call_operand.vmem [shape: f32[1,128], index: 18, kind: input, shape index: {}]
  %s19 = inlined_call_operand.vmem [shape: f32[2,8,128], index: 19, kind: output, shape index: {0}]
  %s20 = inlined_call_operand.hbm [shape: f32[2,8,256], index: 20, kind: output, shape index: {1}]
  %21 = xla_tuple %s19, %s20
  %s22 = sld [smem:[#allocation0]]
  $region141: #{graphsage_forward.1} parent=0
    _
  %s24 = ssub.s32 1, %s22
  %s25 = scalar_select 0, %s24, %s22
  $region1: #{graphsage_forward.1} parent=0
    #allocation2 [shape = 'u8[131072]{0}', space=vmem, size = 0x20000, scoped, tag = 'input window, operand 8, single buffered']
    #allocation3 [shape = 's32[2]{0}', space=sflag, size = 0x8, scoped, tag = 'scoped memory for graphsage_forward.1']
    #allocation4 [shape = 's32[2]{0}', space=sflag, size = 0x8, scoped, tag = 'scoped memory for graphsage_forward.1']
    #allocation5 [shape = 'u8[131072]{0}', space=vmem, size = 0x20000, scoped, tag = 'input window, operand 9, single buffered']
    #allocation6 [shape = 's32[1]{0}', space=sflag, size = 0x4, scoped, tag = 'scoped memory for graphsage_forward.1']
    #allocation7 [shape = 'u8[131072]{0}', space=vmem, size = 0x20000, scoped, tag = 'input window, operand 10, single buffered']
    #allocation8 [shape = 'u8[131072]{0}', space=vmem, size = 0x20000, scoped, tag = 'input window, operand 11, single buffered']
    #allocation9 [shape = 's32[1]{0}', space=sflag, size = 0x4, scoped, tag = 'scoped memory for graphsage_forward.1']
    #allocation10 [shape = 'u8[131072]{0}', space=vmem, size = 0x20000, scoped, tag = 'input window, operand 12, single buffered']
    #allocation11 [shape = 'u8[65536]{0}', space=vmem, size = 0x10000, scoped, tag = 'input window, operand 17, single buffered']
    #allocation12 [shape = 's32[1]{0}', space=sflag, size = 0x4, scoped, tag = 'scoped memory for graphsage_forward.1']
    #allocation13 [shape = 'u8[16384]{0}', space=vmem, size = 0x4000, scoped, tag = 'output window, operand 1']
    %26 = vsyncpa [#allocation3], 0
    %27 = vsyncpa [#allocation6], 0
    %28 = vsyncpa [#allocation9], 0
    %29 = vsyncpa [#allocation12], 0
    %30 = vsyncpa [#allocation4], 0
    %s31 = scalar_lea.sflag [#allocation4], 1
    %32 = vsyncpa %s31, 0
    loop: start=0, step=1, limit=4
    $region2: #{graphsage_forward.1} parent=1 // loop_pre_header
      _
    $region3: #{graphsage_forward.1} parent=1 // loop_header
      %s34 = sphi 0, %s38
      %p35 = scmp.ge.s32.totalorder %s34, 4
      %s44 = sphi 0, %s46
      %s47 = sphi 0, %s44
      %s48 = sphi 0, %s47
      %s64 = sphi 0, %s48
      %s70 = sphi 0, %s72
      %s73 = sphi 0, %s70
      %s74 = sphi 0, %s73
      %s90 = sphi 0, %s74
      %s96 = sphi 0, %s98
      %s99 = sphi 0, %s96
      %s100 = sphi 0, %s99
      %s116 = sphi 0, %s100
      %s122 = sphi 0, %s124
      %s125 = sphi 0, %s122
      %s126 = sphi 0, %s125
      %s142 = sphi 0, %s126
      %s148 = sphi 0, %s150
      %s151 = sphi 0, %s148
      %s152 = sphi 0, %s151
      %s168 = sphi 0, %s152
      %s172 = sphi 0, %s172
      %s174 = sphi 0, %s172
      %s175 = sphi 0, %s174
      %s189 = sphi 0, %s175
      %s193 = sphi 0, %s193
      %s195 = sphi 0, %s193
      %s196 = sphi 0, %s195
      %s210 = sphi 0, %s196
      %s214 = sphi 0, %s214
      %s216 = sphi 0, %s214
      %s217 = sphi 0, %s216
      %s231 = sphi 0, %s217
      %s235 = sphi 0, %s235
      %s237 = sphi 0, %s235
      %s238 = sphi 0, %s237
      %s252 = sphi 0, %s238
      %s256 = sphi 0, %s256
      %s258 = sphi 0, %s256
      %s259 = sphi 0, %s258
      %s273 = sphi 0, %s259
      %s277 = sphi 0, %s277
      %s279 = sphi 0, %s277
      %s280 = sphi 0, %s279
      %s294 = sphi 0, %s280
      %s298 = sphi 0, %s298
      %s300 = sphi 0, %s298
      %s301 = sphi 0, %s300
      %s315 = sphi 0, %s301
      %s319 = sphi 0, %s319
      %s321 = sphi 0, %s319
      %s322 = sphi 0, %s321
      %s336 = sphi 0, %s322
      %s340 = sphi 0, %s340
      %s342 = sphi 0, %s340
      %s343 = sphi 0, %s342
      %s357 = sphi 0, %s343
      %s361 = sphi 0, %s361
      %s363 = sphi 0, %s361
      %s364 = sphi 0, %s363
      %s378 = sphi 0, %s364
      %s382 = sphi 0, %s382
      %s384 = sphi 0, %s382
      %s385 = sphi 0, %s384
      %s399 = sphi 0, %s385
      %s403 = sphi 0, %s403
      %s405 = sphi 0, %s403
      %s406 = sphi 0, %s405
      %s420 = sphi 0, %s406
      %s424 = sphi 0, %s424
      %s426 = sphi 0, %s424
      %s427 = sphi 0, %s426
      %s441 = sphi 0, %s427
      %s445 = sphi 0, %s445
      %s447 = sphi 0, %s445
      %s448 = sphi 0, %s447
      %s462 = sphi 0, %s448
      %s468 = sphi 0, %s470
      %s471 = sphi 0, %s468
      %s472 = sphi 0, %s471
      %s488 = sphi 0, %s472
      %s494 = sphi 0, %s496
      %s497 = sphi 0, %s494
      %s498 = sphi 0, %s497
      %s514 = sphi 0, %s498
    $region4: #{graphsage_forward.1} parent=1 // loop_header_branch
      %37 = sbr.rel (%p35) target = $region8
    $region5: #{graphsage_forward.1} parent=1 // loop_body
      %s39 = ssub.s32 %s34, 1
      %s40 = ssub.s32 %s34, 2
      %s41 = sadd.s32 %s34, 1
      %s42 = ssub.s32 %s34, %s41
      %p43 = scmp.eq.s32.totalorder %s42, 0
      %s45 = sadd.s32 %s44, 1
      %s46 = scalar_select %p43, %s44, %s45
      %p49 = pneg %p43
      %p50 = scmp.eq.s32.totalorder %s34, 1
      %p51 = por %p49, %p50
      %p52 = scmp.ne.s32.totalorder %s44, %s47
      %p53 = scmp.eq.s32.totalorder %s34, 0
      %p54 = por %p52, %p53
      %p55 = scmp.ne.s32.totalorder %s44, %s47
      %p56 = scmp.eq.s32.totalorder %s39, 1
      %p57 = por %p55, %p56
      %p58 = scmp.ne.s32.totalorder %s47, %s48
      %p59 = scmp.eq.s32.totalorder %s39, 0
      %p60 = por %p58, %p59
      %p61 = scmp.ne.s32.totalorder %s47, %s48
      %p62 = scmp.eq.s32.totalorder %s40, 1
      %p63 = por %p61, %p62
      %p65 = scmp.ne.s32.totalorder %s48, %s64
      %p66 = scmp.eq.s32.totalorder %s40, 0
      %p67 = por %p65, %p66
      %s68 = ssub.s32 %s34, %s41
      %p69 = scmp.eq.s32.totalorder %s68, 0
      %s71 = sadd.s32 %s70, 1
      %s72 = scalar_select %p69, %s70, %s71
      %p75 = pneg %p69
      %p76 = scmp.eq.s32.totalorder %s34, 1
      %p77 = por %p75, %p76
      %p78 = scmp.ne.s32.totalorder %s70, %s73
      %p79 = scmp.eq.s32.totalorder %s34, 0
      %p80 = por %p78, %p79
      %p81 = scmp.ne.s32.totalorder %s70, %s73
      %p82 = scmp.eq.s32.totalorder %s39, 1
      %p83 = por %p81, %p82
      %p84 = scmp.ne.s32.totalorder %s73, %s74
      %p85 = scmp.eq.s32.totalorder %s39, 0
      %p86 = por %p84, %p85
      %p87 = scmp.ne.s32.totalorder %s73, %s74
      %p88 = scmp.eq.s32.totalorder %s40, 1
      %p89 = por %p87, %p88
      %p91 = scmp.ne.s32.totalorder %s74, %s90
      %p92 = scmp.eq.s32.totalorder %s40, 0
      %p93 = por %p91, %p92
      %s94 = ssub.s32 %s34, %s41
      %p95 = scmp.eq.s32.totalorder %s94, 0
      %s97 = sadd.s32 %s96, 1
      %s98 = scalar_select %p95, %s96, %s97
      %p101 = pneg %p95
      %p102 = scmp.eq.s32.totalorder %s34, 1
      %p103 = por %p101, %p102
      %p104 = scmp.ne.s32.totalorder %s96, %s99
      %p105 = scmp.eq.s32.totalorder %s34, 0
      %p106 = por %p104, %p105
      %p107 = scmp.ne.s32.totalorder %s96, %s99
      %p108 = scmp.eq.s32.totalorder %s39, 1
      %p109 = por %p107, %p108
      %p110 = scmp.ne.s32.totalorder %s99, %s100
      %p111 = scmp.eq.s32.totalorder %s39, 0
      %p112 = por %p110, %p111
      %p113 = scmp.ne.s32.totalorder %s99, %s100
      %p114 = scmp.eq.s32.totalorder %s40, 1
      %p115 = por %p113, %p114
      %p117 = scmp.ne.s32.totalorder %s100, %s116
      %p118 = scmp.eq.s32.totalorder %s40, 0
      %p119 = por %p117, %p118
      %s120 = ssub.s32 %s34, %s41
      %p121 = scmp.eq.s32.totalorder %s120, 0
      %s123 = sadd.s32 %s122, 1
      %s124 = scalar_select %p121, %s122, %s123
      %p127 = pneg %p121
      %p128 = scmp.eq.s32.totalorder %s34, 1
      %p129 = por %p127, %p128
      %p130 = scmp.ne.s32.totalorder %s122, %s125
      %p131 = scmp.eq.s32.totalorder %s34, 0
      %p132 = por %p130, %p131
      %p133 = scmp.ne.s32.totalorder %s122, %s125
      %p134 = scmp.eq.s32.totalorder %s39, 1
      %p135 = por %p133, %p134
      %p136 = scmp.ne.s32.totalorder %s125, %s126
      %p137 = scmp.eq.s32.totalorder %s39, 0
      %p138 = por %p136, %p137
      %p139 = scmp.ne.s32.totalorder %s125, %s126
      %p140 = scmp.eq.s32.totalorder %s40, 1
      %p141 = por %p139, %p140
      %p143 = scmp.ne.s32.totalorder %s126, %s142
      %p144 = scmp.eq.s32.totalorder %s40, 0
      %p145 = por %p143, %p144
      %s146 = ssub.s32 %s34, %s41
      %p147 = scmp.eq.s32.totalorder %s146, 0
      %s149 = sadd.s32 %s148, 1
      %s150 = scalar_select %p147, %s148, %s149
      %p153 = pneg %p147
      %p154 = scmp.eq.s32.totalorder %s34, 1
      %p155 = por %p153, %p154
      %p156 = scmp.ne.s32.totalorder %s148, %s151
      %p157 = scmp.eq.s32.totalorder %s34, 0
      %p158 = por %p156, %p157
      %p159 = scmp.ne.s32.totalorder %s148, %s151
      %p160 = scmp.eq.s32.totalorder %s39, 1
      %p161 = por %p159, %p160
      %p162 = scmp.ne.s32.totalorder %s151, %s152
      %p163 = scmp.eq.s32.totalorder %s39, 0
      %p164 = por %p162, %p163
      %p165 = scmp.ne.s32.totalorder %s151, %s152
      %p166 = scmp.eq.s32.totalorder %s40, 1
      %p167 = por %p165, %p166
      %p169 = scmp.ne.s32.totalorder %s152, %s168
      %p170 = scmp.eq.s32.totalorder %s40, 0
      %p171 = por %p169, %p170
      %s173 = sadd.s32 %s172, 1
      %p176 = scmp.eq.s32.totalorder %s34, 1
      %p177 = scmp.ne.s32.totalorder %s172, %s174
      %p178 = scmp.eq.s32.totalorder %s34, 0
      %p179 = por %p177, %p178
      %p180 = scmp.ne.s32.totalorder %s172, %s174
      %p181 = scmp.eq.s32.totalorder %s39, 1
      %p182 = por %p180, %p181
      %p183 = scmp.ne.s32.totalorder %s174, %s175
      %p184 = scmp.eq.s32.totalorder %s39, 0
      %p185 = por %p183, %p184
      %p186 = scmp.ne.s32.totalorder %s174, %s175
      %p187 = scmp.eq.s32.totalorder %s40, 1
      %p188 = por %p186, %p187
      %p190 = scmp.ne.s32.totalorder %s175, %s189
      %p191 = scmp.eq.s32.totalorder %s40, 0
      %p192 = por %p190, %p191
      %s194 = sadd.s32 %s193, 1
      %p197 = scmp.eq.s32.totalorder %s34, 1
      %p198 = scmp.ne.s32.totalorder %s193, %s195
      %p199 = scmp.eq.s32.totalorder %s34, 0
      %p200 = por %p198, %p199
      %p201 = scmp.ne.s32.totalorder %s193, %s195
      %p202 = scmp.eq.s32.totalorder %s39, 1
      %p203 = por %p201, %p202
      %p204 = scmp.ne.s32.totalorder %s195, %s196
      %p205 = scmp.eq.s32.totalorder %s39, 0
      %p206 = por %p204, %p205
      %p207 = scmp.ne.s32.totalorder %s195, %s196
      %p208 = scmp.eq.s32.totalorder %s40, 1
      %p209 = por %p207, %p208
      %p211 = scmp.ne.s32.totalorder %s196, %s210
      %p212 = scmp.eq.s32.totalorder %s40, 0
      %p213 = por %p211, %p212
      %s215 = sadd.s32 %s214, 1
      %p218 = scmp.eq.s32.totalorder %s34, 1
      %p219 = scmp.ne.s32.totalorder %s214, %s216
      %p220 = scmp.eq.s32.totalorder %s34, 0
      %p221 = por %p219, %p220
      %p222 = scmp.ne.s32.totalorder %s214, %s216
      %p223 = scmp.eq.s32.totalorder %s39, 1
      %p224 = por %p222, %p223
      %p225 = scmp.ne.s32.totalorder %s216, %s217
      %p226 = scmp.eq.s32.totalorder %s39, 0
      %p227 = por %p225, %p226
      %p228 = scmp.ne.s32.totalorder %s216, %s217
      %p229 = scmp.eq.s32.totalorder %s40, 1
      %p230 = por %p228, %p229
      %p232 = scmp.ne.s32.totalorder %s217, %s231
      %p233 = scmp.eq.s32.totalorder %s40, 0
      %p234 = por %p232, %p233
      %s236 = sadd.s32 %s235, 1
      %p239 = scmp.eq.s32.totalorder %s34, 1
      %p240 = scmp.ne.s32.totalorder %s235, %s237
      %p241 = scmp.eq.s32.totalorder %s34, 0
      %p242 = por %p240, %p241
      %p243 = scmp.ne.s32.totalorder %s235, %s237
      %p244 = scmp.eq.s32.totalorder %s39, 1
      %p245 = por %p243, %p244
      %p246 = scmp.ne.s32.totalorder %s237, %s238
      %p247 = scmp.eq.s32.totalorder %s39, 0
      %p248 = por %p246, %p247
      %p249 = scmp.ne.s32.totalorder %s237, %s238
      %p250 = scmp.eq.s32.totalorder %s40, 1
      %p251 = por %p249, %p250
      %p253 = scmp.ne.s32.totalorder %s238, %s252
      %p254 = scmp.eq.s32.totalorder %s40, 0
      %p255 = por %p253, %p254
      %s257 = sadd.s32 %s256, 1
      %p260 = scmp.eq.s32.totalorder %s34, 1
      %p261 = scmp.ne.s32.totalorder %s256, %s258
      %p262 = scmp.eq.s32.totalorder %s34, 0
      %p263 = por %p261, %p262
      %p264 = scmp.ne.s32.totalorder %s256, %s258
      %p265 = scmp.eq.s32.totalorder %s39, 1
      %p266 = por %p264, %p265
      %p267 = scmp.ne.s32.totalorder %s258, %s259
      %p268 = scmp.eq.s32.totalorder %s39, 0
      %p269 = por %p267, %p268
      %p270 = scmp.ne.s32.totalorder %s258, %s259
      %p271 = scmp.eq.s32.totalorder %s40, 1
      %p272 = por %p270, %p271
      %p274 = scmp.ne.s32.totalorder %s259, %s273
      %p275 = scmp.eq.s32.totalorder %s40, 0
      %p276 = por %p274, %p275
      %s278 = sadd.s32 %s277, 1
      %p281 = scmp.eq.s32.totalorder %s34, 1
      %p282 = scmp.ne.s32.totalorder %s277, %s279
      %p283 = scmp.eq.s32.totalorder %s34, 0
      %p284 = por %p282, %p283
      %p285 = scmp.ne.s32.totalorder %s277, %s279
      %p286 = scmp.eq.s32.totalorder %s39, 1
      %p287 = por %p285, %p286
      %p288 = scmp.ne.s32.totalorder %s279, %s280
      %p289 = scmp.eq.s32.totalorder %s39, 0
      %p290 = por %p288, %p289
      %p291 = scmp.ne.s32.totalorder %s279, %s280
      %p292 = scmp.eq.s32.totalorder %s40, 1
      %p293 = por %p291, %p292
      %p295 = scmp.ne.s32.totalorder %s280, %s294
      %p296 = scmp.eq.s32.totalorder %s40, 0
      %p297 = por %p295, %p296
      %s299 = sadd.s32 %s298, 1
      %p302 = scmp.eq.s32.totalorder %s34, 1
      %p303 = scmp.ne.s32.totalorder %s298, %s300
      %p304 = scmp.eq.s32.totalorder %s34, 0
      %p305 = por %p303, %p304
      %p306 = scmp.ne.s32.totalorder %s298, %s300
      %p307 = scmp.eq.s32.totalorder %s39, 1
      %p308 = por %p306, %p307
      %p309 = scmp.ne.s32.totalorder %s300, %s301
      %p310 = scmp.eq.s32.totalorder %s39, 0
      %p311 = por %p309, %p310
      %p312 = scmp.ne.s32.totalorder %s300, %s301
      %p313 = scmp.eq.s32.totalorder %s40, 1
      %p314 = por %p312, %p313
      %p316 = scmp.ne.s32.totalorder %s301, %s315
      %p317 = scmp.eq.s32.totalorder %s40, 0
      %p318 = por %p316, %p317
      %s320 = sadd.s32 %s319, 1
      %p323 = scmp.eq.s32.totalorder %s34, 1
      %p324 = scmp.ne.s32.totalorder %s319, %s321
      %p325 = scmp.eq.s32.totalorder %s34, 0
      %p326 = por %p324, %p325
      %p327 = scmp.ne.s32.totalorder %s319, %s321
      %p328 = scmp.eq.s32.totalorder %s39, 1
      %p329 = por %p327, %p328
      %p330 = scmp.ne.s32.totalorder %s321, %s322
      %p331 = scmp.eq.s32.totalorder %s39, 0
      %p332 = por %p330, %p331
      %p333 = scmp.ne.s32.totalorder %s321, %s322
      %p334 = scmp.eq.s32.totalorder %s40, 1
      %p335 = por %p333, %p334
      %p337 = scmp.ne.s32.totalorder %s322, %s336
      %p338 = scmp.eq.s32.totalorder %s40, 0
      %p339 = por %p337, %p338
      %s341 = sadd.s32 %s340, 1
      %p344 = scmp.eq.s32.totalorder %s34, 1
      %p345 = scmp.ne.s32.totalorder %s340, %s342
      %p346 = scmp.eq.s32.totalorder %s34, 0
      %p347 = por %p345, %p346
      %p348 = scmp.ne.s32.totalorder %s340, %s342
      %p349 = scmp.eq.s32.totalorder %s39, 1
      %p350 = por %p348, %p349
      %p351 = scmp.ne.s32.totalorder %s342, %s343
      %p352 = scmp.eq.s32.totalorder %s39, 0
      %p353 = por %p351, %p352
      %p354 = scmp.ne.s32.totalorder %s342, %s343
      %p355 = scmp.eq.s32.totalorder %s40, 1
      %p356 = por %p354, %p355
      %p358 = scmp.ne.s32.totalorder %s343, %s357
      %p359 = scmp.eq.s32.totalorder %s40, 0
      %p360 = por %p358, %p359
      %s362 = sadd.s32 %s361, 1
      %p365 = scmp.eq.s32.totalorder %s34, 1
      %p366 = scmp.ne.s32.totalorder %s361, %s363
      %p367 = scmp.eq.s32.totalorder %s34, 0
      %p368 = por %p366, %p367
      %p369 = scmp.ne.s32.totalorder %s361, %s363
      %p370 = scmp.eq.s32.totalorder %s39, 1
      %p371 = por %p369, %p370
      %p372 = scmp.ne.s32.totalorder %s363, %s364
      %p373 = scmp.eq.s32.totalorder %s39, 0
      %p374 = por %p372, %p373
      %p375 = scmp.ne.s32.totalorder %s363, %s364
      %p376 = scmp.eq.s32.totalorder %s40, 1
      %p377 = por %p375, %p376
      %p379 = scmp.ne.s32.totalorder %s364, %s378
      %p380 = scmp.eq.s32.totalorder %s40, 0
      %p381 = por %p379, %p380
      %s383 = sadd.s32 %s382, 1
      %p386 = scmp.eq.s32.totalorder %s34, 1
      %p387 = scmp.ne.s32.totalorder %s382, %s384
      %p388 = scmp.eq.s32.totalorder %s34, 0
      %p389 = por %p387, %p388
      %p390 = scmp.ne.s32.totalorder %s382, %s384
      %p391 = scmp.eq.s32.totalorder %s39, 1
      %p392 = por %p390, %p391
      %p393 = scmp.ne.s32.totalorder %s384, %s385
      %p394 = scmp.eq.s32.totalorder %s39, 0
      %p395 = por %p393, %p394
      %p396 = scmp.ne.s32.totalorder %s384, %s385
      %p397 = scmp.eq.s32.totalorder %s40, 1
      %p398 = por %p396, %p397
      %p400 = scmp.ne.s32.totalorder %s385, %s399
      %p401 = scmp.eq.s32.totalorder %s40, 0
      %p402 = por %p400, %p401
      %s404 = sadd.s32 %s403, 1
      %p407 = scmp.eq.s32.totalorder %s34, 1
      %p408 = scmp.ne.s32.totalorder %s403, %s405
      %p409 = scmp.eq.s32.totalorder %s34, 0
      %p410 = por %p408, %p409
      %p411 = scmp.ne.s32.totalorder %s403, %s405
      %p412 = scmp.eq.s32.totalorder %s39, 1
      %p413 = por %p411, %p412
      %p414 = scmp.ne.s32.totalorder %s405, %s406
      %p415 = scmp.eq.s32.totalorder %s39, 0
      %p416 = por %p414, %p415
      %p417 = scmp.ne.s32.totalorder %s405, %s406
      %p418 = scmp.eq.s32.totalorder %s40, 1
      %p419 = por %p417, %p418
      %p421 = scmp.ne.s32.totalorder %s406, %s420
      %p422 = scmp.eq.s32.totalorder %s40, 0
      %p423 = por %p421, %p422
      %s425 = sadd.s32 %s424, 1
      %p428 = scmp.eq.s32.totalorder %s34, 1
      %p429 = scmp.ne.s32.totalorder %s424, %s426
      %p430 = scmp.eq.s32.totalorder %s34, 0
      %p431 = por %p429, %p430
      %p432 = scmp.ne.s32.totalorder %s424, %s426
      %p433 = scmp.eq.s32.totalorder %s39, 1
      %p434 = por %p432, %p433
      %p435 = scmp.ne.s32.totalorder %s426, %s427
      %p436 = scmp.eq.s32.totalorder %s39, 0
      %p437 = por %p435, %p436
      %p438 = scmp.ne.s32.totalorder %s426, %s427
      %p439 = scmp.eq.s32.totalorder %s40, 1
      %p440 = por %p438, %p439
      %p442 = scmp.ne.s32.totalorder %s427, %s441
      %p443 = scmp.eq.s32.totalorder %s40, 0
      %p444 = por %p442, %p443
      %s446 = sadd.s32 %s445, 1
      %p449 = scmp.eq.s32.totalorder %s34, 1
      %p450 = scmp.ne.s32.totalorder %s445, %s447
      %p451 = scmp.eq.s32.totalorder %s34, 0
      %p452 = por %p450, %p451
      %p453 = scmp.ne.s32.totalorder %s445, %s447
      %p454 = scmp.eq.s32.totalorder %s39, 1
      %p455 = por %p453, %p454
      %p456 = scmp.ne.s32.totalorder %s447, %s448
      %p457 = scmp.eq.s32.totalorder %s39, 0
      %p458 = por %p456, %p457
      %p459 = scmp.ne.s32.totalorder %s447, %s448
      %p460 = scmp.eq.s32.totalorder %s40, 1
      %p461 = por %p459, %p460
      %p463 = scmp.ne.s32.totalorder %s448, %s462
      %p464 = scmp.eq.s32.totalorder %s40, 0
      %p465 = por %p463, %p464
      %s466 = ssub.s32 %s34, %s41
      %p467 = scmp.eq.s32.totalorder %s466, 0
      %s469 = sadd.s32 %s468, 1
      %s470 = scalar_select %p467, %s468, %s469
      %p473 = pneg %p467
      %p474 = scmp.eq.s32.totalorder %s34, 1
      %p475 = por %p473, %p474
      %p476 = scmp.ne.s32.totalorder %s468, %s471
      %p477 = scmp.eq.s32.totalorder %s34, 0
      %p478 = por %p476, %p477
      %p479 = scmp.ne.s32.totalorder %s468, %s471
      %p480 = scmp.eq.s32.totalorder %s39, 1
      %p481 = por %p479, %p480
      %p482 = scmp.ne.s32.totalorder %s471, %s472
      %p483 = scmp.eq.s32.totalorder %s39, 0
      %p484 = por %p482, %p483
      %p485 = scmp.ne.s32.totalorder %s471, %s472
      %p486 = scmp.eq.s32.totalorder %s40, 1
      %p487 = por %p485, %p486
      %p489 = scmp.ne.s32.totalorder %s472, %s488
      %p490 = scmp.eq.s32.totalorder %s40, 0
      %p491 = por %p489, %p490
      %s492 = ssub.s32 %s34, %s41
      %p493 = scmp.eq.s32.totalorder %s492, 0
      %s495 = sadd.s32 %s494, 1
      %s496 = scalar_select %p493, %s494, %s495
      %p499 = pneg %p493
      %p500 = scmp.eq.s32.totalorder %s34, 1
      %p501 = por %p499, %p500
      %p502 = scmp.ne.s32.totalorder %s494, %s497
      %p503 = scmp.eq.s32.totalorder %s34, 0
      %p504 = por %p502, %p503
      %p505 = scmp.ne.s32.totalorder %s494, %s497
      %p506 = scmp.eq.s32.totalorder %s39, 1
      %p507 = por %p505, %p506
      %p508 = scmp.ne.s32.totalorder %s497, %s498
      %p509 = scmp.eq.s32.totalorder %s39, 0
      %p510 = por %p508, %p509
      %p511 = scmp.ne.s32.totalorder %s497, %s498
      %p512 = scmp.eq.s32.totalorder %s40, 1
      %p513 = por %p511, %p512
      %p515 = scmp.ne.s32.totalorder %s498, %s514
      %p516 = scmp.eq.s32.totalorder %s40, 0
      %p517 = por %p515, %p516
      %p518 = scmp.le.s32.totalorder 1, %s34
      %p519 = scmp.lt.s32.totalorder %s34, 3
      %p520 = pnand %p518, %p519
      %p521 = pneg %p520
      // Predicated region
      $region9: #{graphsage_forward.1} parent=5 // pred_check
        _
      $region10: #{graphsage_forward.1} parent=5 // pred_check_branch
        %523 = sbr.rel (%p520) target = $region12
      $region11: #{graphsage_forward.1} parent=5 // pred_region
        %s524 = ssub.s32 %s34, 1
        // Predicated region
        $region13: #{graphsage_forward.1} parent=11 // pred_check
          %p525 = pneg %p185
        $region14: #{graphsage_forward.1} parent=11 // pred_check_branch
          %527 = sbr.rel (%p525) target = $region16
        $region15: #{graphsage_forward.1} parent=11 // pred_region
          _
        $region16: #{graphsage_forward.1} parent=11 // pred_fallthru
          _
        // Predicated region
        $region17: #{graphsage_forward.1} parent=11 // pred_check
          %p528 = pneg %p206
        $region18: #{graphsage_forward.1} parent=11 // pred_check_branch
          %530 = sbr.rel (%p528) target = $region20
        $region19: #{graphsage_forward.1} parent=11 // pred_region
          _
        $region20: #{graphsage_forward.1} parent=11 // pred_fallthru
          _
        // Predicated region
        $region21: #{graphsage_forward.1} parent=11 // pred_check
          %p531 = pneg %p227
        $region22: #{graphsage_forward.1} parent=11 // pred_check_branch
          %533 = sbr.rel (%p531) target = $region24
        $region23: #{graphsage_forward.1} parent=11 // pred_region
          _
        $region24: #{graphsage_forward.1} parent=11 // pred_fallthru
          _
        // Predicated region
        $region25: #{graphsage_forward.1} parent=11 // pred_check
          %p534 = pneg %p248
        $region26: #{graphsage_forward.1} parent=11 // pred_check_branch
          %536 = sbr.rel (%p534) target = $region28
        $region27: #{graphsage_forward.1} parent=11 // pred_region
          %s538 = ssub.s32 4096, 4096
          %539 = vsyncadd [#allocation3], %s538
          %s540 = sshll.u32 [#allocation2], 4
          %s541 = int_to_ptr.vmem [resolvable:$true] %s540
          %546 = dma.hbm_to_vmem [thread:$0]  %s8, 4096, %s541, [#allocation3], 128, 128, 8
        $region28: #{graphsage_forward.1} parent=11 // pred_fallthru
          _
        // Predicated region
        $region29: #{graphsage_forward.1} parent=11 // pred_check
          %p547 = pneg %p269
        $region30: #{graphsage_forward.1} parent=11 // pred_check_branch
          %549 = sbr.rel (%p547) target = $region32
        $region31: #{graphsage_forward.1} parent=11 // pred_region
          %s551 = ssub.s32 4096, 4096
          %552 = vsyncadd [#allocation6], %s551
          %s553 = sshll.u32 [#allocation5], 4
          %s554 = int_to_ptr.vmem [resolvable:$true] %s553
          %559 = dma.hbm_to_vmem [thread:$0]  %s9, 4096, %s554, [#allocation6], 128, 128, 8
        $region32: #{graphsage_forward.1} parent=11 // pred_fallthru
          _
        // Predicated region
        $region33: #{graphsage_forward.1} parent=11 // pred_check
          %p560 = pneg %p290
        $region34: #{graphsage_forward.1} parent=11 // pred_check_branch
          %562 = sbr.rel (%p560) target = $region36
        $region35: #{graphsage_forward.1} parent=11 // pred_region
          %s564 = ssub.s32 4096, 4096
          %565 = vsyncadd [#allocation6], %s564
          %s566 = sshll.u32 [#allocation7], 4
          %s567 = int_to_ptr.vmem [resolvable:$true] %s566
          %572 = dma.hbm_to_vmem [thread:$0]  %s10, 4096, %s567, [#allocation6], 128, 128, 8
        $region36: #{graphsage_forward.1} parent=11 // pred_fallthru
          _
        // Predicated region
        $region37: #{graphsage_forward.1} parent=11 // pred_check
          %p573 = pneg %p311
        $region38: #{graphsage_forward.1} parent=11 // pred_check_branch
          %575 = sbr.rel (%p573) target = $region40
        $region39: #{graphsage_forward.1} parent=11 // pred_region
          %s577 = ssub.s32 4096, 4096
          %578 = vsyncadd [#allocation9], %s577
          %s579 = sshll.u32 [#allocation8], 4
          %s580 = int_to_ptr.vmem [resolvable:$true] %s579
          %585 = dma.hbm_to_vmem [thread:$0]  %s11, 4096, %s580, [#allocation9], 128, 128, 8
        $region40: #{graphsage_forward.1} parent=11 // pred_fallthru
          _
        // Predicated region
        $region41: #{graphsage_forward.1} parent=11 // pred_check
          %p586 = pneg %p332
        $region42: #{graphsage_forward.1} parent=11 // pred_check_branch
          %588 = sbr.rel (%p586) target = $region44
        $region43: #{graphsage_forward.1} parent=11 // pred_region
          %s590 = ssub.s32 4096, 4096
          %591 = vsyncadd [#allocation9], %s590
          %s592 = sshll.u32 [#allocation10], 4
          %s593 = int_to_ptr.vmem [resolvable:$true] %s592
          %598 = dma.hbm_to_vmem [thread:$0]  %s12, 4096, %s593, [#allocation9], 128, 128, 8
        $region44: #{graphsage_forward.1} parent=11 // pred_fallthru
          _
        // Predicated region
        $region45: #{graphsage_forward.1} parent=11 // pred_check
          %p599 = pneg %p353
        $region46: #{graphsage_forward.1} parent=11 // pred_check_branch
          %601 = sbr.rel (%p599) target = $region48
        $region47: #{graphsage_forward.1} parent=11 // pred_region
          _
        $region48: #{graphsage_forward.1} parent=11 // pred_fallthru
          _
        // Predicated region
        $region49: #{graphsage_forward.1} parent=11 // pred_check
          %p602 = pneg %p374
        $region50: #{graphsage_forward.1} parent=11 // pred_check_branch
          %604 = sbr.rel (%p602) target = $region52
        $region51: #{graphsage_forward.1} parent=11 // pred_region
          _
        $region52: #{graphsage_forward.1} parent=11 // pred_fallthru
          _
        // Predicated region
        $region53: #{graphsage_forward.1} parent=11 // pred_check
          %p605 = pneg %p395
        $region54: #{graphsage_forward.1} parent=11 // pred_check_branch
          %607 = sbr.rel (%p605) target = $region56
        $region55: #{graphsage_forward.1} parent=11 // pred_region
          _
        $region56: #{graphsage_forward.1} parent=11 // pred_fallthru
          _
        // Predicated region
        $region57: #{graphsage_forward.1} parent=11 // pred_check
          %p608 = pneg %p416
        $region58: #{graphsage_forward.1} parent=11 // pred_check_branch
          %610 = sbr.rel (%p608) target = $region60
        $region59: #{graphsage_forward.1} parent=11 // pred_region
          _
        $region60: #{graphsage_forward.1} parent=11 // pred_fallthru
          _
        // Predicated region
        $region61: #{graphsage_forward.1} parent=11 // pred_check
          %p611 = pneg %p437
        $region62: #{graphsage_forward.1} parent=11 // pred_check_branch
          %613 = sbr.rel (%p611) target = $region64
        $region63: #{graphsage_forward.1} parent=11 // pred_region
          %s615 = ssub.s32 2048, 2048
          %616 = vsyncadd [#allocation12], %s615
          %s617 = sshll.u32 [#allocation11], 4
          %s618 = int_to_ptr.vmem [resolvable:$true] %s617
          %623 = dma.hbm_to_vmem [thread:$0]  %s17, 2048, %s618, [#allocation12], 64, 64, 4
        $region64: #{graphsage_forward.1} parent=11 // pred_fallthru
          _
        // Predicated region
        $region65: #{graphsage_forward.1} parent=11 // pred_check
          %p624 = pneg %p458
        $region66: #{graphsage_forward.1} parent=11 // pred_check_branch
          %626 = sbr.rel (%p624) target = $region68
        $region67: #{graphsage_forward.1} parent=11 // pred_region
          _
        $region68: #{graphsage_forward.1} parent=11 // pred_fallthru
          _
      $region12: #{graphsage_forward.1} parent=5 // pred_fallthru
        _
      %p627 = scmp.lt.s32.totalorder %s34, 2
      // Predicated region
      $region69: #{graphsage_forward.1} parent=5 // pred_check
        %p628 = pneg %p627
      $region70: #{graphsage_forward.1} parent=5 // pred_check_branch
        %630 = sbr.rel (%p628) target = $region72
      $region71: #{graphsage_forward.1} parent=5 // pred_region
        // Predicated region
        $region73: #{graphsage_forward.1} parent=71 // pred_check
          %p631 = pneg %p54
        $region74: #{graphsage_forward.1} parent=71 // pred_check_branch
          %633 = sbr.rel (%p631) target = $region76
        $region75: #{graphsage_forward.1} parent=71 // pred_region
          %p634 = scmp.lt.s32.totalorder %s34, 1
          %s635 = scalar_select %p634, %s34, 1
          %s636 = smul.addr %s635, 64
          %s637 = smul.addr %s636, 4
          %s638 = scalar_lea.vmem %s0, %s637
        $region76: #{graphsage_forward.1} parent=71 // pred_fallthru
          _
        // Predicated region
        $region77: #{graphsage_forward.1} parent=71 // pred_check
          %p639 = pneg %p80
        $region78: #{graphsage_forward.1} parent=71 // pred_check_branch
          %641 = sbr.rel (%p639) target = $region80
        $region79: #{graphsage_forward.1} parent=71 // pred_region
          %p642 = scmp.lt.s32.totalorder %s34, 1
          %s643 = scalar_select %p642, %s34, 1
          %s644 = smul.addr %s643, 32
          %s645 = smul.addr %s644, 8
          %s646 = scalar_lea.vmem %s1, %s645
        $region80: #{graphsage_forward.1} parent=71 // pred_fallthru
          _
        // Predicated region
        $region81: #{graphsage_forward.1} parent=71 // pred_check
          %p647 = pneg %p106
        $region82: #{graphsage_forward.1} parent=71 // pred_check_branch
          %649 = sbr.rel (%p647) target = $region84
        $region83: #{graphsage_forward.1} parent=71 // pred_region
          %p650 = scmp.lt.s32.totalorder %s34, 1
          %s651 = scalar_select %p650, %s34, 1
          %s652 = smul.addr %s651, 32
          %s653 = smul.addr %s652, 4
          %s654 = scalar_lea.vmem %s2, %s653
        $region84: #{graphsage_forward.1} parent=71 // pred_fallthru
          _
        // Predicated region
        $region85: #{graphsage_forward.1} parent=71 // pred_check
          %p655 = pneg %p132
        $region86: #{graphsage_forward.1} parent=71 // pred_check_branch
          %657 = sbr.rel (%p655) target = $region88
        $region87: #{graphsage_forward.1} parent=71 // pred_region
          %p658 = scmp.lt.s32.totalorder %s34, 1
          %s659 = scalar_select %p658, %s34, 1
          %s660 = smul.addr %s659, 2
          %s661 = smul.addr %s660, 4
          %s662 = scalar_lea.vmem %s3, %s661
        $region88: #{graphsage_forward.1} parent=71 // pred_fallthru
          _
        // Predicated region
        $region89: #{graphsage_forward.1} parent=71 // pred_check
          %p663 = pneg %p158
        $region90: #{graphsage_forward.1} parent=71 // pred_check_branch
          %665 = sbr.rel (%p663) target = $region92
        $region91: #{graphsage_forward.1} parent=71 // pred_region
          %p666 = scmp.lt.s32.totalorder %s34, 1
          %s667 = scalar_select %p666, %s34, 1
          %s668 = smul.addr %s667, 8
          %s669 = scalar_lea.vmem %s4, %s668
        $region92: #{graphsage_forward.1} parent=71 // pred_fallthru
          _
      $region72: #{graphsage_forward.1} parent=5 // pred_fallthru
        _
      %p670 = scmp.le.s32.totalorder 1, %s34
      %p671 = scmp.lt.s32.totalorder %s34, 3
      %p672 = pnand %p670, %p671
      %p673 = pneg %p672
      // Predicated region
      $region93: #{graphsage_forward.1} parent=5 // pred_check
        _
      $region94: #{graphsage_forward.1} parent=5 // pred_check_branch
        %675 = sbr.rel (%p672) target = $region96
      $region95: #{graphsage_forward.1} parent=5 // pred_region
        %s676 = ssub.s32 %s34, 1
        // Predicated region
        $region97: #{graphsage_forward.1} parent=95 // pred_check
          %p677 = pneg %p248
        $region98: #{graphsage_forward.1} parent=95 // pred_check_branch
          %679 = sbr.rel (%p677) target = $region100
        $region99: #{graphsage_forward.1} parent=95 // pred_region
          %680 = dma.done [#allocation3], 4096
        $region100: #{graphsage_forward.1} parent=95 // pred_fallthru
          _
        // Predicated region
        $region101: #{graphsage_forward.1} parent=95 // pred_check
          %p681 = pneg %p269
        $region102: #{graphsage_forward.1} parent=95 // pred_check_branch
          %683 = sbr.rel (%p681) target = $region104
        $region103: #{graphsage_forward.1} parent=95 // pred_region
          %684 = dma.done [#allocation6], 4096
        $region104: #{graphsage_forward.1} parent=95 // pred_fallthru
          _
        // Predicated region
        $region105: #{graphsage_forward.1} parent=95 // pred_check
          %p685 = pneg %p290
        $region106: #{graphsage_forward.1} parent=95 // pred_check_branch
          %687 = sbr.rel (%p685) target = $region108
        $region107: #{graphsage_forward.1} parent=95 // pred_region
          %688 = dma.done [#allocation6], 4096
        $region108: #{graphsage_forward.1} parent=95 // pred_fallthru
          _
        // Predicated region
        $region109: #{graphsage_forward.1} parent=95 // pred_check
          %p689 = pneg %p311
        $region110: #{graphsage_forward.1} parent=95 // pred_check_branch
          %691 = sbr.rel (%p689) target = $region112
        $region111: #{graphsage_forward.1} parent=95 // pred_region
          %692 = dma.done [#allocation9], 4096
        $region112: #{graphsage_forward.1} parent=95 // pred_fallthru
          _
        // Predicated region
        $region113: #{graphsage_forward.1} parent=95 // pred_check
          %p693 = pneg %p332
        $region114: #{graphsage_forward.1} parent=95 // pred_check_branch
          %695 = sbr.rel (%p693) target = $region116
        $region115: #{graphsage_forward.1} parent=95 // pred_region
          %696 = dma.done [#allocation9], 4096
        $region116: #{graphsage_forward.1} parent=95 // pred_fallthru
          _
        // Predicated region
        $region117: #{graphsage_forward.1} parent=95 // pred_check
          %p697 = pneg %p437
        $region118: #{graphsage_forward.1} parent=95 // pred_check_branch
          %699 = sbr.rel (%p697) target = $region120
        $region119: #{graphsage_forward.1} parent=95 // pred_region
          %700 = dma.done [#allocation12], 2048
        $region120: #{graphsage_forward.1} parent=95 // pred_fallthru
          _
        %p701 = scmp.lt.s32.totalorder %s39, 1
        %s702 = scalar_select %p701, %s39, 1
        %s703 = smul.addr %s702, 64
        %s704 = smul.addr %s703, 4
        %s705 = scalar_lea.vmem %s0, %s704
        %p706 = pneg %p60
        %p707 = pneg %p57
        %p708 = scmp.lt.s32.totalorder %s39, 1
        %s709 = scalar_select %p708, %s39, 1
        %s710 = smul.addr %s709, 32
        %s711 = smul.addr %s710, 8
        %s712 = scalar_lea.vmem %s1, %s711
        %p713 = pneg %p86
        %p714 = pneg %p83
        %p715 = scmp.lt.s32.totalorder %s39, 1
        %s716 = scalar_select %p715, %s39, 1
        %s717 = smul.addr %s716, 32
        %s718 = smul.addr %s717, 4
        %s719 = scalar_lea.vmem %s2, %s718
        %p720 = pneg %p112
        %p721 = pneg %p109
        %p722 = scmp.lt.s32.totalorder %s39, 1
        %s723 = scalar_select %p722, %s39, 1
        %s724 = smul.addr %s723, 2
        %s725 = smul.addr %s724, 4
        %s726 = scalar_lea.vmem %s3, %s725
        %p727 = pneg %p138
        %p728 = pneg %p135
        %p729 = scmp.lt.s32.totalorder %s39, 1
        %s730 = scalar_select %p729, %s39, 1
        %s731 = smul.addr %s730, 8
        %s732 = scalar_lea.vmem %s4, %s731
        %p733 = pneg %p164
        %p734 = pneg %p161
        %p735 = pneg %p185
        %p736 = pneg %p182
        %p737 = pneg %p206
        %p738 = pneg %p203
        %p739 = pneg %p227
        %p740 = pneg %p224
        %p741 = pneg %p248
        %p742 = pneg %p245
        %p743 = pneg %p269
        %p744 = pneg %p266
        %p745 = pneg %p290
        %p746 = pneg %p287
        %p747 = pneg %p311
        %p748 = pneg %p308
        %p749 = pneg %p332
        %p750 = pneg %p329
        %p751 = pneg %p353
        %p752 = pneg %p350
        %p753 = pneg %p374
        %p754 = pneg %p371
        %p755 = pneg %p395
        %p756 = pneg %p392
        %p757 = pneg %p416
        %p758 = pneg %p413
        %p759 = pneg %p437
        %p760 = pneg %p434
        %p761 = pneg %p458
        %p762 = pneg %p455
        %p763 = pneg %p484
        %p764 = pneg %p481
        %p765 = scmp.lt.s32.totalorder %s39, 1
        %s766 = scalar_select %p765, %s39, 1
        %s767 = smul.addr %s766, 8
        %s768 = scalar_lea.vmem %s19, %s767
        %p769 = pneg %p510
        %p770 = pneg %p507
        %s771 = sand.u32 %s497, 1
        %s772 = scalar_lea.sflag [#allocation4], %s771
        %s773 = sand.u32 %s497, 1
        %s774 = smul.addr %s773, 16
        %s775 = scalar_lea.vmem [#allocation13], %s774
        %p776 = scmp.lt.s32.totalorder %s39, 1
        %s777 = scalar_select %p776, %s39, 1
        %s778 = smul.addr %s777, 64
        %s779 = smul.addr %s778, 4
        %s780 = scalar_lea.vmem %s0, %s779
        %p781 = scmp.lt.s32.totalorder %s39, 1
        %s782 = scalar_select %p781, %s39, 1
        %s783 = smul.addr %s782, 32
        %s784 = smul.addr %s783, 8
        %s785 = scalar_lea.vmem %s1, %s784
        %p786 = scmp.lt.s32.totalorder %s39, 1
        %s787 = scalar_select %p786, %s39, 1
        %s788 = smul.addr %s787, 32
        %s789 = smul.addr %s788, 4
        %s790 = scalar_lea.vmem %s2, %s789
        %p791 = scmp.lt.s32.totalorder %s39, 1
        %s792 = scalar_select %p791, %s39, 1
        %s793 = smul.addr %s792, 2
        %s794 = smul.addr %s793, 4
        %s795 = scalar_lea.vmem %s3, %s794
        %p796 = scmp.lt.s32.totalorder %s39, 1
        %s797 = scalar_select %p796, %s39, 1
        %s798 = smul.addr %s797, 8
        %s799 = scalar_lea.vmem %s4, %s798
        %p800 = scmp.lt.s32.totalorder %s39, 1
        %s801 = scalar_select %p800, %s39, 1
        %s802 = smul.addr %s801, 8
        %s803 = scalar_lea.vmem %s19, %s802
        %v805 = vld [vmem:[%s785] sm:$0xff]
        %v806 = vld [vmem:[%s785 + $0x8] sm:$0xff]
        %v807 = vld [vmem:[%s785 + $0x10] sm:$0xff]
        %v808 = vld [vmem:[%s785 + $0x18] sm:$0xff]
        %v809 = vld [vmem:[%s785 + $0x20] sm:$0xff]
        %v810 = vld [vmem:[%s785 + $0x28] sm:$0xff]
        %v811 = vld [vmem:[%s785 + $0x30] sm:$0xff]
        %v812 = vld [vmem:[%s785 + $0x38] sm:$0xff]
        %v813 = vld [vmem:[%s785 + $0x40] sm:$0xff]
        %v814 = vld [vmem:[%s785 + $0x48] sm:$0xff]
        %v815 = vld [vmem:[%s785 + $0x50] sm:$0xff]
        %v816 = vld [vmem:[%s785 + $0x58] sm:$0xff]
        %v817 = vld [vmem:[%s785 + $0x60] sm:$0xff]
        %v818 = vld [vmem:[%s785 + $0x68] sm:$0xff]
        %v819 = vld [vmem:[%s785 + $0x70] sm:$0xff]
        %v820 = vld [vmem:[%s785 + $0x78] sm:$0xff]
        %v821 = vld [vmem:[%s785 + $0x80] sm:$0xff]
        %v822 = vld [vmem:[%s785 + $0x88] sm:$0xff]
        %v823 = vld [vmem:[%s785 + $0x90] sm:$0xff]
        %v824 = vld [vmem:[%s785 + $0x98] sm:$0xff]
        %v825 = vld [vmem:[%s785 + $0xa0] sm:$0xff]
        %v826 = vld [vmem:[%s785 + $0xa8] sm:$0xff]
        %v827 = vld [vmem:[%s785 + $0xb0] sm:$0xff]
        %v828 = vld [vmem:[%s785 + $0xb8] sm:$0xff]
        %v829 = vld [vmem:[%s785 + $0xc0] sm:$0xff]
        %v830 = vld [vmem:[%s785 + $0xc8] sm:$0xff]
        %v831 = vld [vmem:[%s785 + $0xd0] sm:$0xff]
        %v832 = vld [vmem:[%s785 + $0xd8] sm:$0xff]
        %v833 = vld [vmem:[%s785 + $0xe0] sm:$0xff]
        %v834 = vld [vmem:[%s785 + $0xe8] sm:$0xff]
        %v835 = vld [vmem:[%s785 + $0xf0] sm:$0xff]
        %v836 = vld [vmem:[%s785 + $0xf8] sm:$0xff]
        %v837 = vld [vmem:[%s790] sm:$0xf]
        %v838 = vld [vmem:[%s790 + $0x4] sm:$0xf]
        %v839 = vld [vmem:[%s790 + $0x8] sm:$0xf]
        %v840 = vld [vmem:[%s790 + $0xc] sm:$0xf]
        %v841 = vld [vmem:[%s790 + $0x10] sm:$0xf]
        %v842 = vld [vmem:[%s790 + $0x14] sm:$0xf]
        %v843 = vld [vmem:[%s790 + $0x18] sm:$0xf]
        %v844 = vld [vmem:[%s790 + $0x1c] sm:$0xf]
        %v845 = vld [vmem:[%s790 + $0x20] sm:$0xf]
        %v846 = vld [vmem:[%s790 + $0x24] sm:$0xf]
        %v847 = vld [vmem:[%s790 + $0x28] sm:$0xf]
        %v848 = vld [vmem:[%s790 + $0x2c] sm:$0xf]
        %v849 = vld [vmem:[%s790 + $0x30] sm:$0xf]
        %v850 = vld [vmem:[%s790 + $0x34] sm:$0xf]
        %v851 = vld [vmem:[%s790 + $0x38] sm:$0xf]
        %v852 = vld [vmem:[%s790 + $0x3c] sm:$0xf]
        %v853 = vld [vmem:[%s790 + $0x40] sm:$0xf]
        %v854 = vld [vmem:[%s790 + $0x44] sm:$0xf]
        %v855 = vld [vmem:[%s790 + $0x48] sm:$0xf]
        %v856 = vld [vmem:[%s790 + $0x4c] sm:$0xf]
        %v857 = vld [vmem:[%s790 + $0x50] sm:$0xf]
        %v858 = vld [vmem:[%s790 + $0x54] sm:$0xf]
        %v859 = vld [vmem:[%s790 + $0x58] sm:$0xf]
        %v860 = vld [vmem:[%s790 + $0x5c] sm:$0xf]
        %v861 = vld [vmem:[%s790 + $0x60] sm:$0xf]
        %v862 = vld [vmem:[%s790 + $0x64] sm:$0xf]
        %v863 = vld [vmem:[%s790 + $0x68] sm:$0xf]
        %v864 = vld [vmem:[%s790 + $0x6c] sm:$0xf]
        %v865 = vld [vmem:[%s790 + $0x70] sm:$0xf]
        %v866 = vld [vmem:[%s790 + $0x74] sm:$0xf]
        %v867 = vld [vmem:[%s790 + $0x78] sm:$0xf]
        %v868 = vld [vmem:[%s790 + $0x7c] sm:$0xf]
        %v869 = vld [vmem:[%s780] sm:$0xff]
        %v870 = vld [vmem:[%s780 + $0x8] sm:$0xff]
        %v871 = vld [vmem:[%s780 + $0x10] sm:$0xff]
        %v872 = vld [vmem:[%s780 + $0x18] sm:$0xff]
        %v873 = vld [vmem:[%s780 + $0x20] sm:$0xff]
        %v874 = vld [vmem:[%s780 + $0x28] sm:$0xff]
        %v875 = vld [vmem:[%s780 + $0x30] sm:$0xff]
        %v876 = vld [vmem:[%s780 + $0x38] sm:$0xff]
        %v877 = vld [vmem:[%s780 + $0x40] sm:$0xff]
        %v878 = vld [vmem:[%s780 + $0x48] sm:$0xff]
        %v879 = vld [vmem:[%s780 + $0x50] sm:$0xff]
        %v880 = vld [vmem:[%s780 + $0x58] sm:$0xff]
        %v881 = vld [vmem:[%s780 + $0x60] sm:$0xff]
        %v882 = vld [vmem:[%s780 + $0x68] sm:$0xff]
        %v883 = vld [vmem:[%s780 + $0x70] sm:$0xff]
        %v884 = vld [vmem:[%s780 + $0x78] sm:$0xff]
        %v885 = vld [vmem:[%s780 + $0x80] sm:$0xff]
        %v886 = vld [vmem:[%s780 + $0x88] sm:$0xff]
        %v887 = vld [vmem:[%s780 + $0x90] sm:$0xff]
        %v888 = vld [vmem:[%s780 + $0x98] sm:$0xff]
        %v889 = vld [vmem:[%s780 + $0xa0] sm:$0xff]
        %v890 = vld [vmem:[%s780 + $0xa8] sm:$0xff]
        %v891 = vld [vmem:[%s780 + $0xb0] sm:$0xff]
        %v892 = vld [vmem:[%s780 + $0xb8] sm:$0xff]
        %v893 = vld [vmem:[%s780 + $0xc0] sm:$0xff]
        %v894 = vld [vmem:[%s780 + $0xc8] sm:$0xff]
        %v895 = vld [vmem:[%s780 + $0xd0] sm:$0xff]
        %v896 = vld [vmem:[%s780 + $0xd8] sm:$0xff]
        %v897 = vld [vmem:[%s780 + $0xe0] sm:$0xff]
        %v898 = vld [vmem:[%s780 + $0xe8] sm:$0xff]
        %v899 = vld [vmem:[%s780 + $0xf0] sm:$0xff]
        %v900 = vld [vmem:[%s780 + $0xf8] sm:$0xff]
        %v933 = vunpack.c.l.b16 %v869
        %v934 = vunpack.c.h.b16 %v869
        %v935 = vunpack.c.l.b16 %v870
        %v936 = vunpack.c.h.b16 %v870
        %v937 = vunpack.c.l.b16 %v871
        %v938 = vunpack.c.h.b16 %v871
        %v939 = vunpack.c.l.b16 %v872
        %v940 = vunpack.c.h.b16 %v872
        %v941 = vunpack.c.l.b16 %v873
        %v942 = vunpack.c.h.b16 %v873
        %v943 = vunpack.c.l.b16 %v874
        %v944 = vunpack.c.h.b16 %v874
        %v945 = vunpack.c.l.b16 %v875
        %v946 = vunpack.c.h.b16 %v875
        %v947 = vunpack.c.l.b16 %v876
        %v948 = vunpack.c.h.b16 %v876
        %v949 = vunpack.c.l.b16 %v877
        %v950 = vunpack.c.h.b16 %v877
        %v951 = vunpack.c.l.b16 %v878
        %v952 = vunpack.c.h.b16 %v878
        %v953 = vunpack.c.l.b16 %v879
        %v954 = vunpack.c.h.b16 %v879
        %v955 = vunpack.c.l.b16 %v880
        %v956 = vunpack.c.h.b16 %v880
        %v957 = vunpack.c.l.b16 %v881
        %v958 = vunpack.c.h.b16 %v881
        %v959 = vunpack.c.l.b16 %v882
        %v960 = vunpack.c.h.b16 %v882
        %v961 = vunpack.c.l.b16 %v883
        %v962 = vunpack.c.h.b16 %v883
        %v963 = vunpack.c.l.b16 %v884
        %v964 = vunpack.c.h.b16 %v884
        %v965 = vunpack.c.l.b16 %v885
        %v966 = vunpack.c.h.b16 %v885
        %v967 = vunpack.c.l.b16 %v886
        %v968 = vunpack.c.h.b16 %v886
        %v969 = vunpack.c.l.b16 %v887
        %v970 = vunpack.c.h.b16 %v887
        %v971 = vunpack.c.l.b16 %v888
        %v972 = vunpack.c.h.b16 %v888
        %v973 = vunpack.c.l.b16 %v889
        %v974 = vunpack.c.h.b16 %v889
        %v975 = vunpack.c.l.b16 %v890
        %v976 = vunpack.c.h.b16 %v890
        %v977 = vunpack.c.l.b16 %v891
        %v978 = vunpack.c.h.b16 %v891
        %v979 = vunpack.c.l.b16 %v892
        %v980 = vunpack.c.h.b16 %v892
        %v981 = vunpack.c.l.b16 %v893
        %v982 = vunpack.c.h.b16 %v893
        %v983 = vunpack.c.l.b16 %v894
        %v984 = vunpack.c.h.b16 %v894
        %v985 = vunpack.c.l.b16 %v895
        %v986 = vunpack.c.h.b16 %v895
        %v987 = vunpack.c.l.b16 %v896
        %v988 = vunpack.c.h.b16 %v896
        %v989 = vunpack.c.l.b16 %v897
        %v990 = vunpack.c.h.b16 %v897
        %v991 = vunpack.c.l.b16 %v898
        %v992 = vunpack.c.h.b16 %v898
        %v993 = vunpack.c.l.b16 %v899
        %v994 = vunpack.c.h.b16 %v899
        %v995 = vunpack.c.l.b16 %v900
        %v996 = vunpack.c.h.b16 %v900
        %v997 = vpack.c.b16 %v935, %v933
        %v998 = vpack.c.b16 %v936, %v934
        %v999 = vpack.c.b16 %v939, %v937
        %v1000 = vpack.c.b16 %v940, %v938
        %v1001 = vpack.c.b16 %v943, %v941
        %v1002 = vpack.c.b16 %v944, %v942
        %v1003 = vpack.c.b16 %v947, %v945
        %v1004 = vpack.c.b16 %v948, %v946
        %v1005 = vpack.c.b16 %v951, %v949
        %v1006 = vpack.c.b16 %v952, %v950
        %v1007 = vpack.c.b16 %v955, %v953
        %v1008 = vpack.c.b16 %v956, %v954
        %v1009 = vpack.c.b16 %v959, %v957
        %v1010 = vpack.c.b16 %v960, %v958
        %v1011 = vpack.c.b16 %v963, %v961
        %v1012 = vpack.c.b16 %v964, %v962
        %v1013 = vpack.c.b16 %v967, %v965
        %v1014 = vpack.c.b16 %v968, %v966
        %v1015 = vpack.c.b16 %v971, %v969
        %v1016 = vpack.c.b16 %v972, %v970
        %v1017 = vpack.c.b16 %v975, %v973
        %v1018 = vpack.c.b16 %v976, %v974
        %v1019 = vpack.c.b16 %v979, %v977
        %v1020 = vpack.c.b16 %v980, %v978
        %v1021 = vpack.c.b16 %v983, %v981
        %v1022 = vpack.c.b16 %v984, %v982
        %v1023 = vpack.c.b16 %v987, %v985
        %v1024 = vpack.c.b16 %v988, %v986
        %v1025 = vpack.c.b16 %v991, %v989
        %v1026 = vpack.c.b16 %v992, %v990
        %v1027 = vpack.c.b16 %v995, %v993
        %v1028 = vpack.c.b16 %v996, %v994
        %v1093 = vunpack.c.l.b16 %v837
        %v1094 = vunpack.c.l.b16 %v838
        %v1095 = vunpack.c.l.b16 %v839
        %v1096 = vunpack.c.l.b16 %v840
        %v1097 = vunpack.c.l.b16 %v841
        %v1098 = vunpack.c.l.b16 %v842
        %v1099 = vunpack.c.l.b16 %v843
        %v1100 = vunpack.c.l.b16 %v844
        %v1101 = vunpack.c.l.b16 %v845
        %v1102 = vunpack.c.l.b16 %v846
        %v1103 = vunpack.c.l.b16 %v847
        %v1104 = vunpack.c.l.b16 %v848
        %v1105 = vunpack.c.l.b16 %v849
        %v1106 = vunpack.c.l.b16 %v850
        %v1107 = vunpack.c.l.b16 %v851
        %v1108 = vunpack.c.l.b16 %v852
        %v1109 = vunpack.c.l.b16 %v853
        %v1110 = vunpack.c.l.b16 %v854
        %v1111 = vunpack.c.l.b16 %v855
        %v1112 = vunpack.c.l.b16 %v856
        %v1113 = vunpack.c.l.b16 %v857
        %v1114 = vunpack.c.l.b16 %v858
        %v1115 = vunpack.c.l.b16 %v859
        %v1116 = vunpack.c.l.b16 %v860
        %v1117 = vunpack.c.l.b16 %v861
        %v1118 = vunpack.c.l.b16 %v862
        %v1119 = vunpack.c.l.b16 %v863
        %v1120 = vunpack.c.l.b16 %v864
        %v1121 = vunpack.c.l.b16 %v865
        %v1122 = vunpack.c.l.b16 %v866
        %v1123 = vunpack.c.l.b16 %v867
        %v1124 = vunpack.c.l.b16 %v868
        %v1125 = vpack.c.b16 %v1094, %v1093
        %v1126 = vpack.c.b16 %v1096, %v1095
        %v1127 = vpack.c.b16 %v1098, %v1097
        %v1128 = vpack.c.b16 %v1100, %v1099
        %v1129 = vpack.c.b16 %v1102, %v1101
        %v1130 = vpack.c.b16 %v1104, %v1103
        %v1131 = vpack.c.b16 %v1106, %v1105
        %v1132 = vpack.c.b16 %v1108, %v1107
        %v1133 = vpack.c.b16 %v1110, %v1109
        %v1134 = vpack.c.b16 %v1112, %v1111
        %v1135 = vpack.c.b16 %v1114, %v1113
        %v1136 = vpack.c.b16 %v1116, %v1115
        %v1137 = vpack.c.b16 %v1118, %v1117
        %v1138 = vpack.c.b16 %v1120, %v1119
        %v1139 = vpack.c.b16 %v1122, %v1121
        %v1140 = vpack.c.b16 %v1124, %v1123
        %1157 = vmatprep.subr.bf16.mxu0 0
        %1158 = vmatpush1.bf16.msra.mxu0 %v1125
        %1159 = vmatprep.subr.bf16.mxu0 0
        %1160 = vmatpush1.bf16.msra.mxu0 %v1126
        %1161 = vmatprep.subr.bf16.mxu0 0
        %1162 = vmatpush1.bf16.msra.mxu0 %v1127
        %1163 = vmatprep.subr.bf16.mxu0 0
        %1164 = vmatpush1.bf16.msra.mxu0 %v1128
        %1165 = vmatprep.subr.bf16.mxu0 0
        %1166 = vmatpush1.bf16.msra.mxu0 %v1129
        %1167 = vmatprep.subr.bf16.mxu0 0
        %1168 = vmatpush1.bf16.msra.mxu0 %v1130
        %1169 = vmatprep.subr.bf16.mxu0 0
        %1170 = vmatpush1.bf16.msra.mxu0 %v1131
        %1171 = vmatprep.subr.bf16.mxu0 0
        %1172 = vmatpush1.bf16.msra.mxu0 %v1132
        %1173 = vmatprep.subr.bf16.mxu0 0
        %1174 = vmatpush1.bf16.msra.mxu0 %v1133
        %1175 = vmatprep.subr.bf16.mxu0 0
        %1176 = vmatpush1.bf16.msra.mxu0 %v1134
        %1177 = vmatprep.subr.bf16.mxu0 0
        %1178 = vmatpush1.bf16.msra.mxu0 %v1135
        %1179 = vmatprep.subr.bf16.mxu0 0
        %1180 = vmatpush1.bf16.msra.mxu0 %v1136
        %1181 = vmatprep.subr.bf16.mxu0 0
        %1182 = vmatpush1.bf16.msra.mxu0 %v1137
        %1183 = vmatprep.subr.bf16.mxu0 0
        %1184 = vmatpush1.bf16.msra.mxu0 %v1138
        %1185 = vmatprep.subr.bf16.mxu0 0
        %1186 = vmatpush1.bf16.msra.mxu0 %v1139
        %1187 = vmatprep.subr.bf16.mxu0 0
        %1188 = vmatpush1.bf16.msra.mxu0 %v1140
        %1189 = vmatprep.mubr.bf16.mxu0 %v998
        %1190 = vmatmul.mubr.bf16.gmra.mrb[0].mxu0 %v997
        %v1191 = vpop.f32.mrb[0].mxu0
        %v1192 = vadd.f32 0.0, %v1191
        %v1193 = vpop.f32.mrb[0].mxu0
        %v1194 = vpop.f32.mrb[0].mxu0
        %v1195 = vadd.f32 0.0, %v1194
        %v1196 = vpop.f32.mrb[0].mxu0
        %1197 = vmatprep.mubr.bf16.mxu0 %v1000
        %1198 = vmatmul.mubr.bf16.gmra.mrb[0].mxu0 %v999
        %v1199 = vpop.f32.mrb[0].mxu0
        %v1200 = vadd.f32 0.0, %v1199
        %v1201 = vpop.f32.mrb[0].mxu0
        %v1202 = vpop.f32.mrb[0].mxu0
        %v1203 = vadd.f32 0.0, %v1202
        %v1204 = vpop.f32.mrb[0].mxu0
        %1205 = vmatprep.mubr.bf16.mxu0 %v1002
        %1206 = vmatmul.mubr.bf16.gmra.mrb[0].mxu0 %v1001
        %v1207 = vpop.f32.mrb[0].mxu0
        %v1208 = vadd.f32 0.0, %v1207
        %v1209 = vpop.f32.mrb[0].mxu0
        %v1210 = vpop.f32.mrb[0].mxu0
        %v1211 = vadd.f32 0.0, %v1210
        %v1212 = vpop.f32.mrb[0].mxu0
        %1213 = vmatprep.mubr.bf16.mxu0 %v1004
        %1214 = vmatmul.mubr.bf16.gmra.mrb[0].mxu0 %v1003
        %v1215 = vpop.f32.mrb[0].mxu0
        %v1216 = vadd.f32 0.0, %v1215
        %v1217 = vpop.f32.mrb[0].mxu0
        %v1218 = vpop.f32.mrb[0].mxu0
        %v1219 = vadd.f32 0.0, %v1218
        %v1220 = vpop.f32.mrb[0].mxu0
        %1221 = vmatprep.mubr.bf16.mxu0 %v1006
        %1222 = vmatmul.mubr.bf16.gmra.mrb[0].mxu0 %v1005
        %v1223 = vpop.f32.mrb[0].mxu0
        %v1224 = vadd.f32 0.0, %v1223
        %v1225 = vpop.f32.mrb[0].mxu0
        %v1226 = vpop.f32.mrb[0].mxu0
        %v1227 = vadd.f32 0.0, %v1226
        %v1228 = vpop.f32.mrb[0].mxu0
        %1229 = vmatprep.mubr.bf16.mxu0 %v1008
        %1230 = vmatmul.mubr.bf16.gmra.mrb[0].mxu0 %v1007
        %v1231 = vpop.f32.mrb[0].mxu0
        %v1232 = vadd.f32 0.0, %v1231
        %v1233 = vpop.f32.mrb[0].mxu0
        %v1234 = vpop.f32.mrb[0].mxu0
        %v1235 = vadd.f32 0.0, %v1234
        %v1236 = vpop.f32.mrb[0].mxu0
        %1237 = vmatprep.mubr.bf16.mxu0 %v1010
        %1238 = vmatmul.mubr.bf16.gmra.mrb[0].mxu0 %v1009
        %v1239 = vpop.f32.mrb[0].mxu0
        %v1240 = vadd.f32 0.0, %v1239
        %v1241 = vpop.f32.mrb[0].mxu0
        %v1242 = vpop.f32.mrb[0].mxu0
        %v1243 = vadd.f32 0.0, %v1242
        %v1244 = vpop.f32.mrb[0].mxu0
        %1245 = vmatprep.mubr.bf16.mxu0 %v1012
        %1246 = vmatmul.mubr.bf16.gmra.mrb[0].mxu0 %v1011
        %v1247 = vpop.f32.mrb[0].mxu0
        %v1248 = vadd.f32 0.0, %v1247
        %v1249 = vpop.f32.mrb[0].mxu0
        %v1250 = vpop.f32.mrb[0].mxu0
        %v1251 = vadd.f32 0.0, %v1250
        %v1252 = vpop.f32.mrb[0].mxu0
        %1253 = vmatprep.mubr.bf16.mxu0 %v1014
        %1254 = vmatmul.mubr.bf16.gmra.mrb[0].mxu0 %v1013
        %v1255 = vpop.f32.mrb[0].mxu0
        %v1256 = vadd.f32 0.0, %v1255
        %v1257 = vpop.f32.mrb[0].mxu0
        %v1258 = vpop.f32.mrb[0].mxu0
        %v1259 = vadd.f32 0.0, %v1258
        %v1260 = vpop.f32.mrb[0].mxu0
        %1261 = vmatprep.mubr.bf16.mxu0 %v1016
        %1262 = vmatmul.mubr.bf16.gmra.mrb[0].mxu0 %v1015
        %v1263 = vpop.f32.mrb[0].mxu0
        %v1264 = vadd.f32 0.0, %v1263
        %v1265 = vpop.f32.mrb[0].mxu0
        %v1266 = vpop.f32.mrb[0].mxu0
        %v1267 = vadd.f32 0.0, %v1266
        %v1268 = vpop.f32.mrb[0].mxu0
        %1269 = vmatprep.mubr.bf16.mxu0 %v1018
        %1270 = vmatmul.mubr.bf16.gmra.mrb[0].mxu0 %v1017
        %v1271 = vpop.f32.mrb[0].mxu0
        %v1272 = vadd.f32 0.0, %v1271
        %v1273 = vpop.f32.mrb[0].mxu0
        %v1274 = vpop.f32.mrb[0].mxu0
        %v1275 = vadd.f32 0.0, %v1274
        %v1276 = vpop.f32.mrb[0].mxu0
        %1277 = vmatprep.mubr.bf16.mxu0 %v1020
        %1278 = vmatmul.mubr.bf16.gmra.mrb[0].mxu0 %v1019
        %v1279 = vpop.f32.mrb[0].mxu0
        %v1280 = vadd.f32 0.0, %v1279
        %v1281 = vpop.f32.mrb[0].mxu0
        %v1282 = vpop.f32.mrb[0].mxu0
        %v1283 = vadd.f32 0.0, %v1282
        %v1284 = vpop.f32.mrb[0].mxu0
        %1285 = vmatprep.mubr.bf16.mxu0 %v1022
        %1286 = vmatmul.mubr.bf16.gmra.mrb[0].mxu0 %v1021
        %v1287 = vpop.f32.mrb[0].mxu0
        %v1288 = vadd.f32 0.0, %v1287
        %v1289 = vpop.f32.mrb[0].mxu0
        %v1290 = vpop.f32.mrb[0].mxu0
        %v1291 = vadd.f32 0.0, %v1290
        %v1292 = vpop.f32.mrb[0].mxu0
        %1293 = vmatprep.mubr.bf16.mxu0 %v1024
        %1294 = vmatmul.mubr.bf16.gmra.mrb[0].mxu0 %v1023
        %v1295 = vpop.f32.mrb[0].mxu0
        %v1296 = vadd.f32 0.0, %v1295
        %v1297 = vpop.f32.mrb[0].mxu0
        %v1298 = vpop.f32.mrb[0].mxu0
        %v1299 = vadd.f32 0.0, %v1298
        %v1300 = vpop.f32.mrb[0].mxu0
        %1301 = vmatprep.mubr.bf16.mxu0 %v1026
        %1302 = vmatmul.mubr.bf16.gmra.mrb[0].mxu0 %v1025
        %v1303 = vpop.f32.mrb[0].mxu0
        %v1304 = vadd.f32 0.0, %v1303
        %v1305 = vpop.f32.mrb[0].mxu0
        %v1306 = vpop.f32.mrb[0].mxu0
        %v1307 = vadd.f32 0.0, %v1306
        %v1308 = vpop.f32.mrb[0].mxu0
        %1309 = vmatprep.mubr.bf16.mxu0 %v1028
        %1310 = vmatmul.mubr.bf16.gmra.mrb[0].mxu0 %v1027
        %v1311 = vpop.f32.mrb[0].mxu0
        %v1312 = vadd.f32 0.0, %v1311
        %v1313 = vpop.f32.mrb[0].mxu0
        %v1314 = vpop.f32.mrb[0].mxu0
        %v1315 = vadd.f32 0.0, %v1314
        %v1316 = vpop.f32.mrb[0].mxu0
        %1317 = vdwg.mxu0
        %1319 = vset.pattern.permute.xlu0 0
        %1320 = vperm.xlu0 %1319, %v805
        %v1321 = vpop.permute.xlu0 %1320
        %1324 = vset.pattern.permute.xlu0 0
        %1325 = vperm.xlu0 %1324, %v806
        %v1326 = vpop.permute.xlu0 %1325
        %1329 = vset.pattern.permute.xlu0 0
        %1330 = vperm.xlu0 %1329, %v807
        %v1331 = vpop.permute.xlu0 %1330
        %1334 = vset.pattern.permute.xlu0 0
        %1335 = vperm.xlu0 %1334, %v808
        %v1336 = vpop.permute.xlu0 %1335
        %1339 = vset.pattern.permute.xlu0 0
        %1340 = vperm.xlu0 %1339, %v809
        %v1341 = vpop.permute.xlu0 %1340
        %1344 = vset.pattern.permute.xlu0 0
        %1345 = vperm.xlu0 %1344, %v810
        %v1346 = vpop.permute.xlu0 %1345
        %1349 = vset.pattern.permute.xlu0 0
        %1350 = vperm.xlu0 %1349, %v811
        %v1351 = vpop.permute.xlu0 %1350
        %1354 = vset.pattern.permute.xlu0 0
        %1355 = vperm.xlu0 %1354, %v812
        %v1356 = vpop.permute.xlu0 %1355
        %1359 = vset.pattern.permute.xlu0 0
        %1360 = vperm.xlu0 %1359, %v813
        %v1361 = vpop.permute.xlu0 %1360
        %1364 = vset.pattern.permute.xlu0 0
        %1365 = vperm.xlu0 %1364, %v814
        %v1366 = vpop.permute.xlu0 %1365
        %1369 = vset.pattern.permute.xlu0 0
        %1370 = vperm.xlu0 %1369, %v815
        %v1371 = vpop.permute.xlu0 %1370
        %1374 = vset.pattern.permute.xlu0 0
        %1375 = vperm.xlu0 %1374, %v816
        %v1376 = vpop.permute.xlu0 %1375
        %1379 = vset.pattern.permute.xlu0 0
        %1380 = vperm.xlu0 %1379, %v817
        %v1381 = vpop.permute.xlu0 %1380
        %1384 = vset.pattern.permute.xlu0 0
        %1385 = vperm.xlu0 %1384, %v818
        %v1386 = vpop.permute.xlu0 %1385
        %1389 = vset.pattern.permute.xlu0 0
        %1390 = vperm.xlu0 %1389, %v819
        %v1391 = vpop.permute.xlu0 %1390
        %1394 = vset.pattern.permute.xlu0 0
        %1395 = vperm.xlu0 %1394, %v820
        %v1396 = vpop.permute.xlu0 %1395
        %1399 = vset.pattern.permute.xlu0 0
        %1400 = vperm.xlu0 %1399, %v821
        %v1401 = vpop.permute.xlu0 %1400
        %1404 = vset.pattern.permute.xlu0 0
        %1405 = vperm.xlu0 %1404, %v822
        %v1406 = vpop.permute.xlu0 %1405
        %1409 = vset.pattern.permute.xlu0 0
        %1410 = vperm.xlu0 %1409, %v823
        %v1411 = vpop.permute.xlu0 %1410
        %1414 = vset.pattern.permute.xlu0 0
        %1415 = vperm.xlu0 %1414, %v824
        %v1416 = vpop.permute.xlu0 %1415
        %1419 = vset.pattern.permute.xlu0 0
        %1420 = vperm.xlu0 %1419, %v825
        %v1421 = vpop.permute.xlu0 %1420
        %1424 = vset.pattern.permute.xlu0 0
        %1425 = vperm.xlu0 %1424, %v826
        %v1426 = vpop.permute.xlu0 %1425
        %1429 = vset.pattern.permute.xlu0 0
        %1430 = vperm.xlu0 %1429, %v827
        %v1431 = vpop.permute.xlu0 %1430
        %1434 = vset.pattern.permute.xlu0 0
        %1435 = vperm.xlu0 %1434, %v828
        %v1436 = vpop.permute.xlu0 %1435
        %1439 = vset.pattern.permute.xlu0 0
        %1440 = vperm.xlu0 %1439, %v829
        %v1441 = vpop.permute.xlu0 %1440
        %1444 = vset.pattern.permute.xlu0 0
        %1445 = vperm.xlu0 %1444, %v830
        %v1446 = vpop.permute.xlu0 %1445
        %1449 = vset.pattern.permute.xlu0 0
        %1450 = vperm.xlu0 %1449, %v831
        %v1451 = vpop.permute.xlu0 %1450
        %1454 = vset.pattern.permute.xlu0 0
        %1455 = vperm.xlu0 %1454, %v832
        %v1456 = vpop.permute.xlu0 %1455
        %1459 = vset.pattern.permute.xlu0 0
        %1460 = vperm.xlu0 %1459, %v833
        %v1461 = vpop.permute.xlu0 %1460
        %1464 = vset.pattern.permute.xlu0 0
        %1465 = vperm.xlu0 %1464, %v834
        %v1466 = vpop.permute.xlu0 %1465
        %1469 = vset.pattern.permute.xlu0 0
        %1470 = vperm.xlu0 %1469, %v835
        %v1471 = vpop.permute.xlu0 %1470
        %1474 = vset.pattern.permute.xlu0 0
        %1475 = vperm.xlu0 %1474, %v836
        %v1476 = vpop.permute.xlu0 %1475
        %v1478 = vmul.f32 %v1192, %v1321
        %v1479 = vmul.f32 %v1195, %v1326
        %v1480 = vmul.f32 %v1200, %v1331
        %v1481 = vmul.f32 %v1203, %v1336
        %v1482 = vmul.f32 %v1208, %v1341
        %v1483 = vmul.f32 %v1211, %v1346
        %v1484 = vmul.f32 %v1216, %v1351
        %v1485 = vmul.f32 %v1219, %v1356
        %v1486 = vmul.f32 %v1224, %v1361
        %v1487 = vmul.f32 %v1227, %v1366
        %v1488 = vmul.f32 %v1232, %v1371
        %v1489 = vmul.f32 %v1235, %v1376
        %v1490 = vmul.f32 %v1240, %v1381
        %v1491 = vmul.f32 %v1243, %v1386
        %v1492 = vmul.f32 %v1248, %v1391
        %v1493 = vmul.f32 %v1251, %v1396
        %v1494 = vmul.f32 %v1256, %v1401
        %v1495 = vmul.f32 %v1259, %v1406
        %v1496 = vmul.f32 %v1264, %v1411
        %v1497 = vmul.f32 %v1267, %v1416
        %v1498 = vmul.f32 %v1272, %v1421
        %v1499 = vmul.f32 %v1275, %v1426
        %v1500 = vmul.f32 %v1280, %v1431
        %v1501 = vmul.f32 %v1283, %v1436
        %v1502 = vmul.f32 %v1288, %v1441
        %v1503 = vmul.f32 %v1291, %v1446
        %v1504 = vmul.f32 %v1296, %v1451
        %v1505 = vmul.f32 %v1299, %v1456
        %v1506 = vmul.f32 %v1304, %v1461
        %v1507 = vmul.f32 %v1307, %v1466
        %v1508 = vmul.f32 %v1312, %v1471
        %v1509 = vmul.f32 %v1315, %v1476
        %v1510 = vpack.c.bf16 %v1479, %v1478
        %v1511 = vpack.c.bf16 %v1481, %v1480
        %v1512 = vpack.c.bf16 %v1483, %v1482
        %v1513 = vpack.c.bf16 %v1485, %v1484
        %v1514 = vpack.c.bf16 %v1487, %v1486
        %v1515 = vpack.c.bf16 %v1489, %v1488
        %v1516 = vpack.c.bf16 %v1491, %v1490
        %v1517 = vpack.c.bf16 %v1493, %v1492
        %v1518 = vpack.c.bf16 %v1495, %v1494
        %v1519 = vpack.c.bf16 %v1497, %v1496
        %v1520 = vpack.c.bf16 %v1499, %v1498
        %v1521 = vpack.c.bf16 %v1501, %v1500
        %v1522 = vpack.c.bf16 %v1503, %v1502
        %v1523 = vpack.c.bf16 %v1505, %v1504
        %v1524 = vpack.c.bf16 %v1507, %v1506
        %v1525 = vpack.c.bf16 %v1509, %v1508
        %v1526 = vld [vmem:[%s5] sm:$0xff]
        %v1527 = vld [vmem:[%s5 + $0x8] sm:$0xff]
        %v1528 = vld [vmem:[%s6] sm:$0xff]
        %v1529 = vld [vmem:[%s6 + $0x8] sm:$0xff]
        %v1532 = vunpack.c.l.b16 %v1528
        %v1533 = vunpack.c.h.b16 %v1528
        %v1534 = vunpack.c.l.b16 %v1529
        %v1535 = vunpack.c.h.b16 %v1529
        %v1536 = vpack.c.b16 %v1534, %v1532
        %v1537 = vpack.c.b16 %v1535, %v1533
        %vm1540 = vcmask 130048
        %v1542 = vsel %vm1540, %v1125, 0
        %v1545 = vsel %vm1540, %v1126, 0
        %v1548 = vsel %vm1540, %v1127, 0
        %v1551 = vsel %vm1540, %v1128, 0
        %v1554 = vsel %vm1540, %v1129, 0
        %v1557 = vsel %vm1540, %v1130, 0
        %v1560 = vsel %vm1540, %v1131, 0
        %v1563 = vsel %vm1540, %v1132, 0
        %v1566 = vsel %vm1540, %v1133, 0
        %v1569 = vsel %vm1540, %v1134, 0
        %v1572 = vsel %vm1540, %v1135, 0
        %v1575 = vsel %vm1540, %v1136, 0
        %v1578 = vsel %vm1540, %v1137, 0
        %v1581 = vsel %vm1540, %v1138, 0
        %v1584 = vsel %vm1540, %v1139, 0
        %v1587 = vsel %vm1540, %v1140, 0
        %1589 = vmatprep.subr.bf16.mxu0 %v1537
        %1590 = vmatpush1.bf16.msra.mxu0 %v1536
        %1591 = vmatprep.subr.bf16.mxu0 0
        %1592 = vmatpush1.bf16.msra.mxu0 0
        %1593 = vmatprep.subr.bf16.mxu0 0
        %1594 = vmatpush1.bf16.msra.mxu0 0
        %1595 = vmatprep.subr.bf16.mxu0 0
        %1596 = vmatpush1.bf16.msra.mxu0 0
        %1597 = vmatprep.subr.bf16.mxu0 0
        %1598 = vmatpush1.bf16.msra.mxu0 0
        %1599 = vmatprep.subr.bf16.mxu0 0
        %1600 = vmatpush1.bf16.msra.mxu0 0
        %1601 = vmatprep.subr.bf16.mxu0 0
        %1602 = vmatpush1.bf16.msra.mxu0 0
        %1603 = vmatprep.subr.bf16.mxu0 0
        %1604 = vmatpush1.bf16.msra.mxu0 0
        %1605 = vmatprep.subr.bf16.mxu0 0
        %1606 = vmatpush1.bf16.msra.mxu0 0
        %1607 = vmatprep.subr.bf16.mxu0 0
        %1608 = vmatpush1.bf16.msra.mxu0 0
        %1609 = vmatprep.subr.bf16.mxu0 0
        %1610 = vmatpush1.bf16.msra.mxu0 0
        %1611 = vmatprep.subr.bf16.mxu0 0
        %1612 = vmatpush1.bf16.msra.mxu0 0
        %1613 = vmatprep.subr.bf16.mxu0 0
        %1614 = vmatpush1.bf16.msra.mxu0 0
        %1615 = vmatprep.subr.bf16.mxu0 0
        %1616 = vmatpush1.bf16.msra.mxu0 0
        %1617 = vmatprep.subr.bf16.mxu0 0
        %1618 = vmatpush1.bf16.msra.mxu0 0
        %1619 = vmatprep.subr.bf16.mxu0 0
        %1620 = vmatpush1.bf16.msra.mxu0 0
        %1621 = vmatprep.mubr.bf16.mxu0 0
        %1622 = vmatmul.mubr.bf16.gmra.mrb[0].mxu0 %v1542
        %v1623 = vpop.f32.mrb[0].mxu0
        %v1624 = vadd.f32 0.0, %v1623
        %v1625 = vpop.f32.mrb[0].mxu0
        %v1626 = vadd.f32 0.0, %v1625
        %v1627 = vpop.f32.mrb[0].mxu0
        %v1628 = vadd.f32 0.0, %v1627
        %v1629 = vpop.f32.mrb[0].mxu0
        %v1630 = vadd.f32 0.0, %v1629
        %1631 = vmatprep.mubr.bf16.mxu0 0
        %1632 = vmatmul.mubr.bf16.gmra.mrb[0].mxu0 %v1545
        %v1633 = vpop.f32.mrb[0].mxu0
        %v1634 = vadd.f32 0.0, %v1633
        %v1635 = vpop.f32.mrb[0].mxu0
        %v1636 = vadd.f32 0.0, %v1635
        %v1637 = vpop.f32.mrb[0].mxu0
        %v1638 = vadd.f32 0.0, %v1637
        %v1639 = vpop.f32.mrb[0].mxu0
        %v1640 = vadd.f32 0.0, %v1639
        %1641 = vmatprep.mubr.bf16.mxu0 0
        %1642 = vmatmul.mubr.bf16.gmra.mrb[0].mxu0 %v1548
        %v1643 = vpop.f32.mrb[0].mxu0
        %v1644 = vadd.f32 0.0, %v1643
        %v1645 = vpop.f32.mrb[0].mxu0
        %v1646 = vadd.f32 0.0, %v1645
        %v1647 = vpop.f32.mrb[0].mxu0
        %v1648 = vadd.f32 0.0, %v1647
        %v1649 = vpop.f32.mrb[0].mxu0
        %v1650 = vadd.f32 0.0, %v1649
        %1651 = vmatprep.mubr.bf16.mxu0 0
        %1652 = vmatmul.mubr.bf16.gmra.mrb[0].mxu0 %v1551
        %v1653 = vpop.f32.mrb[0].mxu0
        %v1654 = vadd.f32 0.0, %v1653
        %v1655 = vpop.f32.mrb[0].mxu0
        %v1656 = vadd.f32 0.0, %v1655
        %v1657 = vpop.f32.mrb[0].mxu0
        %v1658 = vadd.f32 0.0, %v1657
        %v1659 = vpop.f32.mrb[0].mxu0
        %v1660 = vadd.f32 0.0, %v1659
        %1661 = vmatprep.mubr.bf16.mxu0 0
        %1662 = vmatmul.mubr.bf16.gmra.mrb[0].mxu0 %v1554
        %v1663 = vpop.f32.mrb[0].mxu0
        %v1664 = vadd.f32 0.0, %v1663
        %v1665 = vpop.f32.mrb[0].mxu0
        %v1666 = vadd.f32 0.0, %v1665
        %v1667 = vpop.f32.mrb[0].mxu0
        %v1668 = vadd.f32 0.0, %v1667
        %v1669 = vpop.f32.mrb[0].mxu0
        %v1670 = vadd.f32 0.0, %v1669
        %1671 = vmatprep.mubr.bf16.mxu0 0
        %1672 = vmatmul.mubr.bf16.gmra.mrb[0].mxu0 %v1557
        %v1673 = vpop.f32.mrb[0].mxu0
        %v1674 = vadd.f32 0.0, %v1673
        %v1675 = vpop.f32.mrb[0].mxu0
        %v1676 = vadd.f32 0.0, %v1675
        %v1677 = vpop.f32.mrb[0].mxu0
        %v1678 = vadd.f32 0.0, %v1677
        %v1679 = vpop.f32.mrb[0].mxu0
        %v1680 = vadd.f32 0.0, %v1679
        %1681 = vmatprep.mubr.bf16.mxu0 0
        %1682 = vmatmul.mubr.bf16.gmra.mrb[0].mxu0 %v1560
        %v1683 = vpop.f32.mrb[0].mxu0
        %v1684 = vadd.f32 0.0, %v1683
        %v1685 = vpop.f32.mrb[0].mxu0
        %v1686 = vadd.f32 0.0, %v1685
        %v1687 = vpop.f32.mrb[0].mxu0
        %v1688 = vadd.f32 0.0, %v1687
        %v1689 = vpop.f32.mrb[0].mxu0
        %v1690 = vadd.f32 0.0, %v1689
        %1691 = vmatprep.mubr.bf16.mxu0 0
        %1692 = vmatmul.mubr.bf16.gmra.mrb[0].mxu0 %v1563
        %v1693 = vpop.f32.mrb[0].mxu0
        %v1694 = vadd.f32 0.0, %v1693
        %v1695 = vpop.f32.mrb[0].mxu0
        %v1696 = vadd.f32 0.0, %v1695
        %v1697 = vpop.f32.mrb[0].mxu0
        %v1698 = vadd.f32 0.0, %v1697
        %v1699 = vpop.f32.mrb[0].mxu0
        %v1700 = vadd.f32 0.0, %v1699
        %1701 = vmatprep.mubr.bf16.mxu0 0
        %1702 = vmatmul.mubr.bf16.gmra.mrb[0].mxu0 %v1566
        %v1703 = vpop.f32.mrb[0].mxu0
        %v1704 = vadd.f32 0.0, %v1703
        %v1705 = vpop.f32.mrb[0].mxu0
        %v1706 = vadd.f32 0.0, %v1705
        %v1707 = vpop.f32.mrb[0].mxu0
        %v1708 = vadd.f32 0.0, %v1707
        %v1709 = vpop.f32.mrb[0].mxu0
        %v1710 = vadd.f32 0.0, %v1709
        %1711 = vmatprep.mubr.bf16.mxu0 0
        %1712 = vmatmul.mubr.bf16.gmra.mrb[0].mxu0 %v1569
        %v1713 = vpop.f32.mrb[0].mxu0
        %v1714 = vadd.f32 0.0, %v1713
        %v1715 = vpop.f32.mrb[0].mxu0
        %v1716 = vadd.f32 0.0, %v1715
        %v1717 = vpop.f32.mrb[0].mxu0
        %v1718 = vadd.f32 0.0, %v1717
        %v1719 = vpop.f32.mrb[0].mxu0
        %v1720 = vadd.f32 0.0, %v1719
        %1721 = vmatprep.mubr.bf16.mxu0 0
        %1722 = vmatmul.mubr.bf16.gmra.mrb[0].mxu0 %v1572
        %v1723 = vpop.f32.mrb[0].mxu0
        %v1724 = vadd.f32 0.0, %v1723
        %v1725 = vpop.f32.mrb[0].mxu0
        %v1726 = vadd.f32 0.0, %v1725
        %v1727 = vpop.f32.mrb[0].mxu0
        %v1728 = vadd.f32 0.0, %v1727
        %v1729 = vpop.f32.mrb[0].mxu0
        %v1730 = vadd.f32 0.0, %v1729
        %1731 = vmatprep.mubr.bf16.mxu0 0
        %1732 = vmatmul.mubr.bf16.gmra.mrb[0].mxu0 %v1575
        %v1733 = vpop.f32.mrb[0].mxu0
        %v1734 = vadd.f32 0.0, %v1733
        %v1735 = vpop.f32.mrb[0].mxu0
        %v1736 = vadd.f32 0.0, %v1735
        %v1737 = vpop.f32.mrb[0].mxu0
        %v1738 = vadd.f32 0.0, %v1737
        %v1739 = vpop.f32.mrb[0].mxu0
        %v1740 = vadd.f32 0.0, %v1739
        %1741 = vmatprep.mubr.bf16.mxu0 0
        %1742 = vmatmul.mubr.bf16.gmra.mrb[0].mxu0 %v1578
        %v1743 = vpop.f32.mrb[0].mxu0
        %v1744 = vadd.f32 0.0, %v1743
        %v1745 = vpop.f32.mrb[0].mxu0
        %v1746 = vadd.f32 0.0, %v1745
        %v1747 = vpop.f32.mrb[0].mxu0
        %v1748 = vadd.f32 0.0, %v1747
        %v1749 = vpop.f32.mrb[0].mxu0
        %v1750 = vadd.f32 0.0, %v1749
        %1751 = vmatprep.mubr.bf16.mxu0 0
        %1752 = vmatmul.mubr.bf16.gmra.mrb[0].mxu0 %v1581
        %v1753 = vpop.f32.mrb[0].mxu0
        %v1754 = vadd.f32 0.0, %v1753
        %v1755 = vpop.f32.mrb[0].mxu0
        %v1756 = vadd.f32 0.0, %v1755
        %v1757 = vpop.f32.mrb[0].mxu0
        %v1758 = vadd.f32 0.0, %v1757
        %v1759 = vpop.f32.mrb[0].mxu0
        %v1760 = vadd.f32 0.0, %v1759
        %1761 = vmatprep.mubr.bf16.mxu0 0
        %1762 = vmatmul.mubr.bf16.gmra.mrb[0].mxu0 %v1584
        %v1763 = vpop.f32.mrb[0].mxu0
        %v1764 = vadd.f32 0.0, %v1763
        %v1765 = vpop.f32.mrb[0].mxu0
        %v1766 = vadd.f32 0.0, %v1765
        %v1767 = vpop.f32.mrb[0].mxu0
        %v1768 = vadd.f32 0.0, %v1767
        %v1769 = vpop.f32.mrb[0].mxu0
        %v1770 = vadd.f32 0.0, %v1769
        %1771 = vmatprep.mubr.bf16.mxu0 0
        %1772 = vmatmul.mubr.bf16.gmra.mrb[0].mxu0 %v1587
        %v1773 = vpop.f32.mrb[0].mxu0
        %v1774 = vadd.f32 0.0, %v1773
        %v1775 = vpop.f32.mrb[0].mxu0
        %v1776 = vadd.f32 0.0, %v1775
        %v1777 = vpop.f32.mrb[0].mxu0
        %v1778 = vadd.f32 0.0, %v1777
        %v1779 = vpop.f32.mrb[0].mxu0
        %v1780 = vadd.f32 0.0, %v1779
        %1781 = vdwg.mxu0
        %v1784 = vunpack.c.l.b16 %v1526
        %v1785 = vunpack.c.h.b16 %v1526
        %v1786 = vunpack.c.l.b16 %v1527
        %v1787 = vunpack.c.h.b16 %v1527
        %v1788 = vpack.c.b16 %v1786, %v1784
        %v1789 = vpack.c.b16 %v1787, %v1785
        %v1793 = vsel %vm1540, %v1510, 0
        %v1796 = vsel %vm1540, %v1511, 0
        %v1799 = vsel %vm1540, %v1512, 0
        %v1802 = vsel %vm1540, %v1513, 0
        %v1805 = vsel %vm1540, %v1514, 0
        %v1808 = vsel %vm1540, %v1515, 0
        %v1811 = vsel %vm1540, %v1516, 0
        %v1814 = vsel %vm1540, %v1517, 0
        %v1817 = vsel %vm1540, %v1518, 0
        %v1820 = vsel %vm1540, %v1519, 0
        %v1823 = vsel %vm1540, %v1520, 0
        %v1826 = vsel %vm1540, %v1521, 0
        %v1829 = vsel %vm1540, %v1522, 0
        %v1832 = vsel %vm1540, %v1523, 0
        %v1835 = vsel %vm1540, %v1524, 0
        %v1838 = vsel %vm1540, %v1525, 0
        %1840 = vmatprep.subr.bf16.mxu0 %v1789
        %1841 = vmatpush1.bf16.msra.mxu0 %v1788
        %1842 = vmatprep.subr.bf16.mxu0 0
        %1843 = vmatpush1.bf16.msra.mxu0 0
        %1844 = vmatprep.subr.bf16.mxu0 0
        %1845 = vmatpush1.bf16.msra.mxu0 0
        %1846 = vmatprep.subr.bf16.mxu0 0
        %1847 = vmatpush1.bf16.msra.mxu0 0
        %1848 = vmatprep.subr.bf16.mxu0 0
        %1849 = vmatpush1.bf16.msra.mxu0 0
        %1850 = vmatprep.subr.bf16.mxu0 0
        %1851 = vmatpush1.bf16.msra.mxu0 0
        %1852 = vmatprep.subr.bf16.mxu0 0
        %1853 = vmatpush1.bf16.msra.mxu0 0
        %1854 = vmatprep.subr.bf16.mxu0 0
        %1855 = vmatpush1.bf16.msra.mxu0 0
        %1856 = vmatprep.subr.bf16.mxu0 0
        %1857 = vmatpush1.bf16.msra.mxu0 0
        %1858 = vmatprep.subr.bf16.mxu0 0
        %1859 = vmatpush1.bf16.msra.mxu0 0
        %1860 = vmatprep.subr.bf16.mxu0 0
        %1861 = vmatpush1.bf16.msra.mxu0 0
        %1862 = vmatprep.subr.bf16.mxu0 0
        %1863 = vmatpush1.bf16.msra.mxu0 0
        %1864 = vmatprep.subr.bf16.mxu0 0
        %1865 = vmatpush1.bf16.msra.mxu0 0
        %1866 = vmatprep.subr.bf16.mxu0 0
        %1867 = vmatpush1.bf16.msra.mxu0 0
        %1868 = vmatprep.subr.bf16.mxu0 0
        %1869 = vmatpush1.bf16.msra.mxu0 0
        %1870 = vmatprep.subr.bf16.mxu0 0
        %1871 = vmatpush1.bf16.msra.mxu0 0
        %1872 = vmatprep.mubr.bf16.mxu0 0
        %1873 = vmatmul.mubr.bf16.gmra.mrb[0].mxu0 %v1793
        %v1874 = vpop.f32.mrb[0].mxu0
        %v1875 = vadd.f32 %v1624, %v1874
        %v1876 = vpop.f32.mrb[0].mxu0
        %v1877 = vadd.f32 %v1626, %v1876
        %v1878 = vpop.f32.mrb[0].mxu0
        %v1879 = vadd.f32 %v1628, %v1878
        %v1880 = vpop.f32.mrb[0].mxu0
        %v1881 = vadd.f32 %v1630, %v1880
        %1882 = vmatprep.mubr.bf16.mxu0 0
        %1883 = vmatmul.mubr.bf16.gmra.mrb[0].mxu0 %v1796
        %v1884 = vpop.f32.mrb[0].mxu0
        %v1885 = vadd.f32 %v1634, %v1884
        %v1886 = vpop.f32.mrb[0].mxu0
        %v1887 = vadd.f32 %v1636, %v1886
        %v1888 = vpop.f32.mrb[0].mxu0
        %v1889 = vadd.f32 %v1638, %v1888
        %v1890 = vpop.f32.mrb[0].mxu0
        %v1891 = vadd.f32 %v1640, %v1890
        %1892 = vmatprep.mubr.bf16.mxu0 0
        %1893 = vmatmul.mubr.bf16.gmra.mrb[0].mxu0 %v1799
        %v1894 = vpop.f32.mrb[0].mxu0
        %v1895 = vadd.f32 %v1644, %v1894
        %v1896 = vpop.f32.mrb[0].mxu0
        %v1897 = vadd.f32 %v1646, %v1896
        %v1898 = vpop.f32.mrb[0].mxu0
        %v1899 = vadd.f32 %v1648, %v1898
        %v1900 = vpop.f32.mrb[0].mxu0
        %v1901 = vadd.f32 %v1650, %v1900
        %1902 = vmatprep.mubr.bf16.mxu0 0
        %1903 = vmatmul.mubr.bf16.gmra.mrb[0].mxu0 %v1802
        %v1904 = vpop.f32.mrb[0].mxu0
        %v1905 = vadd.f32 %v1654, %v1904
        %v1906 = vpop.f32.mrb[0].mxu0
        %v1907 = vadd.f32 %v1656, %v1906
        %v1908 = vpop.f32.mrb[0].mxu0
        %v1909 = vadd.f32 %v1658, %v1908
        %v1910 = vpop.f32.mrb[0].mxu0
        %v1911 = vadd.f32 %v1660, %v1910
        %1912 = vmatprep.mubr.bf16.mxu0 0
        %1913 = vmatmul.mubr.bf16.gmra.mrb[0].mxu0 %v1805
        %v1914 = vpop.f32.mrb[0].mxu0
        %v1915 = vadd.f32 %v1664, %v1914
        %v1916 = vpop.f32.mrb[0].mxu0
        %v1917 = vadd.f32 %v1666, %v1916
        %v1918 = vpop.f32.mrb[0].mxu0
        %v1919 = vadd.f32 %v1668, %v1918
        %v1920 = vpop.f32.mrb[0].mxu0
        %v1921 = vadd.f32 %v1670, %v1920
        %1922 = vmatprep.mubr.bf16.mxu0 0
        %1923 = vmatmul.mubr.bf16.gmra.mrb[0].mxu0 %v1808
        %v1924 = vpop.f32.mrb[0].mxu0
        %v1925 = vadd.f32 %v1674, %v1924
        %v1926 = vpop.f32.mrb[0].mxu0
        %v1927 = vadd.f32 %v1676, %v1926
        %v1928 = vpop.f32.mrb[0].mxu0
        %v1929 = vadd.f32 %v1678, %v1928
        %v1930 = vpop.f32.mrb[0].mxu0
        %v1931 = vadd.f32 %v1680, %v1930
        %1932 = vmatprep.mubr.bf16.mxu0 0
        %1933 = vmatmul.mubr.bf16.gmra.mrb[0].mxu0 %v1811
        %v1934 = vpop.f32.mrb[0].mxu0
        %v1935 = vadd.f32 %v1684, %v1934
        %v1936 = vpop.f32.mrb[0].mxu0
        %v1937 = vadd.f32 %v1686, %v1936
        %v1938 = vpop.f32.mrb[0].mxu0
        %v1939 = vadd.f32 %v1688, %v1938
        %v1940 = vpop.f32.mrb[0].mxu0
        %v1941 = vadd.f32 %v1690, %v1940
        %1942 = vmatprep.mubr.bf16.mxu0 0
        %1943 = vmatmul.mubr.bf16.gmra.mrb[0].mxu0 %v1814
        %v1944 = vpop.f32.mrb[0].mxu0
        %v1945 = vadd.f32 %v1694, %v1944
        %v1946 = vpop.f32.mrb[0].mxu0
        %v1947 = vadd.f32 %v1696, %v1946
        %v1948 = vpop.f32.mrb[0].mxu0
        %v1949 = vadd.f32 %v1698, %v1948
        %v1950 = vpop.f32.mrb[0].mxu0
        %v1951 = vadd.f32 %v1700, %v1950
        %1952 = vmatprep.mubr.bf16.mxu0 0
        %1953 = vmatmul.mubr.bf16.gmra.mrb[0].mxu0 %v1817
        %v1954 = vpop.f32.mrb[0].mxu0
        %v1955 = vadd.f32 %v1704, %v1954
        %v1956 = vpop.f32.mrb[0].mxu0
        %v1957 = vadd.f32 %v1706, %v1956
        %v1958 = vpop.f32.mrb[0].mxu0
        %v1959 = vadd.f32 %v1708, %v1958
        %v1960 = vpop.f32.mrb[0].mxu0
        %v1961 = vadd.f32 %v1710, %v1960
        %1962 = vmatprep.mubr.bf16.mxu0 0
        %1963 = vmatmul.mubr.bf16.gmra.mrb[0].mxu0 %v1820
        %v1964 = vpop.f32.mrb[0].mxu0
        %v1965 = vadd.f32 %v1714, %v1964
        %v1966 = vpop.f32.mrb[0].mxu0
        %v1967 = vadd.f32 %v1716, %v1966
        %v1968 = vpop.f32.mrb[0].mxu0
        %v1969 = vadd.f32 %v1718, %v1968
        %v1970 = vpop.f32.mrb[0].mxu0
        %v1971 = vadd.f32 %v1720, %v1970
        %1972 = vmatprep.mubr.bf16.mxu0 0
        %1973 = vmatmul.mubr.bf16.gmra.mrb[0].mxu0 %v1823
        %v1974 = vpop.f32.mrb[0].mxu0
        %v1975 = vadd.f32 %v1724, %v1974
        %v1976 = vpop.f32.mrb[0].mxu0
        %v1977 = vadd.f32 %v1726, %v1976
        %v1978 = vpop.f32.mrb[0].mxu0
        %v1979 = vadd.f32 %v1728, %v1978
        %v1980 = vpop.f32.mrb[0].mxu0
        %v1981 = vadd.f32 %v1730, %v1980
        %1982 = vmatprep.mubr.bf16.mxu0 0
        %1983 = vmatmul.mubr.bf16.gmra.mrb[0].mxu0 %v1826
        %v1984 = vpop.f32.mrb[0].mxu0
        %v1985 = vadd.f32 %v1734, %v1984
        %v1986 = vpop.f32.mrb[0].mxu0
        %v1987 = vadd.f32 %v1736, %v1986
        %v1988 = vpop.f32.mrb[0].mxu0
        %v1989 = vadd.f32 %v1738, %v1988
        %v1990 = vpop.f32.mrb[0].mxu0
        %v1991 = vadd.f32 %v1740, %v1990
        %1992 = vmatprep.mubr.bf16.mxu0 0
        %1993 = vmatmul.mubr.bf16.gmra.mrb[0].mxu0 %v1829
        %v1994 = vpop.f32.mrb[0].mxu0
        %v1995 = vadd.f32 %v1744, %v1994
        %v1996 = vpop.f32.mrb[0].mxu0
        %v1997 = vadd.f32 %v1746, %v1996
        %v1998 = vpop.f32.mrb[0].mxu0
        %v1999 = vadd.f32 %v1748, %v1998
        %v2000 = vpop.f32.mrb[0].mxu0
        %v2001 = vadd.f32 %v1750, %v2000
        %2002 = vmatprep.mubr.bf16.mxu0 0
        %2003 = vmatmul.mubr.bf16.gmra.mrb[0].mxu0 %v1832
        %v2004 = vpop.f32.mrb[0].mxu0
        %v2005 = vadd.f32 %v1754, %v2004
        %v2006 = vpop.f32.mrb[0].mxu0
        %v2007 = vadd.f32 %v1756, %v2006
        %v2008 = vpop.f32.mrb[0].mxu0
        %v2009 = vadd.f32 %v1758, %v2008
        %v2010 = vpop.f32.mrb[0].mxu0
        %v2011 = vadd.f32 %v1760, %v2010
        %2012 = vmatprep.mubr.bf16.mxu0 0
        %2013 = vmatmul.mubr.bf16.gmra.mrb[0].mxu0 %v1835
        %v2014 = vpop.f32.mrb[0].mxu0
        %v2015 = vadd.f32 %v1764, %v2014
        %v2016 = vpop.f32.mrb[0].mxu0
        %v2017 = vadd.f32 %v1766, %v2016
        %v2018 = vpop.f32.mrb[0].mxu0
        %v2019 = vadd.f32 %v1768, %v2018
        %v2020 = vpop.f32.mrb[0].mxu0
        %v2021 = vadd.f32 %v1770, %v2020
        %2022 = vmatprep.mubr.bf16.mxu0 0
        %2023 = vmatmul.mubr.bf16.gmra.mrb[0].mxu0 %v1838
        %v2024 = vpop.f32.mrb[0].mxu0
        %v2025 = vadd.f32 %v1774, %v2024
        %v2026 = vpop.f32.mrb[0].mxu0
        %v2027 = vadd.f32 %v1776, %v2026
        %v2028 = vpop.f32.mrb[0].mxu0
        %v2029 = vadd.f32 %v1778, %v2028
        %v2030 = vpop.f32.mrb[0].mxu0
        %v2031 = vadd.f32 %v1780, %v2030
        %2032 = vdwg.mxu0
        %v2033 = vld [vmem:[%s13] sm:$0x3]
        %v2035 = vlaneseq
        %v2036 = vshrl.u32 %v2035, 7
        %v2037 = vsub.s32 0, %v2036
        %v2038 = vrot.slane %v2033, %v2037
        %v2039 = vlaneseq
        %v2040 = vshrl.u32 %v2039, 7
        %v2041 = vsub.s32 1, %v2040
        %v2042 = vrot.slane %v2033, %v2041
        %v2045 = vadd.f32 %v1875, %v2038
        %v2046 = vadd.f32 %v1877, %v2042
        %v2047 = vadd.f32 %v1879, %v2038
        %v2048 = vadd.f32 %v1881, %v2042
        %v2049 = vadd.f32 %v1885, %v2038
        %v2050 = vadd.f32 %v1887, %v2042
        %v2051 = vadd.f32 %v1889, %v2038
        %v2052 = vadd.f32 %v1891, %v2042
        %v2053 = vadd.f32 %v1895, %v2038
        %v2054 = vadd.f32 %v1897, %v2042
        %v2055 = vadd.f32 %v1899, %v2038
        %v2056 = vadd.f32 %v1901, %v2042
        %v2057 = vadd.f32 %v1905, %v2038
        %v2058 = vadd.f32 %v1907, %v2042
        %v2059 = vadd.f32 %v1909, %v2038
        %v2060 = vadd.f32 %v1911, %v2042
        %v2061 = vadd.f32 %v1915, %v2038
        %v2062 = vadd.f32 %v1917, %v2042
        %v2063 = vadd.f32 %v1919, %v2038
        %v2064 = vadd.f32 %v1921, %v2042
        %v2065 = vadd.f32 %v1925, %v2038
        %v2066 = vadd.f32 %v1927, %v2042
        %v2067 = vadd.f32 %v1929, %v2038
        %v2068 = vadd.f32 %v1931, %v2042
        %v2069 = vadd.f32 %v1935, %v2038
        %v2070 = vadd.f32 %v1937, %v2042
        %v2071 = vadd.f32 %v1939, %v2038
        %v2072 = vadd.f32 %v1941, %v2042
        %v2073 = vadd.f32 %v1945, %v2038
        %v2074 = vadd.f32 %v1947, %v2042
        %v2075 = vadd.f32 %v1949, %v2038
        %v2076 = vadd.f32 %v1951, %v2042
        %v2077 = vadd.f32 %v1955, %v2038
        %v2078 = vadd.f32 %v1957, %v2042
        %v2079 = vadd.f32 %v1959, %v2038
        %v2080 = vadd.f32 %v1961, %v2042
        %v2081 = vadd.f32 %v1965, %v2038
        %v2082 = vadd.f32 %v1967, %v2042
        %v2083 = vadd.f32 %v1969, %v2038
        %v2084 = vadd.f32 %v1971, %v2042
        %v2085 = vadd.f32 %v1975, %v2038
        %v2086 = vadd.f32 %v1977, %v2042
        %v2087 = vadd.f32 %v1979, %v2038
        %v2088 = vadd.f32 %v1981, %v2042
        %v2089 = vadd.f32 %v1985, %v2038
        %v2090 = vadd.f32 %v1987, %v2042
        %v2091 = vadd.f32 %v1989, %v2038
        %v2092 = vadd.f32 %v1991, %v2042
        %v2093 = vadd.f32 %v1995, %v2038
        %v2094 = vadd.f32 %v1997, %v2042
        %v2095 = vadd.f32 %v1999, %v2038
        %v2096 = vadd.f32 %v2001, %v2042
        %v2097 = vadd.f32 %v2005, %v2038
        %v2098 = vadd.f32 %v2007, %v2042
        %v2099 = vadd.f32 %v2009, %v2038
        %v2100 = vadd.f32 %v2011, %v2042
        %v2101 = vadd.f32 %v2015, %v2038
        %v2102 = vadd.f32 %v2017, %v2042
        %v2103 = vadd.f32 %v2019, %v2038
        %v2104 = vadd.f32 %v2021, %v2042
        %v2105 = vadd.f32 %v2025, %v2038
        %v2106 = vadd.f32 %v2027, %v2042
        %v2107 = vadd.f32 %v2029, %v2038
        %v2108 = vadd.f32 %v2031, %v2042
        %v2109 = vmax.f32 %v2045, 0.0
        %v2110 = vmax.f32 %v2046, 0.0
        %v2111 = vmax.f32 %v2047, 0.0
        %v2112 = vmax.f32 %v2048, 0.0
        %v2113 = vmax.f32 %v2049, 0.0
        %v2114 = vmax.f32 %v2050, 0.0
        %v2115 = vmax.f32 %v2051, 0.0
        %v2116 = vmax.f32 %v2052, 0.0
        %v2117 = vmax.f32 %v2053, 0.0
        %v2118 = vmax.f32 %v2054, 0.0
        %v2119 = vmax.f32 %v2055, 0.0
        %v2120 = vmax.f32 %v2056, 0.0
        %v2121 = vmax.f32 %v2057, 0.0
        %v2122 = vmax.f32 %v2058, 0.0
        %v2123 = vmax.f32 %v2059, 0.0
        %v2124 = vmax.f32 %v2060, 0.0
        %v2125 = vmax.f32 %v2061, 0.0
        %v2126 = vmax.f32 %v2062, 0.0
        %v2127 = vmax.f32 %v2063, 0.0
        %v2128 = vmax.f32 %v2064, 0.0
        %v2129 = vmax.f32 %v2065, 0.0
        %v2130 = vmax.f32 %v2066, 0.0
        %v2131 = vmax.f32 %v2067, 0.0
        %v2132 = vmax.f32 %v2068, 0.0
        %v2133 = vmax.f32 %v2069, 0.0
        %v2134 = vmax.f32 %v2070, 0.0
        %v2135 = vmax.f32 %v2071, 0.0
        %v2136 = vmax.f32 %v2072, 0.0
        %v2137 = vmax.f32 %v2073, 0.0
        %v2138 = vmax.f32 %v2074, 0.0
        %v2139 = vmax.f32 %v2075, 0.0
        %v2140 = vmax.f32 %v2076, 0.0
        %v2141 = vmax.f32 %v2077, 0.0
        %v2142 = vmax.f32 %v2078, 0.0
        %v2143 = vmax.f32 %v2079, 0.0
        %v2144 = vmax.f32 %v2080, 0.0
        %v2145 = vmax.f32 %v2081, 0.0
        %v2146 = vmax.f32 %v2082, 0.0
        %v2147 = vmax.f32 %v2083, 0.0
        %v2148 = vmax.f32 %v2084, 0.0
        %v2149 = vmax.f32 %v2085, 0.0
        %v2150 = vmax.f32 %v2086, 0.0
        %v2151 = vmax.f32 %v2087, 0.0
        %v2152 = vmax.f32 %v2088, 0.0
        %v2153 = vmax.f32 %v2089, 0.0
        %v2154 = vmax.f32 %v2090, 0.0
        %v2155 = vmax.f32 %v2091, 0.0
        %v2156 = vmax.f32 %v2092, 0.0
        %v2157 = vmax.f32 %v2093, 0.0
        %v2158 = vmax.f32 %v2094, 0.0
        %v2159 = vmax.f32 %v2095, 0.0
        %v2160 = vmax.f32 %v2096, 0.0
        %v2161 = vmax.f32 %v2097, 0.0
        %v2162 = vmax.f32 %v2098, 0.0
        %v2163 = vmax.f32 %v2099, 0.0
        %v2164 = vmax.f32 %v2100, 0.0
        %v2165 = vmax.f32 %v2101, 0.0
        %v2166 = vmax.f32 %v2102, 0.0
        %v2167 = vmax.f32 %v2103, 0.0
        %v2168 = vmax.f32 %v2104, 0.0
        %v2169 = vmax.f32 %v2105, 0.0
        %v2170 = vmax.f32 %v2106, 0.0
        %v2171 = vmax.f32 %v2107, 0.0
        %v2172 = vmax.f32 %v2108, 0.0
        %v2173 = vpack.c.bf16 %v2111, %v2109
        %v2174 = vpack.c.bf16 %v2112, %v2110
        %v2175 = vpack.c.bf16 %v2115, %v2113
        %v2176 = vpack.c.bf16 %v2116, %v2114
        %v2177 = vpack.c.bf16 %v2119, %v2117
        %v2178 = vpack.c.bf16 %v2120, %v2118
        %v2179 = vpack.c.bf16 %v2123, %v2121
        %v2180 = vpack.c.bf16 %v2124, %v2122
        %v2181 = vpack.c.bf16 %v2127, %v2125
        %v2182 = vpack.c.bf16 %v2128, %v2126
        %v2183 = vpack.c.bf16 %v2131, %v2129
        %v2184 = vpack.c.bf16 %v2132, %v2130
        %v2185 = vpack.c.bf16 %v2135, %v2133
        %v2186 = vpack.c.bf16 %v2136, %v2134
        %v2187 = vpack.c.bf16 %v2139, %v2137
        %v2188 = vpack.c.bf16 %v2140, %v2138
        %v2189 = vpack.c.bf16 %v2143, %v2141
        %v2190 = vpack.c.bf16 %v2144, %v2142
        %v2191 = vpack.c.bf16 %v2147, %v2145
        %v2192 = vpack.c.bf16 %v2148, %v2146
        %v2193 = vpack.c.bf16 %v2151, %v2149
        %v2194 = vpack.c.bf16 %v2152, %v2150
        %v2195 = vpack.c.bf16 %v2155, %v2153
        %v2196 = vpack.c.bf16 %v2156, %v2154
        %v2197 = vpack.c.bf16 %v2159, %v2157
        %v2198 = vpack.c.bf16 %v2160, %v2158
        %v2199 = vpack.c.bf16 %v2163, %v2161
        %v2200 = vpack.c.bf16 %v2164, %v2162
        %v2201 = vpack.c.bf16 %v2167, %v2165
        %v2202 = vpack.c.bf16 %v2168, %v2166
        %v2203 = vpack.c.bf16 %v2171, %v2169
        %v2204 = vpack.c.bf16 %v2172, %v2170
        %2205 = vmatprep.subr.bf16.mxu0 %v2174
        %2206 = vmatpush1.bf16.msra.mxu0 %v2173
        %2207 = vmatprep.subr.bf16.mxu0 %v2176
        %2208 = vmatpush1.bf16.msra.mxu0 %v2175
        %2209 = vmatprep.subr.bf16.mxu0 %v2178
        %2210 = vmatpush1.bf16.msra.mxu0 %v2177
        %2211 = vmatprep.subr.bf16.mxu0 %v2180
        %2212 = vmatpush1.bf16.msra.mxu0 %v2179
        %2213 = vmatprep.subr.bf16.mxu0 %v2182
        %2214 = vmatpush1.bf16.msra.mxu0 %v2181
        %2215 = vmatprep.subr.bf16.mxu0 %v2184
        %2216 = vmatpush1.bf16.msra.mxu0 %v2183
        %2217 = vmatprep.subr.bf16.mxu0 %v2186
        %2218 = vmatpush1.bf16.msra.mxu0 %v2185
        %2219 = vmatprep.subr.bf16.mxu0 %v2188
        %2220 = vmatpush1.bf16.msra.mxu0 %v2187
        %2221 = vmatprep.subr.bf16.mxu0 %v2190
        %2222 = vmatpush1.bf16.msra.mxu0 %v2189
        %2223 = vmatprep.subr.bf16.mxu0 %v2192
        %2224 = vmatpush1.bf16.msra.mxu0 %v2191
        %2225 = vmatprep.subr.bf16.mxu0 %v2194
        %2226 = vmatpush1.bf16.msra.mxu0 %v2193
        %2227 = vmatprep.subr.bf16.mxu0 %v2196
        %2228 = vmatpush1.bf16.msra.mxu0 %v2195
        %2229 = vmatprep.subr.bf16.mxu0 %v2198
        %2230 = vmatpush1.bf16.msra.mxu0 %v2197
        %2231 = vmatprep.subr.bf16.mxu0 %v2200
        %2232 = vmatpush1.bf16.msra.mxu0 %v2199
        %2233 = vmatprep.subr.bf16.mxu0 %v2202
        %2234 = vmatpush1.bf16.msra.mxu0 %v2201
        %2235 = vmatprep.subr.bf16.mxu0 %v2204
        %2236 = vmatpush1.bf16.msra.mxu0 %v2203
        %2237 = vmatprep.mubr.bf16.mxu0 %v998
        %2238 = vmatmul.mubr.bf16.gmra.mrb[0].mxu0 %v997
        %v2239 = vpop.f32.mrb[0].mxu0
        %v2240 = vadd.f32 0.0, %v2239
        %v2241 = vpop.f32.mrb[0].mxu0
        %v2242 = vadd.f32 0.0, %v2241
        %v2243 = vpop.f32.mrb[0].mxu0
        %v2244 = vadd.f32 0.0, %v2243
        %v2245 = vpop.f32.mrb[0].mxu0
        %v2246 = vadd.f32 0.0, %v2245
        %2247 = vmatprep.mubr.bf16.mxu0 %v1000
        %2248 = vmatmul.mubr.bf16.gmra.mrb[0].mxu0 %v999
        %v2249 = vpop.f32.mrb[0].mxu0
        %v2250 = vadd.f32 0.0, %v2249
        %v2251 = vpop.f32.mrb[0].mxu0
        %v2252 = vadd.f32 0.0, %v2251
        %v2253 = vpop.f32.mrb[0].mxu0
        %v2254 = vadd.f32 0.0, %v2253
        %v2255 = vpop.f32.mrb[0].mxu0
        %v2256 = vadd.f32 0.0, %v2255
        %2257 = vmatprep.mubr.bf16.mxu0 %v1002
        %2258 = vmatmul.mubr.bf16.gmra.mrb[0].mxu0 %v1001
        %v2259 = vpop.f32.mrb[0].mxu0
        %v2260 = vadd.f32 0.0, %v2259
        %v2261 = vpop.f32.mrb[0].mxu0
        %v2262 = vadd.f32 0.0, %v2261
        %v2263 = vpop.f32.mrb[0].mxu0
        %v2264 = vadd.f32 0.0, %v2263
        %v2265 = vpop.f32.mrb[0].mxu0
        %v2266 = vadd.f32 0.0, %v2265
        %2267 = vmatprep.mubr.bf16.mxu0 %v1004
        %2268 = vmatmul.mubr.bf16.gmra.mrb[0].mxu0 %v1003
        %v2269 = vpop.f32.mrb[0].mxu0
        %v2270 = vadd.f32 0.0, %v2269
        %v2271 = vpop.f32.mrb[0].mxu0
        %v2272 = vadd.f32 0.0, %v2271
        %v2273 = vpop.f32.mrb[0].mxu0
        %v2274 = vadd.f32 0.0, %v2273
        %v2275 = vpop.f32.mrb[0].mxu0
        %v2276 = vadd.f32 0.0, %v2275
        %2277 = vmatprep.mubr.bf16.mxu0 %v1006
        %2278 = vmatmul.mubr.bf16.gmra.mrb[0].mxu0 %v1005
        %v2279 = vpop.f32.mrb[0].mxu0
        %v2280 = vadd.f32 0.0, %v2279
        %v2281 = vpop.f32.mrb[0].mxu0
        %v2282 = vadd.f32 0.0, %v2281
        %v2283 = vpop.f32.mrb[0].mxu0
        %v2284 = vadd.f32 0.0, %v2283
        %v2285 = vpop.f32.mrb[0].mxu0
        %v2286 = vadd.f32 0.0, %v2285
        %2287 = vmatprep.mubr.bf16.mxu0 %v1008
        %2288 = vmatmul.mubr.bf16.gmra.mrb[0].mxu0 %v1007
        %v2289 = vpop.f32.mrb[0].mxu0
        %v2290 = vadd.f32 0.0, %v2289
        %v2291 = vpop.f32.mrb[0].mxu0
        %v2292 = vadd.f32 0.0, %v2291
        %v2293 = vpop.f32.mrb[0].mxu0
        %v2294 = vadd.f32 0.0, %v2293
        %v2295 = vpop.f32.mrb[0].mxu0
        %v2296 = vadd.f32 0.0, %v2295
        %2297 = vmatprep.mubr.bf16.mxu0 %v1010
        %2298 = vmatmul.mubr.bf16.gmra.mrb[0].mxu0 %v1009
        %v2299 = vpop.f32.mrb[0].mxu0
        %v2300 = vadd.f32 0.0, %v2299
        %v2301 = vpop.f32.mrb[0].mxu0
        %v2302 = vadd.f32 0.0, %v2301
        %v2303 = vpop.f32.mrb[0].mxu0
        %v2304 = vadd.f32 0.0, %v2303
        %v2305 = vpop.f32.mrb[0].mxu0
        %v2306 = vadd.f32 0.0, %v2305
        %2307 = vmatprep.mubr.bf16.mxu0 %v1012
        %2308 = vmatmul.mubr.bf16.gmra.mrb[0].mxu0 %v1011
        %v2309 = vpop.f32.mrb[0].mxu0
        %v2310 = vadd.f32 0.0, %v2309
        %v2311 = vpop.f32.mrb[0].mxu0
        %v2312 = vadd.f32 0.0, %v2311
        %v2313 = vpop.f32.mrb[0].mxu0
        %v2314 = vadd.f32 0.0, %v2313
        %v2315 = vpop.f32.mrb[0].mxu0
        %v2316 = vadd.f32 0.0, %v2315
        %2317 = vmatprep.mubr.bf16.mxu0 %v1014
        %2318 = vmatmul.mubr.bf16.gmra.mrb[0].mxu0 %v1013
        %v2319 = vpop.f32.mrb[0].mxu0
        %v2320 = vadd.f32 0.0, %v2319
        %v2321 = vpop.f32.mrb[0].mxu0
        %v2322 = vadd.f32 0.0, %v2321
        %v2323 = vpop.f32.mrb[0].mxu0
        %v2324 = vadd.f32 0.0, %v2323
        %v2325 = vpop.f32.mrb[0].mxu0
        %v2326 = vadd.f32 0.0, %v2325
        %2327 = vmatprep.mubr.bf16.mxu0 %v1016
        %2328 = vmatmul.mubr.bf16.gmra.mrb[0].mxu0 %v1015
        %v2329 = vpop.f32.mrb[0].mxu0
        %v2330 = vadd.f32 0.0, %v2329
        %v2331 = vpop.f32.mrb[0].mxu0
        %v2332 = vadd.f32 0.0, %v2331
        %v2333 = vpop.f32.mrb[0].mxu0
        %v2334 = vadd.f32 0.0, %v2333
        %v2335 = vpop.f32.mrb[0].mxu0
        %v2336 = vadd.f32 0.0, %v2335
        %2337 = vmatprep.mubr.bf16.mxu0 %v1018
        %2338 = vmatmul.mubr.bf16.gmra.mrb[0].mxu0 %v1017
        %v2339 = vpop.f32.mrb[0].mxu0
        %v2340 = vadd.f32 0.0, %v2339
        %v2341 = vpop.f32.mrb[0].mxu0
        %v2342 = vadd.f32 0.0, %v2341
        %v2343 = vpop.f32.mrb[0].mxu0
        %v2344 = vadd.f32 0.0, %v2343
        %v2345 = vpop.f32.mrb[0].mxu0
        %v2346 = vadd.f32 0.0, %v2345
        %2347 = vmatprep.mubr.bf16.mxu0 %v1020
        %2348 = vmatmul.mubr.bf16.gmra.mrb[0].mxu0 %v1019
        %v2349 = vpop.f32.mrb[0].mxu0
        %v2350 = vadd.f32 0.0, %v2349
        %v2351 = vpop.f32.mrb[0].mxu0
        %v2352 = vadd.f32 0.0, %v2351
        %v2353 = vpop.f32.mrb[0].mxu0
        %v2354 = vadd.f32 0.0, %v2353
        %v2355 = vpop.f32.mrb[0].mxu0
        %v2356 = vadd.f32 0.0, %v2355
        %2357 = vmatprep.mubr.bf16.mxu0 %v1022
        %2358 = vmatmul.mubr.bf16.gmra.mrb[0].mxu0 %v1021
        %v2359 = vpop.f32.mrb[0].mxu0
        %v2360 = vadd.f32 0.0, %v2359
        %v2361 = vpop.f32.mrb[0].mxu0
        %v2362 = vadd.f32 0.0, %v2361
        %v2363 = vpop.f32.mrb[0].mxu0
        %v2364 = vadd.f32 0.0, %v2363
        %v2365 = vpop.f32.mrb[0].mxu0
        %v2366 = vadd.f32 0.0, %v2365
        %2367 = vmatprep.mubr.bf16.mxu0 %v1024
        %2368 = vmatmul.mubr.bf16.gmra.mrb[0].mxu0 %v1023
        %v2369 = vpop.f32.mrb[0].mxu0
        %v2370 = vadd.f32 0.0, %v2369
        %v2371 = vpop.f32.mrb[0].mxu0
        %v2372 = vadd.f32 0.0, %v2371
        %v2373 = vpop.f32.mrb[0].mxu0
        %v2374 = vadd.f32 0.0, %v2373
        %v2375 = vpop.f32.mrb[0].mxu0
        %v2376 = vadd.f32 0.0, %v2375
        %2377 = vmatprep.mubr.bf16.mxu0 %v1026
        %2378 = vmatmul.mubr.bf16.gmra.mrb[0].mxu0 %v1025
        %v2379 = vpop.f32.mrb[0].mxu0
        %v2380 = vadd.f32 0.0, %v2379
        %v2381 = vpop.f32.mrb[0].mxu0
        %v2382 = vadd.f32 0.0, %v2381
        %v2383 = vpop.f32.mrb[0].mxu0
        %v2384 = vadd.f32 0.0, %v2383
        %v2385 = vpop.f32.mrb[0].mxu0
        %v2386 = vadd.f32 0.0, %v2385
        %2387 = vmatprep.mubr.bf16.mxu0 %v1028
        %2388 = vmatmul.mubr.bf16.gmra.mrb[0].mxu0 %v1027
        %v2389 = vpop.f32.mrb[0].mxu0
        %v2390 = vadd.f32 0.0, %v2389
        %v2391 = vpop.f32.mrb[0].mxu0
        %v2392 = vadd.f32 0.0, %v2391
        %v2393 = vpop.f32.mrb[0].mxu0
        %v2394 = vadd.f32 0.0, %v2393
        %v2395 = vpop.f32.mrb[0].mxu0
        %v2396 = vadd.f32 0.0, %v2395
        %2397 = vdwg.mxu0
        %v2398 = vmul.f32 %v2240, %v1321
        %v2399 = vmul.f32 %v2242, %v1321
        %v2400 = vmul.f32 %v2244, %v1326
        %v2401 = vmul.f32 %v2246, %v1326
        %v2402 = vmul.f32 %v2250, %v1331
        %v2403 = vmul.f32 %v2252, %v1331
        %v2404 = vmul.f32 %v2254, %v1336
        %v2405 = vmul.f32 %v2256, %v1336
        %v2406 = vmul.f32 %v2260, %v1341
        %v2407 = vmul.f32 %v2262, %v1341
        %v2408 = vmul.f32 %v2264, %v1346
        %v2409 = vmul.f32 %v2266, %v1346
        %v2410 = vmul.f32 %v2270, %v1351
        %v2411 = vmul.f32 %v2272, %v1351
        %v2412 = vmul.f32 %v2274, %v1356
        %v2413 = vmul.f32 %v2276, %v1356
        %v2414 = vmul.f32 %v2280, %v1361
        %v2415 = vmul.f32 %v2282, %v1361
        %v2416 = vmul.f32 %v2284, %v1366
        %v2417 = vmul.f32 %v2286, %v1366
        %v2418 = vmul.f32 %v2290, %v1371
        %v2419 = vmul.f32 %v2292, %v1371
        %v2420 = vmul.f32 %v2294, %v1376
        %v2421 = vmul.f32 %v2296, %v1376
        %v2422 = vmul.f32 %v2300, %v1381
        %v2423 = vmul.f32 %v2302, %v1381
        %v2424 = vmul.f32 %v2304, %v1386
        %v2425 = vmul.f32 %v2306, %v1386
        %v2426 = vmul.f32 %v2310, %v1391
        %v2427 = vmul.f32 %v2312, %v1391
        %v2428 = vmul.f32 %v2314, %v1396
        %v2429 = vmul.f32 %v2316, %v1396
        %v2430 = vmul.f32 %v2320, %v1401
        %v2431 = vmul.f32 %v2322, %v1401
        %v2432 = vmul.f32 %v2324, %v1406
        %v2433 = vmul.f32 %v2326, %v1406
        %v2434 = vmul.f32 %v2330, %v1411
        %v2435 = vmul.f32 %v2332, %v1411
        %v2436 = vmul.f32 %v2334, %v1416
        %v2437 = vmul.f32 %v2336, %v1416
        %v2438 = vmul.f32 %v2340, %v1421
        %v2439 = vmul.f32 %v2342, %v1421
        %v2440 = vmul.f32 %v2344, %v1426
        %v2441 = vmul.f32 %v2346, %v1426
        %v2442 = vmul.f32 %v2350, %v1431
        %v2443 = vmul.f32 %v2352, %v1431
        %v2444 = vmul.f32 %v2354, %v1436
        %v2445 = vmul.f32 %v2356, %v1436
        %v2446 = vmul.f32 %v2360, %v1441
        %v2447 = vmul.f32 %v2362, %v1441
        %v2448 = vmul.f32 %v2364, %v1446
        %v2449 = vmul.f32 %v2366, %v1446
        %v2450 = vmul.f32 %v2370, %v1451
        %v2451 = vmul.f32 %v2372, %v1451
        %v2452 = vmul.f32 %v2374, %v1456
        %v2453 = vmul.f32 %v2376, %v1456
        %v2454 = vmul.f32 %v2380, %v1461
        %v2455 = vmul.f32 %v2382, %v1461
        %v2456 = vmul.f32 %v2384, %v1466
        %v2457 = vmul.f32 %v2386, %v1466
        %v2458 = vmul.f32 %v2390, %v1471
        %v2459 = vmul.f32 %v2392, %v1471
        %v2460 = vmul.f32 %v2394, %v1476
        %v2461 = vmul.f32 %v2396, %v1476
        %v2462 = vpack.c.bf16 %v2400, %v2398
        %v2463 = vpack.c.bf16 %v2401, %v2399
        %v2464 = vpack.c.bf16 %v2404, %v2402
        %v2465 = vpack.c.bf16 %v2405, %v2403
        %v2466 = vpack.c.bf16 %v2408, %v2406
        %v2467 = vpack.c.bf16 %v2409, %v2407
        %v2468 = vpack.c.bf16 %v2412, %v2410
        %v2469 = vpack.c.bf16 %v2413, %v2411
        %v2470 = vpack.c.bf16 %v2416, %v2414
        %v2471 = vpack.c.bf16 %v2417, %v2415
        %v2472 = vpack.c.bf16 %v2420, %v2418
        %v2473 = vpack.c.bf16 %v2421, %v2419
        %v2474 = vpack.c.bf16 %v2424, %v2422
        %v2475 = vpack.c.bf16 %v2425, %v2423
        %v2476 = vpack.c.bf16 %v2428, %v2426
        %v2477 = vpack.c.bf16 %v2429, %v2427
        %v2478 = vpack.c.bf16 %v2432, %v2430
        %v2479 = vpack.c.bf16 %v2433, %v2431
        %v2480 = vpack.c.bf16 %v2436, %v2434
        %v2481 = vpack.c.bf16 %v2437, %v2435
        %v2482 = vpack.c.bf16 %v2440, %v2438
        %v2483 = vpack.c.bf16 %v2441, %v2439
        %v2484 = vpack.c.bf16 %v2444, %v2442
        %v2485 = vpack.c.bf16 %v2445, %v2443
        %v2486 = vpack.c.bf16 %v2448, %v2446
        %v2487 = vpack.c.bf16 %v2449, %v2447
        %v2488 = vpack.c.bf16 %v2452, %v2450
        %v2489 = vpack.c.bf16 %v2453, %v2451
        %v2490 = vpack.c.bf16 %v2456, %v2454
        %v2491 = vpack.c.bf16 %v2457, %v2455
        %v2492 = vpack.c.bf16 %v2460, %v2458
        %v2493 = vpack.c.bf16 %v2461, %v2459
        %v2494 = vld [vmem:[%s7] sm:$0xff]
        %v2495 = vld [vmem:[%s7 + $0x8] sm:$0xff]
        %v2496 = vld [vmem:[%s7 + $0x10] sm:$0xff]
        %v2497 = vld [vmem:[%s7 + $0x18] sm:$0xff]
        %v2498 = vld [vmem:[%s7 + $0x20] sm:$0xff]
        %v2499 = vld [vmem:[%s7 + $0x28] sm:$0xff]
        %v2500 = vld [vmem:[%s7 + $0x30] sm:$0xff]
        %v2501 = vld [vmem:[%s7 + $0x38] sm:$0xff]
        %v2502 = vld [vmem:[%s7 + $0x40] sm:$0xff]
        %v2503 = vld [vmem:[%s7 + $0x48] sm:$0xff]
        %v2504 = vld [vmem:[%s7 + $0x50] sm:$0xff]
        %v2505 = vld [vmem:[%s7 + $0x58] sm:$0xff]
        %v2506 = vld [vmem:[%s7 + $0x60] sm:$0xff]
        %v2507 = vld [vmem:[%s7 + $0x68] sm:$0xff]
        %v2508 = vld [vmem:[%s7 + $0x70] sm:$0xff]
        %v2509 = vld [vmem:[%s7 + $0x78] sm:$0xff]
        %v2510 = vld [vmem:[%s7 + $0x80] sm:$0xff]
        %v2511 = vld [vmem:[%s7 + $0x88] sm:$0xff]
        %v2512 = vld [vmem:[%s7 + $0x90] sm:$0xff]
        %v2513 = vld [vmem:[%s7 + $0x98] sm:$0xff]
        %v2514 = vld [vmem:[%s7 + $0xa0] sm:$0xff]
        %v2515 = vld [vmem:[%s7 + $0xa8] sm:$0xff]
        %v2516 = vld [vmem:[%s7 + $0xb0] sm:$0xff]
        %v2517 = vld [vmem:[%s7 + $0xb8] sm:$0xff]
        %v2518 = vld [vmem:[%s7 + $0xc0] sm:$0xff]
        %v2519 = vld [vmem:[%s7 + $0xc8] sm:$0xff]
        %v2520 = vld [vmem:[%s7 + $0xd0] sm:$0xff]
        %v2521 = vld [vmem:[%s7 + $0xd8] sm:$0xff]
        %v2522 = vld [vmem:[%s7 + $0xe0] sm:$0xff]
        %v2523 = vld [vmem:[%s7 + $0xe8] sm:$0xff]
        %v2524 = vld [vmem:[%s7 + $0xf0] sm:$0xff]
        %v2525 = vld [vmem:[%s7 + $0xf8] sm:$0xff]
        %v2526 = vld [vmem:[#allocation2] sm:$0xff]
        %v2527 = vld [vmem:[#allocation2 + $0x8] sm:$0xff]
        %v2528 = vld [vmem:[#allocation2 + $0x10] sm:$0xff]
        %v2529 = vld [vmem:[#allocation2 + $0x18] sm:$0xff]
        %v2530 = vld [vmem:[#allocation2 + $0x20] sm:$0xff]
        %v2531 = vld [vmem:[#allocation2 + $0x28] sm:$0xff]
        %v2532 = vld [vmem:[#allocation2 + $0x30] sm:$0xff]
        %v2533 = vld [vmem:[#allocation2 + $0x38] sm:$0xff]
        %v2534 = vld [vmem:[#allocation2 + $0x40] sm:$0xff]
        %v2535 = vld [vmem:[#allocation2 + $0x48] sm:$0xff]
        %v2536 = vld [vmem:[#allocation2 + $0x50] sm:$0xff]
        %v2537 = vld [vmem:[#allocation2 + $0x58] sm:$0xff]
        %v2538 = vld [vmem:[#allocation2 + $0x60] sm:$0xff]
        %v2539 = vld [vmem:[#allocation2 + $0x68] sm:$0xff]
        %v2540 = vld [vmem:[#allocation2 + $0x70] sm:$0xff]
        %v2541 = vld [vmem:[#allocation2 + $0x78] sm:$0xff]
        %v2542 = vld [vmem:[#allocation2 + $0x80] sm:$0xff]
        %v2543 = vld [vmem:[#allocation2 + $0x88] sm:$0xff]
        %v2544 = vld [vmem:[#allocation2 + $0x90] sm:$0xff]
        %v2545 = vld [vmem:[#allocation2 + $0x98] sm:$0xff]
        %v2546 = vld [vmem:[#allocation2 + $0xa0] sm:$0xff]
        %v2547 = vld [vmem:[#allocation2 + $0xa8] sm:$0xff]
        %v2548 = vld [vmem:[#allocation2 + $0xb0] sm:$0xff]
        %v2549 = vld [vmem:[#allocation2 + $0xb8] sm:$0xff]
        %v2550 = vld [vmem:[#allocation2 + $0xc0] sm:$0xff]
        %v2551 = vld [vmem:[#allocation2 + $0xc8] sm:$0xff]
        %v2552 = vld [vmem:[#allocation2 + $0xd0] sm:$0xff]
        %v2553 = vld [vmem:[#allocation2 + $0xd8] sm:$0xff]
        %v2554 = vld [vmem:[#allocation2 + $0xe0] sm:$0xff]
        %v2555 = vld [vmem:[#allocation2 + $0xe8] sm:$0xff]
        %v2556 = vld [vmem:[#allocation2 + $0xf0] sm:$0xff]
        %v2557 = vld [vmem:[#allocation2 + $0xf8] sm:$0xff]
        %v2590 = vunpack.c.l.b16 %v2526
        %v2591 = vunpack.c.h.b16 %v2526
        %v2592 = vunpack.c.l.b16 %v2527
        %v2593 = vunpack.c.h.b16 %v2527
        %v2594 = vunpack.c.l.b16 %v2528
        %v2595 = vunpack.c.h.b16 %v2528
        %v2596 = vunpack.c.l.b16 %v2529
        %v2597 = vunpack.c.h.b16 %v2529
        %v2598 = vunpack.c.l.b16 %v2530
        %v2599 = vunpack.c.h.b16 %v2530
        %v2600 = vunpack.c.l.b16 %v2531
        %v2601 = vunpack.c.h.b16 %v2531
        %v2602 = vunpack.c.l.b16 %v2532
        %v2603 = vunpack.c.h.b16 %v2532
        %v2604 = vunpack.c.l.b16 %v2533
        %v2605 = vunpack.c.h.b16 %v2533
        %v2606 = vunpack.c.l.b16 %v2534
        %v2607 = vunpack.c.h.b16 %v2534
        %v2608 = vunpack.c.l.b16 %v2535
        %v2609 = vunpack.c.h.b16 %v2535
        %v2610 = vunpack.c.l.b16 %v2536
        %v2611 = vunpack.c.h.b16 %v2536
        %v2612 = vunpack.c.l.b16 %v2537
        %v2613 = vunpack.c.h.b16 %v2537
        %v2614 = vunpack.c.l.b16 %v2538
        %v2615 = vunpack.c.h.b16 %v2538
        %v2616 = vunpack.c.l.b16 %v2539
        %v2617 = vunpack.c.h.b16 %v2539
        %v2618 = vunpack.c.l.b16 %v2540
        %v2619 = vunpack.c.h.b16 %v2540
        %v2620 = vunpack.c.l.b16 %v2541
        %v2621 = vunpack.c.h.b16 %v2541
        %v2622 = vunpack.c.l.b16 %v2542
        %v2623 = vunpack.c.h.b16 %v2542
        %v2624 = vunpack.c.l.b16 %v2543
        %v2625 = vunpack.c.h.b16 %v2543
        %v2626 = vunpack.c.l.b16 %v2544
        %v2627 = vunpack.c.h.b16 %v2544
        %v2628 = vunpack.c.l.b16 %v2545
        %v2629 = vunpack.c.h.b16 %v2545
        %v2630 = vunpack.c.l.b16 %v2546
        %v2631 = vunpack.c.h.b16 %v2546
        %v2632 = vunpack.c.l.b16 %v2547
        %v2633 = vunpack.c.h.b16 %v2547
        %v2634 = vunpack.c.l.b16 %v2548
        %v2635 = vunpack.c.h.b16 %v2548
        %v2636 = vunpack.c.l.b16 %v2549
        %v2637 = vunpack.c.h.b16 %v2549
        %v2638 = vunpack.c.l.b16 %v2550
        %v2639 = vunpack.c.h.b16 %v2550
        %v2640 = vunpack.c.l.b16 %v2551
        %v2641 = vunpack.c.h.b16 %v2551
        %v2642 = vunpack.c.l.b16 %v2552
        %v2643 = vunpack.c.h.b16 %v2552
        %v2644 = vunpack.c.l.b16 %v2553
        %v2645 = vunpack.c.h.b16 %v2553
        %v2646 = vunpack.c.l.b16 %v2554
        %v2647 = vunpack.c.h.b16 %v2554
        %v2648 = vunpack.c.l.b16 %v2555
        %v2649 = vunpack.c.h.b16 %v2555
        %v2650 = vunpack.c.l.b16 %v2556
        %v2651 = vunpack.c.h.b16 %v2556
        %v2652 = vunpack.c.l.b16 %v2557
        %v2653 = vunpack.c.h.b16 %v2557
        %v2654 = vpack.c.b16 %v2592, %v2590
        %v2655 = vpack.c.b16 %v2593, %v2591
        %v2656 = vpack.c.b16 %v2596, %v2594
        %v2657 = vpack.c.b16 %v2597, %v2595
        %v2658 = vpack.c.b16 %v2600, %v2598
        %v2659 = vpack.c.b16 %v2601, %v2599
        %v2660 = vpack.c.b16 %v2604, %v2602
        %v2661 = vpack.c.b16 %v2605, %v2603
        %v2662 = vpack.c.b16 %v2608, %v2606
        %v2663 = vpack.c.b16 %v2609, %v2607
        %v2664 = vpack.c.b16 %v2612, %v2610
        %v2665 = vpack.c.b16 %v2613, %v2611
        %v2666 = vpack.c.b16 %v2616, %v2614
        %v2667 = vpack.c.b16 %v2617, %v2615
        %v2668 = vpack.c.b16 %v2620, %v2618
        %v2669 = vpack.c.b16 %v2621, %v2619
        %v2670 = vpack.c.b16 %v2624, %v2622
        %v2671 = vpack.c.b16 %v2625, %v2623
        %v2672 = vpack.c.b16 %v2628, %v2626
        %v2673 = vpack.c.b16 %v2629, %v2627
        %v2674 = vpack.c.b16 %v2632, %v2630
        %v2675 = vpack.c.b16 %v2633, %v2631
        %v2676 = vpack.c.b16 %v2636, %v2634
        %v2677 = vpack.c.b16 %v2637, %v2635
        %v2678 = vpack.c.b16 %v2640, %v2638
        %v2679 = vpack.c.b16 %v2641, %v2639
        %v2680 = vpack.c.b16 %v2644, %v2642
        %v2681 = vpack.c.b16 %v2645, %v2643
        %v2682 = vpack.c.b16 %v2648, %v2646
        %v2683 = vpack.c.b16 %v2649, %v2647
        %v2684 = vpack.c.b16 %v2652, %v2650
        %v2685 = vpack.c.b16 %v2653, %v2651
        %2718 = vmatprep.subr.bf16.mxu0 %v2655
        %2719 = vmatpush1.bf16.msra.mxu0 %v2654
        %2720 = vmatprep.subr.bf16.mxu0 %v2657
        %2721 = vmatpush1.bf16.msra.mxu0 %v2656
        %2722 = vmatprep.subr.bf16.mxu0 %v2659
        %2723 = vmatpush1.bf16.msra.mxu0 %v2658
        %2724 = vmatprep.subr.bf16.mxu0 %v2661
        %2725 = vmatpush1.bf16.msra.mxu0 %v2660
        %2726 = vmatprep.subr.bf16.mxu0 %v2663
        %2727 = vmatpush1.bf16.msra.mxu0 %v2662
        %2728 = vmatprep.subr.bf16.mxu0 %v2665
        %2729 = vmatpush1.bf16.msra.mxu0 %v2664
        %2730 = vmatprep.subr.bf16.mxu0 %v2667
        %2731 = vmatpush1.bf16.msra.mxu0 %v2666
        %2732 = vmatprep.subr.bf16.mxu0 %v2669
        %2733 = vmatpush1.bf16.msra.mxu0 %v2668
        %2734 = vmatprep.subr.bf16.mxu0 %v2671
        %2735 = vmatpush1.bf16.msra.mxu0 %v2670
        %2736 = vmatprep.subr.bf16.mxu0 %v2673
        %2737 = vmatpush1.bf16.msra.mxu0 %v2672
        %2738 = vmatprep.subr.bf16.mxu0 %v2675
        %2739 = vmatpush1.bf16.msra.mxu0 %v2674
        %2740 = vmatprep.subr.bf16.mxu0 %v2677
        %2741 = vmatpush1.bf16.msra.mxu0 %v2676
        %2742 = vmatprep.subr.bf16.mxu0 %v2679
        %2743 = vmatpush1.bf16.msra.mxu0 %v2678
        %2744 = vmatprep.subr.bf16.mxu0 %v2681
        %2745 = vmatpush1.bf16.msra.mxu0 %v2680
        %2746 = vmatprep.subr.bf16.mxu0 %v2683
        %2747 = vmatpush1.bf16.msra.mxu0 %v2682
        %2748 = vmatprep.subr.bf16.mxu0 %v2685
        %2749 = vmatpush1.bf16.msra.mxu0 %v2684
        %2750 = vmatprep.mubr.bf16.mxu0 %v2174
        %2751 = vmatmul.mubr.bf16.gmra.mrb[0].mxu0 %v2173
        %v2752 = vpop.f32.mrb[0].mxu0
        %v2753 = vadd.f32 0.0, %v2752
        %v2754 = vpop.f32.mrb[0].mxu0
        %v2755 = vadd.f32 0.0, %v2754
        %v2756 = vpop.f32.mrb[0].mxu0
        %v2757 = vadd.f32 0.0, %v2756
        %v2758 = vpop.f32.mrb[0].mxu0
        %v2759 = vadd.f32 0.0, %v2758
        %2760 = vmatprep.mubr.bf16.mxu0 %v2176
        %2761 = vmatmul.mubr.bf16.gmra.mrb[0].mxu0 %v2175
        %v2762 = vpop.f32.mrb[0].mxu0
        %v2763 = vadd.f32 0.0, %v2762
        %v2764 = vpop.f32.mrb[0].mxu0
        %v2765 = vadd.f32 0.0, %v2764
        %v2766 = vpop.f32.mrb[0].mxu0
        %v2767 = vadd.f32 0.0, %v2766
        %v2768 = vpop.f32.mrb[0].mxu0
        %v2769 = vadd.f32 0.0, %v2768
        %2770 = vmatprep.mubr.bf16.mxu0 %v2178
        %2771 = vmatmul.mubr.bf16.gmra.mrb[0].mxu0 %v2177
        %v2772 = vpop.f32.mrb[0].mxu0
        %v2773 = vadd.f32 0.0, %v2772
        %v2774 = vpop.f32.mrb[0].mxu0
        %v2775 = vadd.f32 0.0, %v2774
        %v2776 = vpop.f32.mrb[0].mxu0
        %v2777 = vadd.f32 0.0, %v2776
        %v2778 = vpop.f32.mrb[0].mxu0
        %v2779 = vadd.f32 0.0, %v2778
        %2780 = vmatprep.mubr.bf16.mxu0 %v2180
        %2781 = vmatmul.mubr.bf16.gmra.mrb[0].mxu0 %v2179
        %v2782 = vpop.f32.mrb[0].mxu0
        %v2783 = vadd.f32 0.0, %v2782
        %v2784 = vpop.f32.mrb[0].mxu0
        %v2785 = vadd.f32 0.0, %v2784
        %v2786 = vpop.f32.mrb[0].mxu0
        %v2787 = vadd.f32 0.0, %v2786
        %v2788 = vpop.f32.mrb[0].mxu0
        %v2789 = vadd.f32 0.0, %v2788
        %2790 = vmatprep.mubr.bf16.mxu0 %v2182
        %2791 = vmatmul.mubr.bf16.gmra.mrb[0].mxu0 %v2181
        %v2792 = vpop.f32.mrb[0].mxu0
        %v2793 = vadd.f32 0.0, %v2792
        %v2794 = vpop.f32.mrb[0].mxu0
        %v2795 = vadd.f32 0.0, %v2794
        %v2796 = vpop.f32.mrb[0].mxu0
        %v2797 = vadd.f32 0.0, %v2796
        %v2798 = vpop.f32.mrb[0].mxu0
        %v2799 = vadd.f32 0.0, %v2798
        %2800 = vmatprep.mubr.bf16.mxu0 %v2184
        %2801 = vmatmul.mubr.bf16.gmra.mrb[0].mxu0 %v2183
        %v2802 = vpop.f32.mrb[0].mxu0
        %v2803 = vadd.f32 0.0, %v2802
        %v2804 = vpop.f32.mrb[0].mxu0
        %v2805 = vadd.f32 0.0, %v2804
        %v2806 = vpop.f32.mrb[0].mxu0
        %v2807 = vadd.f32 0.0, %v2806
        %v2808 = vpop.f32.mrb[0].mxu0
        %v2809 = vadd.f32 0.0, %v2808
        %2810 = vmatprep.mubr.bf16.mxu0 %v2186
        %2811 = vmatmul.mubr.bf16.gmra.mrb[0].mxu0 %v2185
        %v2812 = vpop.f32.mrb[0].mxu0
        %v2813 = vadd.f32 0.0, %v2812
        %v2814 = vpop.f32.mrb[0].mxu0
        %v2815 = vadd.f32 0.0, %v2814
        %v2816 = vpop.f32.mrb[0].mxu0
        %v2817 = vadd.f32 0.0, %v2816
        %v2818 = vpop.f32.mrb[0].mxu0
        %v2819 = vadd.f32 0.0, %v2818
        %2820 = vmatprep.mubr.bf16.mxu0 %v2188
        %2821 = vmatmul.mubr.bf16.gmra.mrb[0].mxu0 %v2187
        %v2822 = vpop.f32.mrb[0].mxu0
        %v2823 = vadd.f32 0.0, %v2822
        %v2824 = vpop.f32.mrb[0].mxu0
        %v2825 = vadd.f32 0.0, %v2824
        %v2826 = vpop.f32.mrb[0].mxu0
        %v2827 = vadd.f32 0.0, %v2826
        %v2828 = vpop.f32.mrb[0].mxu0
        %v2829 = vadd.f32 0.0, %v2828
        %2830 = vmatprep.mubr.bf16.mxu0 %v2190
        %2831 = vmatmul.mubr.bf16.gmra.mrb[0].mxu0 %v2189
        %v2832 = vpop.f32.mrb[0].mxu0
        %v2833 = vadd.f32 0.0, %v2832
        %v2834 = vpop.f32.mrb[0].mxu0
        %v2835 = vadd.f32 0.0, %v2834
        %v2836 = vpop.f32.mrb[0].mxu0
        %v2837 = vadd.f32 0.0, %v2836
        %v2838 = vpop.f32.mrb[0].mxu0
        %v2839 = vadd.f32 0.0, %v2838
        %2840 = vmatprep.mubr.bf16.mxu0 %v2192
        %2841 = vmatmul.mubr.bf16.gmra.mrb[0].mxu0 %v2191
        %v2842 = vpop.f32.mrb[0].mxu0
        %v2843 = vadd.f32 0.0, %v2842
        %v2844 = vpop.f32.mrb[0].mxu0
        %v2845 = vadd.f32 0.0, %v2844
        %v2846 = vpop.f32.mrb[0].mxu0
        %v2847 = vadd.f32 0.0, %v2846
        %v2848 = vpop.f32.mrb[0].mxu0
        %v2849 = vadd.f32 0.0, %v2848
        %2850 = vmatprep.mubr.bf16.mxu0 %v2194
        %2851 = vmatmul.mubr.bf16.gmra.mrb[0].mxu0 %v2193
        %v2852 = vpop.f32.mrb[0].mxu0
        %v2853 = vadd.f32 0.0, %v2852
        %v2854 = vpop.f32.mrb[0].mxu0
        %v2855 = vadd.f32 0.0, %v2854
        %v2856 = vpop.f32.mrb[0].mxu0
        %v2857 = vadd.f32 0.0, %v2856
        %v2858 = vpop.f32.mrb[0].mxu0
        %v2859 = vadd.f32 0.0, %v2858
        %2860 = vmatprep.mubr.bf16.mxu0 %v2196
        %2861 = vmatmul.mubr.bf16.gmra.mrb[0].mxu0 %v2195
        %v2862 = vpop.f32.mrb[0].mxu0
        %v2863 = vadd.f32 0.0, %v2862
        %v2864 = vpop.f32.mrb[0].mxu0
        %v2865 = vadd.f32 0.0, %v2864
        %v2866 = vpop.f32.mrb[0].mxu0
        %v2867 = vadd.f32 0.0, %v2866
        %v2868 = vpop.f32.mrb[0].mxu0
        %v2869 = vadd.f32 0.0, %v2868
        %2870 = vmatprep.mubr.bf16.mxu0 %v2198
        %2871 = vmatmul.mubr.bf16.gmra.mrb[0].mxu0 %v2197
        %v2872 = vpop.f32.mrb[0].mxu0
        %v2873 = vadd.f32 0.0, %v2872
        %v2874 = vpop.f32.mrb[0].mxu0
        %v2875 = vadd.f32 0.0, %v2874
        %v2876 = vpop.f32.mrb[0].mxu0
        %v2877 = vadd.f32 0.0, %v2876
        %v2878 = vpop.f32.mrb[0].mxu0
        %v2879 = vadd.f32 0.0, %v2878
        %2880 = vmatprep.mubr.bf16.mxu0 %v2200
        %2881 = vmatmul.mubr.bf16.gmra.mrb[0].mxu0 %v2199
        %v2882 = vpop.f32.mrb[0].mxu0
        %v2883 = vadd.f32 0.0, %v2882
        %v2884 = vpop.f32.mrb[0].mxu0
        %v2885 = vadd.f32 0.0, %v2884
        %v2886 = vpop.f32.mrb[0].mxu0
        %v2887 = vadd.f32 0.0, %v2886
        %v2888 = vpop.f32.mrb[0].mxu0
        %v2889 = vadd.f32 0.0, %v2888
        %2890 = vmatprep.mubr.bf16.mxu0 %v2202
        %2891 = vmatmul.mubr.bf16.gmra.mrb[0].mxu0 %v2201
        %v2892 = vpop.f32.mrb[0].mxu0
        %v2893 = vadd.f32 0.0, %v2892
        %v2894 = vpop.f32.mrb[0].mxu0
        %v2895 = vadd.f32 0.0, %v2894
        %v2896 = vpop.f32.mrb[0].mxu0
        %v2897 = vadd.f32 0.0, %v2896
        %v2898 = vpop.f32.mrb[0].mxu0
        %v2899 = vadd.f32 0.0, %v2898
        %2900 = vmatprep.mubr.bf16.mxu0 %v2204
        %2901 = vmatmul.mubr.bf16.gmra.mrb[0].mxu0 %v2203
        %v2902 = vpop.f32.mrb[0].mxu0
        %v2903 = vadd.f32 0.0, %v2902
        %v2904 = vpop.f32.mrb[0].mxu0
        %v2905 = vadd.f32 0.0, %v2904
        %v2906 = vpop.f32.mrb[0].mxu0
        %v2907 = vadd.f32 0.0, %v2906
        %v2908 = vpop.f32.mrb[0].mxu0
        %v2909 = vadd.f32 0.0, %v2908
        %2910 = vdwg.mxu0
        %v2943 = vunpack.c.l.b16 %v2494
        %v2944 = vunpack.c.h.b16 %v2494
        %v2945 = vunpack.c.l.b16 %v2495
        %v2946 = vunpack.c.h.b16 %v2495
        %v2947 = vunpack.c.l.b16 %v2496
        %v2948 = vunpack.c.h.b16 %v2496
        %v2949 = vunpack.c.l.b16 %v2497
        %v2950 = vunpack.c.h.b16 %v2497
        %v2951 = vunpack.c.l.b16 %v2498
        %v2952 = vunpack.c.h.b16 %v2498
        %v2953 = vunpack.c.l.b16 %v2499
        %v2954 = vunpack.c.h.b16 %v2499
        %v2955 = vunpack.c.l.b16 %v2500
        %v2956 = vunpack.c.h.b16 %v2500
        %v2957 = vunpack.c.l.b16 %v2501
        %v2958 = vunpack.c.h.b16 %v2501
        %v2959 = vunpack.c.l.b16 %v2502
        %v2960 = vunpack.c.h.b16 %v2502
        %v2961 = vunpack.c.l.b16 %v2503
        %v2962 = vunpack.c.h.b16 %v2503
        %v2963 = vunpack.c.l.b16 %v2504
        %v2964 = vunpack.c.h.b16 %v2504
        %v2965 = vunpack.c.l.b16 %v2505
        %v2966 = vunpack.c.h.b16 %v2505
        %v2967 = vunpack.c.l.b16 %v2506
        %v2968 = vunpack.c.h.b16 %v2506
        %v2969 = vunpack.c.l.b16 %v2507
        %v2970 = vunpack.c.h.b16 %v2507
        %v2971 = vunpack.c.l.b16 %v2508
        %v2972 = vunpack.c.h.b16 %v2508
        %v2973 = vunpack.c.l.b16 %v2509
        %v2974 = vunpack.c.h.b16 %v2509
        %v2975 = vunpack.c.l.b16 %v2510
        %v2976 = vunpack.c.h.b16 %v2510
        %v2977 = vunpack.c.l.b16 %v2511
        %v2978 = vunpack.c.h.b16 %v2511
        %v2979 = vunpack.c.l.b16 %v2512
        %v2980 = vunpack.c.h.b16 %v2512
        %v2981 = vunpack.c.l.b16 %v2513
        %v2982 = vunpack.c.h.b16 %v2513
        %v2983 = vunpack.c.l.b16 %v2514
        %v2984 = vunpack.c.h.b16 %v2514
        %v2985 = vunpack.c.l.b16 %v2515
        %v2986 = vunpack.c.h.b16 %v2515
        %v2987 = vunpack.c.l.b16 %v2516
        %v2988 = vunpack.c.h.b16 %v2516
        %v2989 = vunpack.c.l.b16 %v2517
        %v2990 = vunpack.c.h.b16 %v2517
        %v2991 = vunpack.c.l.b16 %v2518
        %v2992 = vunpack.c.h.b16 %v2518
        %v2993 = vunpack.c.l.b16 %v2519
        %v2994 = vunpack.c.h.b16 %v2519
        %v2995 = vunpack.c.l.b16 %v2520
        %v2996 = vunpack.c.h.b16 %v2520
        %v2997 = vunpack.c.l.b16 %v2521
        %v2998 = vunpack.c.h.b16 %v2521
        %v2999 = vunpack.c.l.b16 %v2522
        %v3000 = vunpack.c.h.b16 %v2522
        %v3001 = vunpack.c.l.b16 %v2523
        %v3002 = vunpack.c.h.b16 %v2523
        %v3003 = vunpack.c.l.b16 %v2524
        %v3004 = vunpack.c.h.b16 %v2524
        %v3005 = vunpack.c.l.b16 %v2525
        %v3006 = vunpack.c.h.b16 %v2525
        %v3007 = vpack.c.b16 %v2945, %v2943
        %v3008 = vpack.c.b16 %v2946, %v2944
        %v3009 = vpack.c.b16 %v2949, %v2947
        %v3010 = vpack.c.b16 %v2950, %v2948
        %v3011 = vpack.c.b16 %v2953, %v2951
        %v3012 = vpack.c.b16 %v2954, %v2952
        %v3013 = vpack.c.b16 %v2957, %v2955
        %v3014 = vpack.c.b16 %v2958, %v2956
        %v3015 = vpack.c.b16 %v2961, %v2959
        %v3016 = vpack.c.b16 %v2962, %v2960
        %v3017 = vpack.c.b16 %v2965, %v2963
        %v3018 = vpack.c.b16 %v2966, %v2964
        %v3019 = vpack.c.b16 %v2969, %v2967
        %v3020 = vpack.c.b16 %v2970, %v2968
        %v3021 = vpack.c.b16 %v2973, %v2971
        %v3022 = vpack.c.b16 %v2974, %v2972
        %v3023 = vpack.c.b16 %v2977, %v2975
        %v3024 = vpack.c.b16 %v2978, %v2976
        %v3025 = vpack.c.b16 %v2981, %v2979
        %v3026 = vpack.c.b16 %v2982, %v2980
        %v3027 = vpack.c.b16 %v2985, %v2983
        %v3028 = vpack.c.b16 %v2986, %v2984
        %v3029 = vpack.c.b16 %v2989, %v2987
        %v3030 = vpack.c.b16 %v2990, %v2988
        %v3031 = vpack.c.b16 %v2993, %v2991
        %v3032 = vpack.c.b16 %v2994, %v2992
        %v3033 = vpack.c.b16 %v2997, %v2995
        %v3034 = vpack.c.b16 %v2998, %v2996
        %v3035 = vpack.c.b16 %v3001, %v2999
        %v3036 = vpack.c.b16 %v3002, %v3000
        %v3037 = vpack.c.b16 %v3005, %v3003
        %v3038 = vpack.c.b16 %v3006, %v3004
        %3071 = vmatprep.subr.bf16.mxu0 %v3008
        %3072 = vmatpush1.bf16.msra.mxu0 %v3007
        %3073 = vmatprep.subr.bf16.mxu0 %v3010
        %3074 = vmatpush1.bf16.msra.mxu0 %v3009
        %3075 = vmatprep.subr.bf16.mxu0 %v3012
        %3076 = vmatpush1.bf16.msra.mxu0 %v3011
        %3077 = vmatprep.subr.bf16.mxu0 %v3014
        %3078 = vmatpush1.bf16.msra.mxu0 %v3013
        %3079 = vmatprep.subr.bf16.mxu0 %v3016
        %3080 = vmatpush1.bf16.msra.mxu0 %v3015
        %3081 = vmatprep.subr.bf16.mxu0 %v3018
        %3082 = vmatpush1.bf16.msra.mxu0 %v3017
        %3083 = vmatprep.subr.bf16.mxu0 %v3020
        %3084 = vmatpush1.bf16.msra.mxu0 %v3019
        %3085 = vmatprep.subr.bf16.mxu0 %v3022
        %3086 = vmatpush1.bf16.msra.mxu0 %v3021
        %3087 = vmatprep.subr.bf16.mxu0 %v3024
        %3088 = vmatpush1.bf16.msra.mxu0 %v3023
        %3089 = vmatprep.subr.bf16.mxu0 %v3026
        %3090 = vmatpush1.bf16.msra.mxu0 %v3025
        %3091 = vmatprep.subr.bf16.mxu0 %v3028
        %3092 = vmatpush1.bf16.msra.mxu0 %v3027
        %3093 = vmatprep.subr.bf16.mxu0 %v3030
        %3094 = vmatpush1.bf16.msra.mxu0 %v3029
        %3095 = vmatprep.subr.bf16.mxu0 %v3032
        %3096 = vmatpush1.bf16.msra.mxu0 %v3031
        %3097 = vmatprep.subr.bf16.mxu0 %v3034
        %3098 = vmatpush1.bf16.msra.mxu0 %v3033
        %3099 = vmatprep.subr.bf16.mxu0 %v3036
        %3100 = vmatpush1.bf16.msra.mxu0 %v3035
        %3101 = vmatprep.subr.bf16.mxu0 %v3038
        %3102 = vmatpush1.bf16.msra.mxu0 %v3037
        %3103 = vmatprep.mubr.bf16.mxu0 %v2463
        %3104 = vmatmul.mubr.bf16.gmra.mrb[0].mxu0 %v2462
        %v3105 = vpop.f32.mrb[0].mxu0
        %v3106 = vadd.f32 %v2753, %v3105
        %v3107 = vpop.f32.mrb[0].mxu0
        %v3108 = vadd.f32 %v2755, %v3107
        %v3109 = vpop.f32.mrb[0].mxu0
        %v3110 = vadd.f32 %v2757, %v3109
        %v3111 = vpop.f32.mrb[0].mxu0
        %v3112 = vadd.f32 %v2759, %v3111
        %3113 = vmatprep.mubr.bf16.mxu0 %v2465
        %3114 = vmatmul.mubr.bf16.gmra.mrb[0].mxu0 %v2464
        %v3115 = vpop.f32.mrb[0].mxu0
        %v3116 = vadd.f32 %v2763, %v3115
        %v3117 = vpop.f32.mrb[0].mxu0
        %v3118 = vadd.f32 %v2765, %v3117
        %v3119 = vpop.f32.mrb[0].mxu0
        %v3120 = vadd.f32 %v2767, %v3119
        %v3121 = vpop.f32.mrb[0].mxu0
        %v3122 = vadd.f32 %v2769, %v3121
        %3123 = vmatprep.mubr.bf16.mxu0 %v2467
        %3124 = vmatmul.mubr.bf16.gmra.mrb[0].mxu0 %v2466
        %v3125 = vpop.f32.mrb[0].mxu0
        %v3126 = vadd.f32 %v2773, %v3125
        %v3127 = vpop.f32.mrb[0].mxu0
        %v3128 = vadd.f32 %v2775, %v3127
        %v3129 = vpop.f32.mrb[0].mxu0
        %v3130 = vadd.f32 %v2777, %v3129
        %v3131 = vpop.f32.mrb[0].mxu0
        %v3132 = vadd.f32 %v2779, %v3131
        %3133 = vmatprep.mubr.bf16.mxu0 %v2469
        %3134 = vmatmul.mubr.bf16.gmra.mrb[0].mxu0 %v2468
        %v3135 = vpop.f32.mrb[0].mxu0
        %v3136 = vadd.f32 %v2783, %v3135
        %v3137 = vpop.f32.mrb[0].mxu0
        %v3138 = vadd.f32 %v2785, %v3137
        %v3139 = vpop.f32.mrb[0].mxu0
        %v3140 = vadd.f32 %v2787, %v3139
        %v3141 = vpop.f32.mrb[0].mxu0
        %v3142 = vadd.f32 %v2789, %v3141
        %3143 = vmatprep.mubr.bf16.mxu0 %v2471
        %3144 = vmatmul.mubr.bf16.gmra.mrb[0].mxu0 %v2470
        %v3145 = vpop.f32.mrb[0].mxu0
        %v3146 = vadd.f32 %v2793, %v3145
        %v3147 = vpop.f32.mrb[0].mxu0
        %v3148 = vadd.f32 %v2795, %v3147
        %v3149 = vpop.f32.mrb[0].mxu0
        %v3150 = vadd.f32 %v2797, %v3149
        %v3151 = vpop.f32.mrb[0].mxu0
        %v3152 = vadd.f32 %v2799, %v3151
        %3153 = vmatprep.mubr.bf16.mxu0 %v2473
        %3154 = vmatmul.mubr.bf16.gmra.mrb[0].mxu0 %v2472
        %v3155 = vpop.f32.mrb[0].mxu0
        %v3156 = vadd.f32 %v2803, %v3155
        %v3157 = vpop.f32.mrb[0].mxu0
        %v3158 = vadd.f32 %v2805, %v3157
        %v3159 = vpop.f32.mrb[0].mxu0
        %v3160 = vadd.f32 %v2807, %v3159
        %v3161 = vpop.f32.mrb[0].mxu0
        %v3162 = vadd.f32 %v2809, %v3161
        %3163 = vmatprep.mubr.bf16.mxu0 %v2475
        %3164 = vmatmul.mubr.bf16.gmra.mrb[0].mxu0 %v2474
        %v3165 = vpop.f32.mrb[0].mxu0
        %v3166 = vadd.f32 %v2813, %v3165
        %v3167 = vpop.f32.mrb[0].mxu0
        %v3168 = vadd.f32 %v2815, %v3167
        %v3169 = vpop.f32.mrb[0].mxu0
        %v3170 = vadd.f32 %v2817, %v3169
        %v3171 = vpop.f32.mrb[0].mxu0
        %v3172 = vadd.f32 %v2819, %v3171
        %3173 = vmatprep.mubr.bf16.mxu0 %v2477
        %3174 = vmatmul.mubr.bf16.gmra.mrb[0].mxu0 %v2476
        %v3175 = vpop.f32.mrb[0].mxu0
        %v3176 = vadd.f32 %v2823, %v3175
        %v3177 = vpop.f32.mrb[0].mxu0
        %v3178 = vadd.f32 %v2825, %v3177
        %v3179 = vpop.f32.mrb[0].mxu0
        %v3180 = vadd.f32 %v2827, %v3179
        %v3181 = vpop.f32.mrb[0].mxu0
        %v3182 = vadd.f32 %v2829, %v3181
        %3183 = vmatprep.mubr.bf16.mxu0 %v2479
        %3184 = vmatmul.mubr.bf16.gmra.mrb[0].mxu0 %v2478
        %v3185 = vpop.f32.mrb[0].mxu0
        %v3186 = vadd.f32 %v2833, %v3185
        %v3187 = vpop.f32.mrb[0].mxu0
        %v3188 = vadd.f32 %v2835, %v3187
        %v3189 = vpop.f32.mrb[0].mxu0
        %v3190 = vadd.f32 %v2837, %v3189
        %v3191 = vpop.f32.mrb[0].mxu0
        %v3192 = vadd.f32 %v2839, %v3191
        %3193 = vmatprep.mubr.bf16.mxu0 %v2481
        %3194 = vmatmul.mubr.bf16.gmra.mrb[0].mxu0 %v2480
        %v3195 = vpop.f32.mrb[0].mxu0
        %v3196 = vadd.f32 %v2843, %v3195
        %v3197 = vpop.f32.mrb[0].mxu0
        %v3198 = vadd.f32 %v2845, %v3197
        %v3199 = vpop.f32.mrb[0].mxu0
        %v3200 = vadd.f32 %v2847, %v3199
        %v3201 = vpop.f32.mrb[0].mxu0
        %v3202 = vadd.f32 %v2849, %v3201
        %3203 = vmatprep.mubr.bf16.mxu0 %v2483
        %3204 = vmatmul.mubr.bf16.gmra.mrb[0].mxu0 %v2482
        %v3205 = vpop.f32.mrb[0].mxu0
        %v3206 = vadd.f32 %v2853, %v3205
        %v3207 = vpop.f32.mrb[0].mxu0
        %v3208 = vadd.f32 %v2855, %v3207
        %v3209 = vpop.f32.mrb[0].mxu0
        %v3210 = vadd.f32 %v2857, %v3209
        %v3211 = vpop.f32.mrb[0].mxu0
        %v3212 = vadd.f32 %v2859, %v3211
        %3213 = vmatprep.mubr.bf16.mxu0 %v2485
        %3214 = vmatmul.mubr.bf16.gmra.mrb[0].mxu0 %v2484
        %v3215 = vpop.f32.mrb[0].mxu0
        %v3216 = vadd.f32 %v2863, %v3215
        %v3217 = vpop.f32.mrb[0].mxu0
        %v3218 = vadd.f32 %v2865, %v3217
        %v3219 = vpop.f32.mrb[0].mxu0
        %v3220 = vadd.f32 %v2867, %v3219
        %v3221 = vpop.f32.mrb[0].mxu0
        %v3222 = vadd.f32 %v2869, %v3221
        %3223 = vmatprep.mubr.bf16.mxu0 %v2487
        %3224 = vmatmul.mubr.bf16.gmra.mrb[0].mxu0 %v2486
        %v3225 = vpop.f32.mrb[0].mxu0
        %v3226 = vadd.f32 %v2873, %v3225
        %v3227 = vpop.f32.mrb[0].mxu0
        %v3228 = vadd.f32 %v2875, %v3227
        %v3229 = vpop.f32.mrb[0].mxu0
        %v3230 = vadd.f32 %v2877, %v3229
        %v3231 = vpop.f32.mrb[0].mxu0
        %v3232 = vadd.f32 %v2879, %v3231
        %3233 = vmatprep.mubr.bf16.mxu0 %v2489
        %3234 = vmatmul.mubr.bf16.gmra.mrb[0].mxu0 %v2488
        %v3235 = vpop.f32.mrb[0].mxu0
        %v3236 = vadd.f32 %v2883, %v3235
        %v3237 = vpop.f32.mrb[0].mxu0
        %v3238 = vadd.f32 %v2885, %v3237
        %v3239 = vpop.f32.mrb[0].mxu0
        %v3240 = vadd.f32 %v2887, %v3239
        %v3241 = vpop.f32.mrb[0].mxu0
        %v3242 = vadd.f32 %v2889, %v3241
        %3243 = vmatprep.mubr.bf16.mxu0 %v2491
        %3244 = vmatmul.mubr.bf16.gmra.mrb[0].mxu0 %v2490
        %v3245 = vpop.f32.mrb[0].mxu0
        %v3246 = vadd.f32 %v2893, %v3245
        %v3247 = vpop.f32.mrb[0].mxu0
        %v3248 = vadd.f32 %v2895, %v3247
        %v3249 = vpop.f32.mrb[0].mxu0
        %v3250 = vadd.f32 %v2897, %v3249
        %v3251 = vpop.f32.mrb[0].mxu0
        %v3252 = vadd.f32 %v2899, %v3251
        %3253 = vmatprep.mubr.bf16.mxu0 %v2493
        %3254 = vmatmul.mubr.bf16.gmra.mrb[0].mxu0 %v2492
        %v3255 = vpop.f32.mrb[0].mxu0
        %v3256 = vadd.f32 %v2903, %v3255
        %v3257 = vpop.f32.mrb[0].mxu0
        %v3258 = vadd.f32 %v2905, %v3257
        %v3259 = vpop.f32.mrb[0].mxu0
        %v3260 = vadd.f32 %v2907, %v3259
        %v3261 = vpop.f32.mrb[0].mxu0
        %v3262 = vadd.f32 %v2909, %v3261
        %3263 = vdwg.mxu0
        %v3264 = vld [vmem:[%s14] sm:$0x3]
        %v3266 = vlaneseq
        %v3267 = vshrl.u32 %v3266, 7
        %v3268 = vsub.s32 0, %v3267
        %v3269 = vrot.slane %v3264, %v3268
        %v3270 = vlaneseq
        %v3271 = vshrl.u32 %v3270, 7
        %v3272 = vsub.s32 1, %v3271
        %v3273 = vrot.slane %v3264, %v3272
        %v3276 = vadd.f32 %v3106, %v3269
        %v3277 = vadd.f32 %v3108, %v3273
        %v3278 = vadd.f32 %v3110, %v3269
        %v3279 = vadd.f32 %v3112, %v3273
        %v3280 = vadd.f32 %v3116, %v3269
        %v3281 = vadd.f32 %v3118, %v3273
        %v3282 = vadd.f32 %v3120, %v3269
        %v3283 = vadd.f32 %v3122, %v3273
        %v3284 = vadd.f32 %v3126, %v3269
        %v3285 = vadd.f32 %v3128, %v3273
        %v3286 = vadd.f32 %v3130, %v3269
        %v3287 = vadd.f32 %v3132, %v3273
        %v3288 = vadd.f32 %v3136, %v3269
        %v3289 = vadd.f32 %v3138, %v3273
        %v3290 = vadd.f32 %v3140, %v3269
        %v3291 = vadd.f32 %v3142, %v3273
        %v3292 = vadd.f32 %v3146, %v3269
        %v3293 = vadd.f32 %v3148, %v3273
        %v3294 = vadd.f32 %v3150, %v3269
        %v3295 = vadd.f32 %v3152, %v3273
        %v3296 = vadd.f32 %v3156, %v3269
        %v3297 = vadd.f32 %v3158, %v3273
        %v3298 = vadd.f32 %v3160, %v3269
        %v3299 = vadd.f32 %v3162, %v3273
        %v3300 = vadd.f32 %v3166, %v3269
        %v3301 = vadd.f32 %v3168, %v3273
        %v3302 = vadd.f32 %v3170, %v3269
        %v3303 = vadd.f32 %v3172, %v3273
        %v3304 = vadd.f32 %v3176, %v3269
        %v3305 = vadd.f32 %v3178, %v3273
        %v3306 = vadd.f32 %v3180, %v3269
        %v3307 = vadd.f32 %v3182, %v3273
        %v3308 = vadd.f32 %v3186, %v3269
        %v3309 = vadd.f32 %v3188, %v3273
        %v3310 = vadd.f32 %v3190, %v3269
        %v3311 = vadd.f32 %v3192, %v3273
        %v3312 = vadd.f32 %v3196, %v3269
        %v3313 = vadd.f32 %v3198, %v3273
        %v3314 = vadd.f32 %v3200, %v3269
        %v3315 = vadd.f32 %v3202, %v3273
        %v3316 = vadd.f32 %v3206, %v3269
        %v3317 = vadd.f32 %v3208, %v3273
        %v3318 = vadd.f32 %v3210, %v3269
        %v3319 = vadd.f32 %v3212, %v3273
        %v3320 = vadd.f32 %v3216, %v3269
        %v3321 = vadd.f32 %v3218, %v3273
        %v3322 = vadd.f32 %v3220, %v3269
        %v3323 = vadd.f32 %v3222, %v3273
        %v3324 = vadd.f32 %v3226, %v3269
        %v3325 = vadd.f32 %v3228, %v3273
        %v3326 = vadd.f32 %v3230, %v3269
        %v3327 = vadd.f32 %v3232, %v3273
        %v3328 = vadd.f32 %v3236, %v3269
        %v3329 = vadd.f32 %v3238, %v3273
        %v3330 = vadd.f32 %v3240, %v3269
        %v3331 = vadd.f32 %v3242, %v3273
        %v3332 = vadd.f32 %v3246, %v3269
        %v3333 = vadd.f32 %v3248, %v3273
        %v3334 = vadd.f32 %v3250, %v3269
        %v3335 = vadd.f32 %v3252, %v3273
        %v3336 = vadd.f32 %v3256, %v3269
        %v3337 = vadd.f32 %v3258, %v3273
        %v3338 = vadd.f32 %v3260, %v3269
        %v3339 = vadd.f32 %v3262, %v3273
        %v3340 = vmax.f32 %v3276, 0.0
        %v3341 = vmax.f32 %v3277, 0.0
        %v3342 = vmax.f32 %v3278, 0.0
        %v3343 = vmax.f32 %v3279, 0.0
        %v3344 = vmax.f32 %v3280, 0.0
        %v3345 = vmax.f32 %v3281, 0.0
        %v3346 = vmax.f32 %v3282, 0.0
        %v3347 = vmax.f32 %v3283, 0.0
        %v3348 = vmax.f32 %v3284, 0.0
        %v3349 = vmax.f32 %v3285, 0.0
        %v3350 = vmax.f32 %v3286, 0.0
        %v3351 = vmax.f32 %v3287, 0.0
        %v3352 = vmax.f32 %v3288, 0.0
        %v3353 = vmax.f32 %v3289, 0.0
        %v3354 = vmax.f32 %v3290, 0.0
        %v3355 = vmax.f32 %v3291, 0.0
        %v3356 = vmax.f32 %v3292, 0.0
        %v3357 = vmax.f32 %v3293, 0.0
        %v3358 = vmax.f32 %v3294, 0.0
        %v3359 = vmax.f32 %v3295, 0.0
        %v3360 = vmax.f32 %v3296, 0.0
        %v3361 = vmax.f32 %v3297, 0.0
        %v3362 = vmax.f32 %v3298, 0.0
        %v3363 = vmax.f32 %v3299, 0.0
        %v3364 = vmax.f32 %v3300, 0.0
        %v3365 = vmax.f32 %v3301, 0.0
        %v3366 = vmax.f32 %v3302, 0.0
        %v3367 = vmax.f32 %v3303, 0.0
        %v3368 = vmax.f32 %v3304, 0.0
        %v3369 = vmax.f32 %v3305, 0.0
        %v3370 = vmax.f32 %v3306, 0.0
        %v3371 = vmax.f32 %v3307, 0.0
        %v3372 = vmax.f32 %v3308, 0.0
        %v3373 = vmax.f32 %v3309, 0.0
        %v3374 = vmax.f32 %v3310, 0.0
        %v3375 = vmax.f32 %v3311, 0.0
        %v3376 = vmax.f32 %v3312, 0.0
        %v3377 = vmax.f32 %v3313, 0.0
        %v3378 = vmax.f32 %v3314, 0.0
        %v3379 = vmax.f32 %v3315, 0.0
        %v3380 = vmax.f32 %v3316, 0.0
        %v3381 = vmax.f32 %v3317, 0.0
        %v3382 = vmax.f32 %v3318, 0.0
        %v3383 = vmax.f32 %v3319, 0.0
        %v3384 = vmax.f32 %v3320, 0.0
        %v3385 = vmax.f32 %v3321, 0.0
        %v3386 = vmax.f32 %v3322, 0.0
        %v3387 = vmax.f32 %v3323, 0.0
        %v3388 = vmax.f32 %v3324, 0.0
        %v3389 = vmax.f32 %v3325, 0.0
        %v3390 = vmax.f32 %v3326, 0.0
        %v3391 = vmax.f32 %v3327, 0.0
        %v3392 = vmax.f32 %v3328, 0.0
        %v3393 = vmax.f32 %v3329, 0.0
        %v3394 = vmax.f32 %v3330, 0.0
        %v3395 = vmax.f32 %v3331, 0.0
        %v3396 = vmax.f32 %v3332, 0.0
        %v3397 = vmax.f32 %v3333, 0.0
        %v3398 = vmax.f32 %v3334, 0.0
        %v3399 = vmax.f32 %v3335, 0.0
        %v3400 = vmax.f32 %v3336, 0.0
        %v3401 = vmax.f32 %v3337, 0.0
        %v3402 = vmax.f32 %v3338, 0.0
        %v3403 = vmax.f32 %v3339, 0.0
        %v3404 = vpack.c.bf16 %v3342, %v3340
        %v3405 = vpack.c.bf16 %v3343, %v3341
        %v3406 = vpack.c.bf16 %v3346, %v3344
        %v3407 = vpack.c.bf16 %v3347, %v3345
        %v3408 = vpack.c.bf16 %v3350, %v3348
        %v3409 = vpack.c.bf16 %v3351, %v3349
        %v3410 = vpack.c.bf16 %v3354, %v3352
        %v3411 = vpack.c.bf16 %v3355, %v3353
        %v3412 = vpack.c.bf16 %v3358, %v3356
        %v3413 = vpack.c.bf16 %v3359, %v3357
        %v3414 = vpack.c.bf16 %v3362, %v3360
        %v3415 = vpack.c.bf16 %v3363, %v3361
        %v3416 = vpack.c.bf16 %v3366, %v3364
        %v3417 = vpack.c.bf16 %v3367, %v3365
        %v3418 = vpack.c.bf16 %v3370, %v3368
        %v3419 = vpack.c.bf16 %v3371, %v3369
        %v3420 = vpack.c.bf16 %v3374, %v3372
        %v3421 = vpack.c.bf16 %v3375, %v3373
        %v3422 = vpack.c.bf16 %v3378, %v3376
        %v3423 = vpack.c.bf16 %v3379, %v3377
        %v3424 = vpack.c.bf16 %v3382, %v3380
        %v3425 = vpack.c.bf16 %v3383, %v3381
        %v3426 = vpack.c.bf16 %v3386, %v3384
        %v3427 = vpack.c.bf16 %v3387, %v3385
        %v3428 = vpack.c.bf16 %v3390, %v3388
        %v3429 = vpack.c.bf16 %v3391, %v3389
        %v3430 = vpack.c.bf16 %v3394, %v3392
        %v3431 = vpack.c.bf16 %v3395, %v3393
        %v3432 = vpack.c.bf16 %v3398, %v3396
        %v3433 = vpack.c.bf16 %v3399, %v3397
        %v3434 = vpack.c.bf16 %v3402, %v3400
        %v3435 = vpack.c.bf16 %v3403, %v3401
        %3436 = vmatprep.subr.bf16.mxu0 %v3405
        %3437 = vmatpush1.bf16.msra.mxu0 %v3404
        %3438 = vmatprep.subr.bf16.mxu0 %v3407
        %3439 = vmatpush1.bf16.msra.mxu0 %v3406
        %3440 = vmatprep.subr.bf16.mxu0 %v3409
        %3441 = vmatpush1.bf16.msra.mxu0 %v3408
        %3442 = vmatprep.subr.bf16.mxu0 %v3411
        %3443 = vmatpush1.bf16.msra.mxu0 %v3410
        %3444 = vmatprep.subr.bf16.mxu0 %v3413
        %3445 = vmatpush1.bf16.msra.mxu0 %v3412
        %3446 = vmatprep.subr.bf16.mxu0 %v3415
        %3447 = vmatpush1.bf16.msra.mxu0 %v3414
        %3448 = vmatprep.subr.bf16.mxu0 %v3417
        %3449 = vmatpush1.bf16.msra.mxu0 %v3416
        %3450 = vmatprep.subr.bf16.mxu0 %v3419
        %3451 = vmatpush1.bf16.msra.mxu0 %v3418
        %3452 = vmatprep.subr.bf16.mxu0 %v3421
        %3453 = vmatpush1.bf16.msra.mxu0 %v3420
        %3454 = vmatprep.subr.bf16.mxu0 %v3423
        %3455 = vmatpush1.bf16.msra.mxu0 %v3422
        %3456 = vmatprep.subr.bf16.mxu0 %v3425
        %3457 = vmatpush1.bf16.msra.mxu0 %v3424
        %3458 = vmatprep.subr.bf16.mxu0 %v3427
        %3459 = vmatpush1.bf16.msra.mxu0 %v3426
        %3460 = vmatprep.subr.bf16.mxu0 %v3429
        %3461 = vmatpush1.bf16.msra.mxu0 %v3428
        %3462 = vmatprep.subr.bf16.mxu0 %v3431
        %3463 = vmatpush1.bf16.msra.mxu0 %v3430
        %3464 = vmatprep.subr.bf16.mxu0 %v3433
        %3465 = vmatpush1.bf16.msra.mxu0 %v3432
        %3466 = vmatprep.subr.bf16.mxu0 %v3435
        %3467 = vmatpush1.bf16.msra.mxu0 %v3434
        %3468 = vmatprep.mubr.bf16.mxu0 %v998
        %3469 = vmatmul.mubr.bf16.gmra.mrb[0].mxu0 %v997
        %v3470 = vpop.f32.mrb[0].mxu0
        %v3471 = vadd.f32 0.0, %v3470
        %v3472 = vpop.f32.mrb[0].mxu0
        %v3473 = vadd.f32 0.0, %v3472
        %v3474 = vpop.f32.mrb[0].mxu0
        %v3475 = vadd.f32 0.0, %v3474
        %v3476 = vpop.f32.mrb[0].mxu0
        %v3477 = vadd.f32 0.0, %v3476
        %3478 = vmatprep.mubr.bf16.mxu0 %v1000
        %3479 = vmatmul.mubr.bf16.gmra.mrb[0].mxu0 %v999
        %v3480 = vpop.f32.mrb[0].mxu0
        %v3481 = vadd.f32 0.0, %v3480
        %v3482 = vpop.f32.mrb[0].mxu0
        %v3483 = vadd.f32 0.0, %v3482
        %v3484 = vpop.f32.mrb[0].mxu0
        %v3485 = vadd.f32 0.0, %v3484
        %v3486 = vpop.f32.mrb[0].mxu0
        %v3487 = vadd.f32 0.0, %v3486
        %3488 = vmatprep.mubr.bf16.mxu0 %v1002
        %3489 = vmatmul.mubr.bf16.gmra.mrb[0].mxu0 %v1001
        %v3490 = vpop.f32.mrb[0].mxu0
        %v3491 = vadd.f32 0.0, %v3490
        %v3492 = vpop.f32.mrb[0].mxu0
        %v3493 = vadd.f32 0.0, %v3492
        %v3494 = vpop.f32.mrb[0].mxu0
        %v3495 = vadd.f32 0.0, %v3494
        %v3496 = vpop.f32.mrb[0].mxu0
        %v3497 = vadd.f32 0.0, %v3496
        %3498 = vmatprep.mubr.bf16.mxu0 %v1004
        %3499 = vmatmul.mubr.bf16.gmra.mrb[0].mxu0 %v1003
        %v3500 = vpop.f32.mrb[0].mxu0
        %v3501 = vadd.f32 0.0, %v3500
        %v3502 = vpop.f32.mrb[0].mxu0
        %v3503 = vadd.f32 0.0, %v3502
        %v3504 = vpop.f32.mrb[0].mxu0
        %v3505 = vadd.f32 0.0, %v3504
        %v3506 = vpop.f32.mrb[0].mxu0
        %v3507 = vadd.f32 0.0, %v3506
        %3508 = vmatprep.mubr.bf16.mxu0 %v1006
        %3509 = vmatmul.mubr.bf16.gmra.mrb[0].mxu0 %v1005
        %v3510 = vpop.f32.mrb[0].mxu0
        %v3511 = vadd.f32 0.0, %v3510
        %v3512 = vpop.f32.mrb[0].mxu0
        %v3513 = vadd.f32 0.0, %v3512
        %v3514 = vpop.f32.mrb[0].mxu0
        %v3515 = vadd.f32 0.0, %v3514
        %v3516 = vpop.f32.mrb[0].mxu0
        %v3517 = vadd.f32 0.0, %v3516
        %3518 = vmatprep.mubr.bf16.mxu0 %v1008
        %3519 = vmatmul.mubr.bf16.gmra.mrb[0].mxu0 %v1007
        %v3520 = vpop.f32.mrb[0].mxu0
        %v3521 = vadd.f32 0.0, %v3520
        %v3522 = vpop.f32.mrb[0].mxu0
        %v3523 = vadd.f32 0.0, %v3522
        %v3524 = vpop.f32.mrb[0].mxu0
        %v3525 = vadd.f32 0.0, %v3524
        %v3526 = vpop.f32.mrb[0].mxu0
        %v3527 = vadd.f32 0.0, %v3526
        %3528 = vmatprep.mubr.bf16.mxu0 %v1010
        %3529 = vmatmul.mubr.bf16.gmra.mrb[0].mxu0 %v1009
        %v3530 = vpop.f32.mrb[0].mxu0
        %v3531 = vadd.f32 0.0, %v3530
        %v3532 = vpop.f32.mrb[0].mxu0
        %v3533 = vadd.f32 0.0, %v3532
        %v3534 = vpop.f32.mrb[0].mxu0
        %v3535 = vadd.f32 0.0, %v3534
        %v3536 = vpop.f32.mrb[0].mxu0
        %v3537 = vadd.f32 0.0, %v3536
        %3538 = vmatprep.mubr.bf16.mxu0 %v1012
        %3539 = vmatmul.mubr.bf16.gmra.mrb[0].mxu0 %v1011
        %v3540 = vpop.f32.mrb[0].mxu0
        %v3541 = vadd.f32 0.0, %v3540
        %v3542 = vpop.f32.mrb[0].mxu0
        %v3543 = vadd.f32 0.0, %v3542
        %v3544 = vpop.f32.mrb[0].mxu0
        %v3545 = vadd.f32 0.0, %v3544
        %v3546 = vpop.f32.mrb[0].mxu0
        %v3547 = vadd.f32 0.0, %v3546
        %3548 = vmatprep.mubr.bf16.mxu0 %v1014
        %3549 = vmatmul.mubr.bf16.gmra.mrb[0].mxu0 %v1013
        %v3550 = vpop.f32.mrb[0].mxu0
        %v3551 = vadd.f32 0.0, %v3550
        %v3552 = vpop.f32.mrb[0].mxu0
        %v3553 = vadd.f32 0.0, %v3552
        %v3554 = vpop.f32.mrb[0].mxu0
        %v3555 = vadd.f32 0.0, %v3554
        %v3556 = vpop.f32.mrb[0].mxu0
        %v3557 = vadd.f32 0.0, %v3556
        %3558 = vmatprep.mubr.bf16.mxu0 %v1016
        %3559 = vmatmul.mubr.bf16.gmra.mrb[0].mxu0 %v1015
        %v3560 = vpop.f32.mrb[0].mxu0
        %v3561 = vadd.f32 0.0, %v3560
        %v3562 = vpop.f32.mrb[0].mxu0
        %v3563 = vadd.f32 0.0, %v3562
        %v3564 = vpop.f32.mrb[0].mxu0
        %v3565 = vadd.f32 0.0, %v3564
        %v3566 = vpop.f32.mrb[0].mxu0
        %v3567 = vadd.f32 0.0, %v3566
        %3568 = vmatprep.mubr.bf16.mxu0 %v1018
        %3569 = vmatmul.mubr.bf16.gmra.mrb[0].mxu0 %v1017
        %v3570 = vpop.f32.mrb[0].mxu0
        %v3571 = vadd.f32 0.0, %v3570
        %v3572 = vpop.f32.mrb[0].mxu0
        %v3573 = vadd.f32 0.0, %v3572
        %v3574 = vpop.f32.mrb[0].mxu0
        %v3575 = vadd.f32 0.0, %v3574
        %v3576 = vpop.f32.mrb[0].mxu0
        %v3577 = vadd.f32 0.0, %v3576
        %3578 = vmatprep.mubr.bf16.mxu0 %v1020
        %3579 = vmatmul.mubr.bf16.gmra.mrb[0].mxu0 %v1019
        %v3580 = vpop.f32.mrb[0].mxu0
        %v3581 = vadd.f32 0.0, %v3580
        %v3582 = vpop.f32.mrb[0].mxu0
        %v3583 = vadd.f32 0.0, %v3582
        %v3584 = vpop.f32.mrb[0].mxu0
        %v3585 = vadd.f32 0.0, %v3584
        %v3586 = vpop.f32.mrb[0].mxu0
        %v3587 = vadd.f32 0.0, %v3586
        %3588 = vmatprep.mubr.bf16.mxu0 %v1022
        %3589 = vmatmul.mubr.bf16.gmra.mrb[0].mxu0 %v1021
        %v3590 = vpop.f32.mrb[0].mxu0
        %v3591 = vadd.f32 0.0, %v3590
        %v3592 = vpop.f32.mrb[0].mxu0
        %v3593 = vadd.f32 0.0, %v3592
        %v3594 = vpop.f32.mrb[0].mxu0
        %v3595 = vadd.f32 0.0, %v3594
        %v3596 = vpop.f32.mrb[0].mxu0
        %v3597 = vadd.f32 0.0, %v3596
        %3598 = vmatprep.mubr.bf16.mxu0 %v1024
        %3599 = vmatmul.mubr.bf16.gmra.mrb[0].mxu0 %v1023
        %v3600 = vpop.f32.mrb[0].mxu0
        %v3601 = vadd.f32 0.0, %v3600
        %v3602 = vpop.f32.mrb[0].mxu0
        %v3603 = vadd.f32 0.0, %v3602
        %v3604 = vpop.f32.mrb[0].mxu0
        %v3605 = vadd.f32 0.0, %v3604
        %v3606 = vpop.f32.mrb[0].mxu0
        %v3607 = vadd.f32 0.0, %v3606
        %3608 = vmatprep.mubr.bf16.mxu0 %v1026
        %3609 = vmatmul.mubr.bf16.gmra.mrb[0].mxu0 %v1025
        %v3610 = vpop.f32.mrb[0].mxu0
        %v3611 = vadd.f32 0.0, %v3610
        %v3612 = vpop.f32.mrb[0].mxu0
        %v3613 = vadd.f32 0.0, %v3612
        %v3614 = vpop.f32.mrb[0].mxu0
        %v3615 = vadd.f32 0.0, %v3614
        %v3616 = vpop.f32.mrb[0].mxu0
        %v3617 = vadd.f32 0.0, %v3616
        %3618 = vmatprep.mubr.bf16.mxu0 %v1028
        %3619 = vmatmul.mubr.bf16.gmra.mrb[0].mxu0 %v1027
        %v3620 = vpop.f32.mrb[0].mxu0
        %v3621 = vadd.f32 0.0, %v3620
        %v3622 = vpop.f32.mrb[0].mxu0
        %v3623 = vadd.f32 0.0, %v3622
        %v3624 = vpop.f32.mrb[0].mxu0
        %v3625 = vadd.f32 0.0, %v3624
        %v3626 = vpop.f32.mrb[0].mxu0
        %v3627 = vadd.f32 0.0, %v3626
        %3628 = vdwg.mxu0
        %v3629 = vmul.f32 %v3471, %v1321
        %v3630 = vmul.f32 %v3473, %v1321
        %v3631 = vmul.f32 %v3475, %v1326
        %v3632 = vmul.f32 %v3477, %v1326
        %v3633 = vmul.f32 %v3481, %v1331
        %v3634 = vmul.f32 %v3483, %v1331
        %v3635 = vmul.f32 %v3485, %v1336
        %v3636 = vmul.f32 %v3487, %v1336
        %v3637 = vmul.f32 %v3491, %v1341
        %v3638 = vmul.f32 %v3493, %v1341
        %v3639 = vmul.f32 %v3495, %v1346
        %v3640 = vmul.f32 %v3497, %v1346
        %v3641 = vmul.f32 %v3501, %v1351
        %v3642 = vmul.f32 %v3503, %v1351
        %v3643 = vmul.f32 %v3505, %v1356
        %v3644 = vmul.f32 %v3507, %v1356
        %v3645 = vmul.f32 %v3511, %v1361
        %v3646 = vmul.f32 %v3513, %v1361
        %v3647 = vmul.f32 %v3515, %v1366
        %v3648 = vmul.f32 %v3517, %v1366
        %v3649 = vmul.f32 %v3521, %v1371
        %v3650 = vmul.f32 %v3523, %v1371
        %v3651 = vmul.f32 %v3525, %v1376
        %v3652 = vmul.f32 %v3527, %v1376
        %v3653 = vmul.f32 %v3531, %v1381
        %v3654 = vmul.f32 %v3533, %v1381
        %v3655 = vmul.f32 %v3535, %v1386
        %v3656 = vmul.f32 %v3537, %v1386
        %v3657 = vmul.f32 %v3541, %v1391
        %v3658 = vmul.f32 %v3543, %v1391
        %v3659 = vmul.f32 %v3545, %v1396
        %v3660 = vmul.f32 %v3547, %v1396
        %v3661 = vmul.f32 %v3551, %v1401
        %v3662 = vmul.f32 %v3553, %v1401
        %v3663 = vmul.f32 %v3555, %v1406
        %v3664 = vmul.f32 %v3557, %v1406
        %v3665 = vmul.f32 %v3561, %v1411
        %v3666 = vmul.f32 %v3563, %v1411
        %v3667 = vmul.f32 %v3565, %v1416
        %v3668 = vmul.f32 %v3567, %v1416
        %v3669 = vmul.f32 %v3571, %v1421
        %v3670 = vmul.f32 %v3573, %v1421
        %v3671 = vmul.f32 %v3575, %v1426
        %v3672 = vmul.f32 %v3577, %v1426
        %v3673 = vmul.f32 %v3581, %v1431
        %v3674 = vmul.f32 %v3583, %v1431
        %v3675 = vmul.f32 %v3585, %v1436
        %v3676 = vmul.f32 %v3587, %v1436
        %v3677 = vmul.f32 %v3591, %v1441
        %v3678 = vmul.f32 %v3593, %v1441
        %v3679 = vmul.f32 %v3595, %v1446
        %v3680 = vmul.f32 %v3597, %v1446
        %v3681 = vmul.f32 %v3601, %v1451
        %v3682 = vmul.f32 %v3603, %v1451
        %v3683 = vmul.f32 %v3605, %v1456
        %v3684 = vmul.f32 %v3607, %v1456
        %v3685 = vmul.f32 %v3611, %v1461
        %v3686 = vmul.f32 %v3613, %v1461
        %v3687 = vmul.f32 %v3615, %v1466
        %v3688 = vmul.f32 %v3617, %v1466
        %v3689 = vmul.f32 %v3621, %v1471
        %v3690 = vmul.f32 %v3623, %v1471
        %v3691 = vmul.f32 %v3625, %v1476
        %v3692 = vmul.f32 %v3627, %v1476
        %v3693 = vpack.c.bf16 %v3631, %v3629
        %v3694 = vpack.c.bf16 %v3632, %v3630
        %v3695 = vpack.c.bf16 %v3635, %v3633
        %v3696 = vpack.c.bf16 %v3636, %v3634
        %v3697 = vpack.c.bf16 %v3639, %v3637
        %v3698 = vpack.c.bf16 %v3640, %v3638
        %v3699 = vpack.c.bf16 %v3643, %v3641
        %v3700 = vpack.c.bf16 %v3644, %v3642
        %v3701 = vpack.c.bf16 %v3647, %v3645
        %v3702 = vpack.c.bf16 %v3648, %v3646
        %v3703 = vpack.c.bf16 %v3651, %v3649
        %v3704 = vpack.c.bf16 %v3652, %v3650
        %v3705 = vpack.c.bf16 %v3655, %v3653
        %v3706 = vpack.c.bf16 %v3656, %v3654
        %v3707 = vpack.c.bf16 %v3659, %v3657
        %v3708 = vpack.c.bf16 %v3660, %v3658
        %v3709 = vpack.c.bf16 %v3663, %v3661
        %v3710 = vpack.c.bf16 %v3664, %v3662
        %v3711 = vpack.c.bf16 %v3667, %v3665
        %v3712 = vpack.c.bf16 %v3668, %v3666
        %v3713 = vpack.c.bf16 %v3671, %v3669
        %v3714 = vpack.c.bf16 %v3672, %v3670
        %v3715 = vpack.c.bf16 %v3675, %v3673
        %v3716 = vpack.c.bf16 %v3676, %v3674
        %v3717 = vpack.c.bf16 %v3679, %v3677
        %v3718 = vpack.c.bf16 %v3680, %v3678
        %v3719 = vpack.c.bf16 %v3683, %v3681
        %v3720 = vpack.c.bf16 %v3684, %v3682
        %v3721 = vpack.c.bf16 %v3687, %v3685
        %v3722 = vpack.c.bf16 %v3688, %v3686
        %v3723 = vpack.c.bf16 %v3691, %v3689
        %v3724 = vpack.c.bf16 %v3692, %v3690
        %v3725 = vld [vmem:[#allocation5] sm:$0xff]
        %v3726 = vld [vmem:[#allocation5 + $0x8] sm:$0xff]
        %v3727 = vld [vmem:[#allocation5 + $0x10] sm:$0xff]
        %v3728 = vld [vmem:[#allocation5 + $0x18] sm:$0xff]
        %v3729 = vld [vmem:[#allocation5 + $0x20] sm:$0xff]
        %v3730 = vld [vmem:[#allocation5 + $0x28] sm:$0xff]
        %v3731 = vld [vmem:[#allocation5 + $0x30] sm:$0xff]
        %v3732 = vld [vmem:[#allocation5 + $0x38] sm:$0xff]
        %v3733 = vld [vmem:[#allocation5 + $0x40] sm:$0xff]
        %v3734 = vld [vmem:[#allocation5 + $0x48] sm:$0xff]
        %v3735 = vld [vmem:[#allocation5 + $0x50] sm:$0xff]
        %v3736 = vld [vmem:[#allocation5 + $0x58] sm:$0xff]
        %v3737 = vld [vmem:[#allocation5 + $0x60] sm:$0xff]
        %v3738 = vld [vmem:[#allocation5 + $0x68] sm:$0xff]
        %v3739 = vld [vmem:[#allocation5 + $0x70] sm:$0xff]
        %v3740 = vld [vmem:[#allocation5 + $0x78] sm:$0xff]
        %v3741 = vld [vmem:[#allocation5 + $0x80] sm:$0xff]
        %v3742 = vld [vmem:[#allocation5 + $0x88] sm:$0xff]
        %v3743 = vld [vmem:[#allocation5 + $0x90] sm:$0xff]
        %v3744 = vld [vmem:[#allocation5 + $0x98] sm:$0xff]
        %v3745 = vld [vmem:[#allocation5 + $0xa0] sm:$0xff]
        %v3746 = vld [vmem:[#allocation5 + $0xa8] sm:$0xff]
        %v3747 = vld [vmem:[#allocation5 + $0xb0] sm:$0xff]
        %v3748 = vld [vmem:[#allocation5 + $0xb8] sm:$0xff]
        %v3749 = vld [vmem:[#allocation5 + $0xc0] sm:$0xff]
        %v3750 = vld [vmem:[#allocation5 + $0xc8] sm:$0xff]
        %v3751 = vld [vmem:[#allocation5 + $0xd0] sm:$0xff]
        %v3752 = vld [vmem:[#allocation5 + $0xd8] sm:$0xff]
        %v3753 = vld [vmem:[#allocation5 + $0xe0] sm:$0xff]
        %v3754 = vld [vmem:[#allocation5 + $0xe8] sm:$0xff]
        %v3755 = vld [vmem:[#allocation5 + $0xf0] sm:$0xff]
        %v3756 = vld [vmem:[#allocation5 + $0xf8] sm:$0xff]
        %v3757 = vld [vmem:[#allocation7] sm:$0xff]
        %v3758 = vld [vmem:[#allocation7 + $0x8] sm:$0xff]
        %v3759 = vld [vmem:[#allocation7 + $0x10] sm:$0xff]
        %v3760 = vld [vmem:[#allocation7 + $0x18] sm:$0xff]
        %v3761 = vld [vmem:[#allocation7 + $0x20] sm:$0xff]
        %v3762 = vld [vmem:[#allocation7 + $0x28] sm:$0xff]
        %v3763 = vld [vmem:[#allocation7 + $0x30] sm:$0xff]
        %v3764 = vld [vmem:[#allocation7 + $0x38] sm:$0xff]
        %v3765 = vld [vmem:[#allocation7 + $0x40] sm:$0xff]
        %v3766 = vld [vmem:[#allocation7 + $0x48] sm:$0xff]
        %v3767 = vld [vmem:[#allocation7 + $0x50] sm:$0xff]
        %v3768 = vld [vmem:[#allocation7 + $0x58] sm:$0xff]
        %v3769 = vld [vmem:[#allocation7 + $0x60] sm:$0xff]
        %v3770 = vld [vmem:[#allocation7 + $0x68] sm:$0xff]
        %v3771 = vld [vmem:[#allocation7 + $0x70] sm:$0xff]
        %v3772 = vld [vmem:[#allocation7 + $0x78] sm:$0xff]
        %v3773 = vld [vmem:[#allocation7 + $0x80] sm:$0xff]
        %v3774 = vld [vmem:[#allocation7 + $0x88] sm:$0xff]
        %v3775 = vld [vmem:[#allocation7 + $0x90] sm:$0xff]
        %v3776 = vld [vmem:[#allocation7 + $0x98] sm:$0xff]
        %v3777 = vld [vmem:[#allocation7 + $0xa0] sm:$0xff]
        %v3778 = vld [vmem:[#allocation7 + $0xa8] sm:$0xff]
        %v3779 = vld [vmem:[#allocation7 + $0xb0] sm:$0xff]
        %v3780 = vld [vmem:[#allocation7 + $0xb8] sm:$0xff]
        %v3781 = vld [vmem:[#allocation7 + $0xc0] sm:$0xff]
        %v3782 = vld [vmem:[#allocation7 + $0xc8] sm:$0xff]
        %v3783 = vld [vmem:[#allocation7 + $0xd0] sm:$0xff]
        %v3784 = vld [vmem:[#allocation7 + $0xd8] sm:$0xff]
        %v3785 = vld [vmem:[#allocation7 + $0xe0] sm:$0xff]
        %v3786 = vld [vmem:[#allocation7 + $0xe8] sm:$0xff]
        %v3787 = vld [vmem:[#allocation7 + $0xf0] sm:$0xff]
        %v3788 = vld [vmem:[#allocation7 + $0xf8] sm:$0xff]
        %v3821 = vunpack.c.l.b16 %v3757
        %v3822 = vunpack.c.h.b16 %v3757
        %v3823 = vunpack.c.l.b16 %v3758
        %v3824 = vunpack.c.h.b16 %v3758
        %v3825 = vunpack.c.l.b16 %v3759
        %v3826 = vunpack.c.h.b16 %v3759
        %v3827 = vunpack.c.l.b16 %v3760
        %v3828 = vunpack.c.h.b16 %v3760
        %v3829 = vunpack.c.l.b16 %v3761
        %v3830 = vunpack.c.h.b16 %v3761
        %v3831 = vunpack.c.l.b16 %v3762
        %v3832 = vunpack.c.h.b16 %v3762
        %v3833 = vunpack.c.l.b16 %v3763
        %v3834 = vunpack.c.h.b16 %v3763
        %v3835 = vunpack.c.l.b16 %v3764
        %v3836 = vunpack.c.h.b16 %v3764
        %v3837 = vunpack.c.l.b16 %v3765
        %v3838 = vunpack.c.h.b16 %v3765
        %v3839 = vunpack.c.l.b16 %v3766
        %v3840 = vunpack.c.h.b16 %v3766
        %v3841 = vunpack.c.l.b16 %v3767
        %v3842 = vunpack.c.h.b16 %v3767
        %v3843 = vunpack.c.l.b16 %v3768
        %v3844 = vunpack.c.h.b16 %v3768
        %v3845 = vunpack.c.l.b16 %v3769
        %v3846 = vunpack.c.h.b16 %v3769
        %v3847 = vunpack.c.l.b16 %v3770
        %v3848 = vunpack.c.h.b16 %v3770
        %v3849 = vunpack.c.l.b16 %v3771
        %v3850 = vunpack.c.h.b16 %v3771
        %v3851 = vunpack.c.l.b16 %v3772
        %v3852 = vunpack.c.h.b16 %v3772
        %v3853 = vunpack.c.l.b16 %v3773
        %v3854 = vunpack.c.h.b16 %v3773
        %v3855 = vunpack.c.l.b16 %v3774
        %v3856 = vunpack.c.h.b16 %v3774
        %v3857 = vunpack.c.l.b16 %v3775
        %v3858 = vunpack.c.h.b16 %v3775
        %v3859 = vunpack.c.l.b16 %v3776
        %v3860 = vunpack.c.h.b16 %v3776
        %v3861 = vunpack.c.l.b16 %v3777
        %v3862 = vunpack.c.h.b16 %v3777
        %v3863 = vunpack.c.l.b16 %v3778
        %v3864 = vunpack.c.h.b16 %v3778
        %v3865 = vunpack.c.l.b16 %v3779
        %v3866 = vunpack.c.h.b16 %v3779
        %v3867 = vunpack.c.l.b16 %v3780
        %v3868 = vunpack.c.h.b16 %v3780
        %v3869 = vunpack.c.l.b16 %v3781
        %v3870 = vunpack.c.h.b16 %v3781
        %v3871 = vunpack.c.l.b16 %v3782
        %v3872 = vunpack.c.h.b16 %v3782
        %v3873 = vunpack.c.l.b16 %v3783
        %v3874 = vunpack.c.h.b16 %v3783
        %v3875 = vunpack.c.l.b16 %v3784
        %v3876 = vunpack.c.h.b16 %v3784
        %v3877 = vunpack.c.l.b16 %v3785
        %v3878 = vunpack.c.h.b16 %v3785
        %v3879 = vunpack.c.l.b16 %v3786
        %v3880 = vunpack.c.h.b16 %v3786
        %v3881 = vunpack.c.l.b16 %v3787
        %v3882 = vunpack.c.h.b16 %v3787
        %v3883 = vunpack.c.l.b16 %v3788
        %v3884 = vunpack.c.h.b16 %v3788
        %v3885 = vpack.c.b16 %v3823, %v3821
        %v3886 = vpack.c.b16 %v3824, %v3822
        %v3887 = vpack.c.b16 %v3827, %v3825
        %v3888 = vpack.c.b16 %v3828, %v3826
        %v3889 = vpack.c.b16 %v3831, %v3829
        %v3890 = vpack.c.b16 %v3832, %v3830
        %v3891 = vpack.c.b16 %v3835, %v3833
        %v3892 = vpack.c.b16 %v3836, %v3834
        %v3893 = vpack.c.b16 %v3839, %v3837
        %v3894 = vpack.c.b16 %v3840, %v3838
        %v3895 = vpack.c.b16 %v3843, %v3841
        %v3896 = vpack.c.b16 %v3844, %v3842
        %v3897 = vpack.c.b16 %v3847, %v3845
        %v3898 = vpack.c.b16 %v3848, %v3846
        %v3899 = vpack.c.b16 %v3851, %v3849
        %v3900 = vpack.c.b16 %v3852, %v3850
        %v3901 = vpack.c.b16 %v3855, %v3853
        %v3902 = vpack.c.b16 %v3856, %v3854
        %v3903 = vpack.c.b16 %v3859, %v3857
        %v3904 = vpack.c.b16 %v3860, %v3858
        %v3905 = vpack.c.b16 %v3863, %v3861
        %v3906 = vpack.c.b16 %v3864, %v3862
        %v3907 = vpack.c.b16 %v3867, %v3865
        %v3908 = vpack.c.b16 %v3868, %v3866
        %v3909 = vpack.c.b16 %v3871, %v3869
        %v3910 = vpack.c.b16 %v3872, %v3870
        %v3911 = vpack.c.b16 %v3875, %v3873
        %v3912 = vpack.c.b16 %v3876, %v3874
        %v3913 = vpack.c.b16 %v3879, %v3877
        %v3914 = vpack.c.b16 %v3880, %v3878
        %v3915 = vpack.c.b16 %v3883, %v3881
        %v3916 = vpack.c.b16 %v3884, %v3882
        %3949 = vmatprep.subr.bf16.mxu0 %v3886
        %3950 = vmatpush1.bf16.msra.mxu0 %v3885
        %3951 = vmatprep.subr.bf16.mxu0 %v3888
        %3952 = vmatpush1.bf16.msra.mxu0 %v3887
        %3953 = vmatprep.subr.bf16.mxu0 %v3890
        %3954 = vmatpush1.bf16.msra.mxu0 %v3889
        %3955 = vmatprep.subr.bf16.mxu0 %v3892
        %3956 = vmatpush1.bf16.msra.mxu0 %v3891
        %3957 = vmatprep.subr.bf16.mxu0 %v3894
        %3958 = vmatpush1.bf16.msra.mxu0 %v3893
        %3959 = vmatprep.subr.bf16.mxu0 %v3896
        %3960 = vmatpush1.bf16.msra.mxu0 %v3895
        %3961 = vmatprep.subr.bf16.mxu0 %v3898
        %3962 = vmatpush1.bf16.msra.mxu0 %v3897
        %3963 = vmatprep.subr.bf16.mxu0 %v3900
        %3964 = vmatpush1.bf16.msra.mxu0 %v3899
        %3965 = vmatprep.subr.bf16.mxu0 %v3902
        %3966 = vmatpush1.bf16.msra.mxu0 %v3901
        %3967 = vmatprep.subr.bf16.mxu0 %v3904
        %3968 = vmatpush1.bf16.msra.mxu0 %v3903
        %3969 = vmatprep.subr.bf16.mxu0 %v3906
        %3970 = vmatpush1.bf16.msra.mxu0 %v3905
        %3971 = vmatprep.subr.bf16.mxu0 %v3908
        %3972 = vmatpush1.bf16.msra.mxu0 %v3907
        %3973 = vmatprep.subr.bf16.mxu0 %v3910
        %3974 = vmatpush1.bf16.msra.mxu0 %v3909
        %3975 = vmatprep.subr.bf16.mxu0 %v3912
        %3976 = vmatpush1.bf16.msra.mxu0 %v3911
        %3977 = vmatprep.subr.bf16.mxu0 %v3914
        %3978 = vmatpush1.bf16.msra.mxu0 %v3913
        %3979 = vmatprep.subr.bf16.mxu0 %v3916
        %3980 = vmatpush1.bf16.msra.mxu0 %v3915
        %3981 = vmatprep.mubr.bf16.mxu0 %v3405
        %3982 = vmatmul.mubr.bf16.gmra.mrb[0].mxu0 %v3404
        %v3983 = vpop.f32.mrb[0].mxu0
        %v3984 = vadd.f32 0.0, %v3983
        %v3985 = vpop.f32.mrb[0].mxu0
        %v3986 = vadd.f32 0.0, %v3985
        %v3987 = vpop.f32.mrb[0].mxu0
        %v3988 = vadd.f32 0.0, %v3987
        %v3989 = vpop.f32.mrb[0].mxu0
        %v3990 = vadd.f32 0.0, %v3989
        %3991 = vmatprep.mubr.bf16.mxu0 %v3407
        %3992 = vmatmul.mubr.bf16.gmra.mrb[0].mxu0 %v3406
        %v3993 = vpop.f32.mrb[0].mxu0
        %v3994 = vadd.f32 0.0, %v3993
        %v3995 = vpop.f32.mrb[0].mxu0
        %v3996 = vadd.f32 0.0, %v3995
        %v3997 = vpop.f32.mrb[0].mxu0
        %v3998 = vadd.f32 0.0, %v3997
        %v3999 = vpop.f32.mrb[0].mxu0
        %v4000 = vadd.f32 0.0, %v3999
        %4001 = vmatprep.mubr.bf16.mxu0 %v3409
        %4002 = vmatmul.mubr.bf16.gmra.mrb[0].mxu0 %v3408
        %v4003 = vpop.f32.mrb[0].mxu0
        %v4004 = vadd.f32 0.0, %v4003
        %v4005 = vpop.f32.mrb[0].mxu0
        %v4006 = vadd.f32 0.0, %v4005
        %v4007 = vpop.f32.mrb[0].mxu0
        %v4008 = vadd.f32 0.0, %v4007
        %v4009 = vpop.f32.mrb[0].mxu0
        %v4010 = vadd.f32 0.0, %v4009
        %4011 = vmatprep.mubr.bf16.mxu0 %v3411
        %4012 = vmatmul.mubr.bf16.gmra.mrb[0].mxu0 %v3410
        %v4013 = vpop.f32.mrb[0].mxu0
        %v4014 = vadd.f32 0.0, %v4013
        %v4015 = vpop.f32.mrb[0].mxu0
        %v4016 = vadd.f32 0.0, %v4015
        %v4017 = vpop.f32.mrb[0].mxu0
        %v4018 = vadd.f32 0.0, %v4017
        %v4019 = vpop.f32.mrb[0].mxu0
        %v4020 = vadd.f32 0.0, %v4019
        %4021 = vmatprep.mubr.bf16.mxu0 %v3413
        %4022 = vmatmul.mubr.bf16.gmra.mrb[0].mxu0 %v3412
        %v4023 = vpop.f32.mrb[0].mxu0
        %v4024 = vadd.f32 0.0, %v4023
        %v4025 = vpop.f32.mrb[0].mxu0
        %v4026 = vadd.f32 0.0, %v4025
        %v4027 = vpop.f32.mrb[0].mxu0
        %v4028 = vadd.f32 0.0, %v4027
        %v4029 = vpop.f32.mrb[0].mxu0
        %v4030 = vadd.f32 0.0, %v4029
        %4031 = vmatprep.mubr.bf16.mxu0 %v3415
        %4032 = vmatmul.mubr.bf16.gmra.mrb[0].mxu0 %v3414
        %v4033 = vpop.f32.mrb[0].mxu0
        %v4034 = vadd.f32 0.0, %v4033
        %v4035 = vpop.f32.mrb[0].mxu0
        %v4036 = vadd.f32 0.0, %v4035
        %v4037 = vpop.f32.mrb[0].mxu0
        %v4038 = vadd.f32 0.0, %v4037
        %v4039 = vpop.f32.mrb[0].mxu0
        %v4040 = vadd.f32 0.0, %v4039
        %4041 = vmatprep.mubr.bf16.mxu0 %v3417
        %4042 = vmatmul.mubr.bf16.gmra.mrb[0].mxu0 %v3416
        %v4043 = vpop.f32.mrb[0].mxu0
        %v4044 = vadd.f32 0.0, %v4043
        %v4045 = vpop.f32.mrb[0].mxu0
        %v4046 = vadd.f32 0.0, %v4045
        %v4047 = vpop.f32.mrb[0].mxu0
        %v4048 = vadd.f32 0.0, %v4047
        %v4049 = vpop.f32.mrb[0].mxu0
        %v4050 = vadd.f32 0.0, %v4049
        %4051 = vmatprep.mubr.bf16.mxu0 %v3419
        %4052 = vmatmul.mubr.bf16.gmra.mrb[0].mxu0 %v3418
        %v4053 = vpop.f32.mrb[0].mxu0
        %v4054 = vadd.f32 0.0, %v4053
        %v4055 = vpop.f32.mrb[0].mxu0
        %v4056 = vadd.f32 0.0, %v4055
        %v4057 = vpop.f32.mrb[0].mxu0
        %v4058 = vadd.f32 0.0, %v4057
        %v4059 = vpop.f32.mrb[0].mxu0
        %v4060 = vadd.f32 0.0, %v4059
        %4061 = vmatprep.mubr.bf16.mxu0 %v3421
        %4062 = vmatmul.mubr.bf16.gmra.mrb[0].mxu0 %v3420
        %v4063 = vpop.f32.mrb[0].mxu0
        %v4064 = vadd.f32 0.0, %v4063
        %v4065 = vpop.f32.mrb[0].mxu0
        %v4066 = vadd.f32 0.0, %v4065
        %v4067 = vpop.f32.mrb[0].mxu0
        %v4068 = vadd.f32 0.0, %v4067
        %v4069 = vpop.f32.mrb[0].mxu0
        %v4070 = vadd.f32 0.0, %v4069
        %4071 = vmatprep.mubr.bf16.mxu0 %v3423
        %4072 = vmatmul.mubr.bf16.gmra.mrb[0].mxu0 %v3422
        %v4073 = vpop.f32.mrb[0].mxu0
        %v4074 = vadd.f32 0.0, %v4073
        %v4075 = vpop.f32.mrb[0].mxu0
        %v4076 = vadd.f32 0.0, %v4075
        %v4077 = vpop.f32.mrb[0].mxu0
        %v4078 = vadd.f32 0.0, %v4077
        %v4079 = vpop.f32.mrb[0].mxu0
        %v4080 = vadd.f32 0.0, %v4079
        %4081 = vmatprep.mubr.bf16.mxu0 %v3425
        %4082 = vmatmul.mubr.bf16.gmra.mrb[0].mxu0 %v3424
        %v4083 = vpop.f32.mrb[0].mxu0
        %v4084 = vadd.f32 0.0, %v4083
        %v4085 = vpop.f32.mrb[0].mxu0
        %v4086 = vadd.f32 0.0, %v4085
        %v4087 = vpop.f32.mrb[0].mxu0
        %v4088 = vadd.f32 0.0, %v4087
        %v4089 = vpop.f32.mrb[0].mxu0
        %v4090 = vadd.f32 0.0, %v4089
        %4091 = vmatprep.mubr.bf16.mxu0 %v3427
        %4092 = vmatmul.mubr.bf16.gmra.mrb[0].mxu0 %v3426
        %v4093 = vpop.f32.mrb[0].mxu0
        %v4094 = vadd.f32 0.0, %v4093
        %v4095 = vpop.f32.mrb[0].mxu0
        %v4096 = vadd.f32 0.0, %v4095
        %v4097 = vpop.f32.mrb[0].mxu0
        %v4098 = vadd.f32 0.0, %v4097
        %v4099 = vpop.f32.mrb[0].mxu0
        %v4100 = vadd.f32 0.0, %v4099
        %4101 = vmatprep.mubr.bf16.mxu0 %v3429
        %4102 = vmatmul.mubr.bf16.gmra.mrb[0].mxu0 %v3428
        %v4103 = vpop.f32.mrb[0].mxu0
        %v4104 = vadd.f32 0.0, %v4103
        %v4105 = vpop.f32.mrb[0].mxu0
        %v4106 = vadd.f32 0.0, %v4105
        %v4107 = vpop.f32.mrb[0].mxu0
        %v4108 = vadd.f32 0.0, %v4107
        %v4109 = vpop.f32.mrb[0].mxu0
        %v4110 = vadd.f32 0.0, %v4109
        %4111 = vmatprep.mubr.bf16.mxu0 %v3431
        %4112 = vmatmul.mubr.bf16.gmra.mrb[0].mxu0 %v3430
        %v4113 = vpop.f32.mrb[0].mxu0
        %v4114 = vadd.f32 0.0, %v4113
        %v4115 = vpop.f32.mrb[0].mxu0
        %v4116 = vadd.f32 0.0, %v4115
        %v4117 = vpop.f32.mrb[0].mxu0
        %v4118 = vadd.f32 0.0, %v4117
        %v4119 = vpop.f32.mrb[0].mxu0
        %v4120 = vadd.f32 0.0, %v4119
        %4121 = vmatprep.mubr.bf16.mxu0 %v3433
        %4122 = vmatmul.mubr.bf16.gmra.mrb[0].mxu0 %v3432
        %v4123 = vpop.f32.mrb[0].mxu0
        %v4124 = vadd.f32 0.0, %v4123
        %v4125 = vpop.f32.mrb[0].mxu0
        %v4126 = vadd.f32 0.0, %v4125
        %v4127 = vpop.f32.mrb[0].mxu0
        %v4128 = vadd.f32 0.0, %v4127
        %v4129 = vpop.f32.mrb[0].mxu0
        %v4130 = vadd.f32 0.0, %v4129
        %4131 = vmatprep.mubr.bf16.mxu0 %v3435
        %4132 = vmatmul.mubr.bf16.gmra.mrb[0].mxu0 %v3434
        %v4133 = vpop.f32.mrb[0].mxu0
        %v4134 = vadd.f32 0.0, %v4133
        %v4135 = vpop.f32.mrb[0].mxu0
        %v4136 = vadd.f32 0.0, %v4135
        %v4137 = vpop.f32.mrb[0].mxu0
        %v4138 = vadd.f32 0.0, %v4137
        %v4139 = vpop.f32.mrb[0].mxu0
        %v4140 = vadd.f32 0.0, %v4139
        %4141 = vdwg.mxu0
        %v4174 = vunpack.c.l.b16 %v3725
        %v4175 = vunpack.c.h.b16 %v3725
        %v4176 = vunpack.c.l.b16 %v3726
        %v4177 = vunpack.c.h.b16 %v3726
        %v4178 = vunpack.c.l.b16 %v3727
        %v4179 = vunpack.c.h.b16 %v3727
        %v4180 = vunpack.c.l.b16 %v3728
        %v4181 = vunpack.c.h.b16 %v3728
        %v4182 = vunpack.c.l.b16 %v3729
        %v4183 = vunpack.c.h.b16 %v3729
        %v4184 = vunpack.c.l.b16 %v3730
        %v4185 = vunpack.c.h.b16 %v3730
        %v4186 = vunpack.c.l.b16 %v3731
        %v4187 = vunpack.c.h.b16 %v3731
        %v4188 = vunpack.c.l.b16 %v3732
        %v4189 = vunpack.c.h.b16 %v3732
        %v4190 = vunpack.c.l.b16 %v3733
        %v4191 = vunpack.c.h.b16 %v3733
        %v4192 = vunpack.c.l.b16 %v3734
        %v4193 = vunpack.c.h.b16 %v3734
        %v4194 = vunpack.c.l.b16 %v3735
        %v4195 = vunpack.c.h.b16 %v3735
        %v4196 = vunpack.c.l.b16 %v3736
        %v4197 = vunpack.c.h.b16 %v3736
        %v4198 = vunpack.c.l.b16 %v3737
        %v4199 = vunpack.c.h.b16 %v3737
        %v4200 = vunpack.c.l.b16 %v3738
        %v4201 = vunpack.c.h.b16 %v3738
        %v4202 = vunpack.c.l.b16 %v3739
        %v4203 = vunpack.c.h.b16 %v3739
        %v4204 = vunpack.c.l.b16 %v3740
        %v4205 = vunpack.c.h.b16 %v3740
        %v4206 = vunpack.c.l.b16 %v3741
        %v4207 = vunpack.c.h.b16 %v3741
        %v4208 = vunpack.c.l.b16 %v3742
        %v4209 = vunpack.c.h.b16 %v3742
        %v4210 = vunpack.c.l.b16 %v3743
        %v4211 = vunpack.c.h.b16 %v3743
        %v4212 = vunpack.c.l.b16 %v3744
        %v4213 = vunpack.c.h.b16 %v3744
        %v4214 = vunpack.c.l.b16 %v3745
        %v4215 = vunpack.c.h.b16 %v3745
        %v4216 = vunpack.c.l.b16 %v3746
        %v4217 = vunpack.c.h.b16 %v3746
        %v4218 = vunpack.c.l.b16 %v3747
        %v4219 = vunpack.c.h.b16 %v3747
        %v4220 = vunpack.c.l.b16 %v3748
        %v4221 = vunpack.c.h.b16 %v3748
        %v4222 = vunpack.c.l.b16 %v3749
        %v4223 = vunpack.c.h.b16 %v3749
        %v4224 = vunpack.c.l.b16 %v3750
        %v4225 = vunpack.c.h.b16 %v3750
        %v4226 = vunpack.c.l.b16 %v3751
        %v4227 = vunpack.c.h.b16 %v3751
        %v4228 = vunpack.c.l.b16 %v3752
        %v4229 = vunpack.c.h.b16 %v3752
        %v4230 = vunpack.c.l.b16 %v3753
        %v4231 = vunpack.c.h.b16 %v3753
        %v4232 = vunpack.c.l.b16 %v3754
        %v4233 = vunpack.c.h.b16 %v3754
        %v4234 = vunpack.c.l.b16 %v3755
        %v4235 = vunpack.c.h.b16 %v3755
        %v4236 = vunpack.c.l.b16 %v3756
        %v4237 = vunpack.c.h.b16 %v3756
        %v4238 = vpack.c.b16 %v4176, %v4174
        %v4239 = vpack.c.b16 %v4177, %v4175
        %v4240 = vpack.c.b16 %v4180, %v4178
        %v4241 = vpack.c.b16 %v4181, %v4179
        %v4242 = vpack.c.b16 %v4184, %v4182
        %v4243 = vpack.c.b16 %v4185, %v4183
        %v4244 = vpack.c.b16 %v4188, %v4186
        %v4245 = vpack.c.b16 %v4189, %v4187
        %v4246 = vpack.c.b16 %v4192, %v4190
        %v4247 = vpack.c.b16 %v4193, %v4191
        %v4248 = vpack.c.b16 %v4196, %v4194
        %v4249 = vpack.c.b16 %v4197, %v4195
        %v4250 = vpack.c.b16 %v4200, %v4198
        %v4251 = vpack.c.b16 %v4201, %v4199
        %v4252 = vpack.c.b16 %v4204, %v4202
        %v4253 = vpack.c.b16 %v4205, %v4203
        %v4254 = vpack.c.b16 %v4208, %v4206
        %v4255 = vpack.c.b16 %v4209, %v4207
        %v4256 = vpack.c.b16 %v4212, %v4210
        %v4257 = vpack.c.b16 %v4213, %v4211
        %v4258 = vpack.c.b16 %v4216, %v4214
        %v4259 = vpack.c.b16 %v4217, %v4215
        %v4260 = vpack.c.b16 %v4220, %v4218
        %v4261 = vpack.c.b16 %v4221, %v4219
        %v4262 = vpack.c.b16 %v4224, %v4222
        %v4263 = vpack.c.b16 %v4225, %v4223
        %v4264 = vpack.c.b16 %v4228, %v4226
        %v4265 = vpack.c.b16 %v4229, %v4227
        %v4266 = vpack.c.b16 %v4232, %v4230
        %v4267 = vpack.c.b16 %v4233, %v4231
        %v4268 = vpack.c.b16 %v4236, %v4234
        %v4269 = vpack.c.b16 %v4237, %v4235
        %4302 = vmatprep.subr.bf16.mxu0 %v4239
        %4303 = vmatpush1.bf16.msra.mxu0 %v4238
        %4304 = vmatprep.subr.bf16.mxu0 %v4241
        %4305 = vmatpush1.bf16.msra.mxu0 %v4240
        %4306 = vmatprep.subr.bf16.mxu0 %v4243
        %4307 = vmatpush1.bf16.msra.mxu0 %v4242
        %4308 = vmatprep.subr.bf16.mxu0 %v4245
        %4309 = vmatpush1.bf16.msra.mxu0 %v4244
        %4310 = vmatprep.subr.bf16.mxu0 %v4247
        %4311 = vmatpush1.bf16.msra.mxu0 %v4246
        %4312 = vmatprep.subr.bf16.mxu0 %v4249
        %4313 = vmatpush1.bf16.msra.mxu0 %v4248
        %4314 = vmatprep.subr.bf16.mxu0 %v4251
        %4315 = vmatpush1.bf16.msra.mxu0 %v4250
        %4316 = vmatprep.subr.bf16.mxu0 %v4253
        %4317 = vmatpush1.bf16.msra.mxu0 %v4252
        %4318 = vmatprep.subr.bf16.mxu0 %v4255
        %4319 = vmatpush1.bf16.msra.mxu0 %v4254
        %4320 = vmatprep.subr.bf16.mxu0 %v4257
        %4321 = vmatpush1.bf16.msra.mxu0 %v4256
        %4322 = vmatprep.subr.bf16.mxu0 %v4259
        %4323 = vmatpush1.bf16.msra.mxu0 %v4258
        %4324 = vmatprep.subr.bf16.mxu0 %v4261
        %4325 = vmatpush1.bf16.msra.mxu0 %v4260
        %4326 = vmatprep.subr.bf16.mxu0 %v4263
        %4327 = vmatpush1.bf16.msra.mxu0 %v4262
        %4328 = vmatprep.subr.bf16.mxu0 %v4265
        %4329 = vmatpush1.bf16.msra.mxu0 %v4264
        %4330 = vmatprep.subr.bf16.mxu0 %v4267
        %4331 = vmatpush1.bf16.msra.mxu0 %v4266
        %4332 = vmatprep.subr.bf16.mxu0 %v4269
        %4333 = vmatpush1.bf16.msra.mxu0 %v4268
        %4334 = vmatprep.mubr.bf16.mxu0 %v3694
        %4335 = vmatmul.mubr.bf16.gmra.mrb[0].mxu0 %v3693
        %v4336 = vpop.f32.mrb[0].mxu0
        %v4337 = vadd.f32 %v3984, %v4336
        %v4338 = vpop.f32.mrb[0].mxu0
        %v4339 = vadd.f32 %v3986, %v4338
        %v4340 = vpop.f32.mrb[0].mxu0
        %v4341 = vadd.f32 %v3988, %v4340
        %v4342 = vpop.f32.mrb[0].mxu0
        %v4343 = vadd.f32 %v3990, %v4342
        %4344 = vmatprep.mubr.bf16.mxu0 %v3696
        %4345 = vmatmul.mubr.bf16.gmra.mrb[0].mxu0 %v3695
        %v4346 = vpop.f32.mrb[0].mxu0
        %v4347 = vadd.f32 %v3994, %v4346
        %v4348 = vpop.f32.mrb[0].mxu0
        %v4349 = vadd.f32 %v3996, %v4348
        %v4350 = vpop.f32.mrb[0].mxu0
        %v4351 = vadd.f32 %v3998, %v4350
        %v4352 = vpop.f32.mrb[0].mxu0
        %v4353 = vadd.f32 %v4000, %v4352
        %4354 = vmatprep.mubr.bf16.mxu0 %v3698
        %4355 = vmatmul.mubr.bf16.gmra.mrb[0].mxu0 %v3697
        %v4356 = vpop.f32.mrb[0].mxu0
        %v4357 = vadd.f32 %v4004, %v4356
        %v4358 = vpop.f32.mrb[0].mxu0
        %v4359 = vadd.f32 %v4006, %v4358
        %v4360 = vpop.f32.mrb[0].mxu0
        %v4361 = vadd.f32 %v4008, %v4360
        %v4362 = vpop.f32.mrb[0].mxu0
        %v4363 = vadd.f32 %v4010, %v4362
        %4364 = vmatprep.mubr.bf16.mxu0 %v3700
        %4365 = vmatmul.mubr.bf16.gmra.mrb[0].mxu0 %v3699
        %v4366 = vpop.f32.mrb[0].mxu0
        %v4367 = vadd.f32 %v4014, %v4366
        %v4368 = vpop.f32.mrb[0].mxu0
        %v4369 = vadd.f32 %v4016, %v4368
        %v4370 = vpop.f32.mrb[0].mxu0
        %v4371 = vadd.f32 %v4018, %v4370
        %v4372 = vpop.f32.mrb[0].mxu0
        %v4373 = vadd.f32 %v4020, %v4372
        %4374 = vmatprep.mubr.bf16.mxu0 %v3702
        %4375 = vmatmul.mubr.bf16.gmra.mrb[0].mxu0 %v3701
        %v4376 = vpop.f32.mrb[0].mxu0
        %v4377 = vadd.f32 %v4024, %v4376
        %v4378 = vpop.f32.mrb[0].mxu0
        %v4379 = vadd.f32 %v4026, %v4378
        %v4380 = vpop.f32.mrb[0].mxu0
        %v4381 = vadd.f32 %v4028, %v4380
        %v4382 = vpop.f32.mrb[0].mxu0
        %v4383 = vadd.f32 %v4030, %v4382
        %4384 = vmatprep.mubr.bf16.mxu0 %v3704
        %4385 = vmatmul.mubr.bf16.gmra.mrb[0].mxu0 %v3703
        %v4386 = vpop.f32.mrb[0].mxu0
        %v4387 = vadd.f32 %v4034, %v4386
        %v4388 = vpop.f32.mrb[0].mxu0
        %v4389 = vadd.f32 %v4036, %v4388
        %v4390 = vpop.f32.mrb[0].mxu0
        %v4391 = vadd.f32 %v4038, %v4390
        %v4392 = vpop.f32.mrb[0].mxu0
        %v4393 = vadd.f32 %v4040, %v4392
        %4394 = vmatprep.mubr.bf16.mxu0 %v3706
        %4395 = vmatmul.mubr.bf16.gmra.mrb[0].mxu0 %v3705
        %v4396 = vpop.f32.mrb[0].mxu0
        %v4397 = vadd.f32 %v4044, %v4396
        %v4398 = vpop.f32.mrb[0].mxu0
        %v4399 = vadd.f32 %v4046, %v4398
        %v4400 = vpop.f32.mrb[0].mxu0
        %v4401 = vadd.f32 %v4048, %v4400
        %v4402 = vpop.f32.mrb[0].mxu0
        %v4403 = vadd.f32 %v4050, %v4402
        %4404 = vmatprep.mubr.bf16.mxu0 %v3708
        %4405 = vmatmul.mubr.bf16.gmra.mrb[0].mxu0 %v3707
        %v4406 = vpop.f32.mrb[0].mxu0
        %v4407 = vadd.f32 %v4054, %v4406
        %v4408 = vpop.f32.mrb[0].mxu0
        %v4409 = vadd.f32 %v4056, %v4408
        %v4410 = vpop.f32.mrb[0].mxu0
        %v4411 = vadd.f32 %v4058, %v4410
        %v4412 = vpop.f32.mrb[0].mxu0
        %v4413 = vadd.f32 %v4060, %v4412
        %4414 = vmatprep.mubr.bf16.mxu0 %v3710
        %4415 = vmatmul.mubr.bf16.gmra.mrb[0].mxu0 %v3709
        %v4416 = vpop.f32.mrb[0].mxu0
        %v4417 = vadd.f32 %v4064, %v4416
        %v4418 = vpop.f32.mrb[0].mxu0
        %v4419 = vadd.f32 %v4066, %v4418
        %v4420 = vpop.f32.mrb[0].mxu0
        %v4421 = vadd.f32 %v4068, %v4420
        %v4422 = vpop.f32.mrb[0].mxu0
        %v4423 = vadd.f32 %v4070, %v4422
        %4424 = vmatprep.mubr.bf16.mxu0 %v3712
        %4425 = vmatmul.mubr.bf16.gmra.mrb[0].mxu0 %v3711
        %v4426 = vpop.f32.mrb[0].mxu0
        %v4427 = vadd.f32 %v4074, %v4426
        %v4428 = vpop.f32.mrb[0].mxu0
        %v4429 = vadd.f32 %v4076, %v4428
        %v4430 = vpop.f32.mrb[0].mxu0
        %v4431 = vadd.f32 %v4078, %v4430
        %v4432 = vpop.f32.mrb[0].mxu0
        %v4433 = vadd.f32 %v4080, %v4432
        %4434 = vmatprep.mubr.bf16.mxu0 %v3714
        %4435 = vmatmul.mubr.bf16.gmra.mrb[0].mxu0 %v3713
        %v4436 = vpop.f32.mrb[0].mxu0
        %v4437 = vadd.f32 %v4084, %v4436
        %v4438 = vpop.f32.mrb[0].mxu0
        %v4439 = vadd.f32 %v4086, %v4438
        %v4440 = vpop.f32.mrb[0].mxu0
        %v4441 = vadd.f32 %v4088, %v4440
        %v4442 = vpop.f32.mrb[0].mxu0
        %v4443 = vadd.f32 %v4090, %v4442
        %4444 = vmatprep.mubr.bf16.mxu0 %v3716
        %4445 = vmatmul.mubr.bf16.gmra.mrb[0].mxu0 %v3715
        %v4446 = vpop.f32.mrb[0].mxu0
        %v4447 = vadd.f32 %v4094, %v4446
        %v4448 = vpop.f32.mrb[0].mxu0
        %v4449 = vadd.f32 %v4096, %v4448
        %v4450 = vpop.f32.mrb[0].mxu0
        %v4451 = vadd.f32 %v4098, %v4450
        %v4452 = vpop.f32.mrb[0].mxu0
        %v4453 = vadd.f32 %v4100, %v4452
        %4454 = vmatprep.mubr.bf16.mxu0 %v3718
        %4455 = vmatmul.mubr.bf16.gmra.mrb[0].mxu0 %v3717
        %v4456 = vpop.f32.mrb[0].mxu0
        %v4457 = vadd.f32 %v4104, %v4456
        %v4458 = vpop.f32.mrb[0].mxu0
        %v4459 = vadd.f32 %v4106, %v4458
        %v4460 = vpop.f32.mrb[0].mxu0
        %v4461 = vadd.f32 %v4108, %v4460
        %v4462 = vpop.f32.mrb[0].mxu0
        %v4463 = vadd.f32 %v4110, %v4462
        %4464 = vmatprep.mubr.bf16.mxu0 %v3720
        %4465 = vmatmul.mubr.bf16.gmra.mrb[0].mxu0 %v3719
        %v4466 = vpop.f32.mrb[0].mxu0
        %v4467 = vadd.f32 %v4114, %v4466
        %v4468 = vpop.f32.mrb[0].mxu0
        %v4469 = vadd.f32 %v4116, %v4468
        %v4470 = vpop.f32.mrb[0].mxu0
        %v4471 = vadd.f32 %v4118, %v4470
        %v4472 = vpop.f32.mrb[0].mxu0
        %v4473 = vadd.f32 %v4120, %v4472
        %4474 = vmatprep.mubr.bf16.mxu0 %v3722
        %4475 = vmatmul.mubr.bf16.gmra.mrb[0].mxu0 %v3721
        %v4476 = vpop.f32.mrb[0].mxu0
        %v4477 = vadd.f32 %v4124, %v4476
        %v4478 = vpop.f32.mrb[0].mxu0
        %v4479 = vadd.f32 %v4126, %v4478
        %v4480 = vpop.f32.mrb[0].mxu0
        %v4481 = vadd.f32 %v4128, %v4480
        %v4482 = vpop.f32.mrb[0].mxu0
        %v4483 = vadd.f32 %v4130, %v4482
        %4484 = vmatprep.mubr.bf16.mxu0 %v3724
        %4485 = vmatmul.mubr.bf16.gmra.mrb[0].mxu0 %v3723
        %v4486 = vpop.f32.mrb[0].mxu0
        %v4487 = vadd.f32 %v4134, %v4486
        %v4488 = vpop.f32.mrb[0].mxu0
        %v4489 = vadd.f32 %v4136, %v4488
        %v4490 = vpop.f32.mrb[0].mxu0
        %v4491 = vadd.f32 %v4138, %v4490
        %v4492 = vpop.f32.mrb[0].mxu0
        %v4493 = vadd.f32 %v4140, %v4492
        %4494 = vdwg.mxu0
        %v4495 = vld [vmem:[%s15] sm:$0x3]
        %v4497 = vlaneseq
        %v4498 = vshrl.u32 %v4497, 7
        %v4499 = vsub.s32 0, %v4498
        %v4500 = vrot.slane %v4495, %v4499
        %v4501 = vlaneseq
        %v4502 = vshrl.u32 %v4501, 7
        %v4503 = vsub.s32 1, %v4502
        %v4504 = vrot.slane %v4495, %v4503
        %v4507 = vadd.f32 %v4337, %v4500
        %v4508 = vadd.f32 %v4339, %v4504
        %v4509 = vadd.f32 %v4341, %v4500
        %v4510 = vadd.f32 %v4343, %v4504
        %v4511 = vadd.f32 %v4347, %v4500
        %v4512 = vadd.f32 %v4349, %v4504
        %v4513 = vadd.f32 %v4351, %v4500
        %v4514 = vadd.f32 %v4353, %v4504
        %v4515 = vadd.f32 %v4357, %v4500
        %v4516 = vadd.f32 %v4359, %v4504
        %v4517 = vadd.f32 %v4361, %v4500
        %v4518 = vadd.f32 %v4363, %v4504
        %v4519 = vadd.f32 %v4367, %v4500
        %v4520 = vadd.f32 %v4369, %v4504
        %v4521 = vadd.f32 %v4371, %v4500
        %v4522 = vadd.f32 %v4373, %v4504
        %v4523 = vadd.f32 %v4377, %v4500
        %v4524 = vadd.f32 %v4379, %v4504
        %v4525 = vadd.f32 %v4381, %v4500
        %v4526 = vadd.f32 %v4383, %v4504
        %v4527 = vadd.f32 %v4387, %v4500
        %v4528 = vadd.f32 %v4389, %v4504
        %v4529 = vadd.f32 %v4391, %v4500
        %v4530 = vadd.f32 %v4393, %v4504
        %v4531 = vadd.f32 %v4397, %v4500
        %v4532 = vadd.f32 %v4399, %v4504
        %v4533 = vadd.f32 %v4401, %v4500
        %v4534 = vadd.f32 %v4403, %v4504
        %v4535 = vadd.f32 %v4407, %v4500
        %v4536 = vadd.f32 %v4409, %v4504
        %v4537 = vadd.f32 %v4411, %v4500
        %v4538 = vadd.f32 %v4413, %v4504
        %v4539 = vadd.f32 %v4417, %v4500
        %v4540 = vadd.f32 %v4419, %v4504
        %v4541 = vadd.f32 %v4421, %v4500
        %v4542 = vadd.f32 %v4423, %v4504
        %v4543 = vadd.f32 %v4427, %v4500
        %v4544 = vadd.f32 %v4429, %v4504
        %v4545 = vadd.f32 %v4431, %v4500
        %v4546 = vadd.f32 %v4433, %v4504
        %v4547 = vadd.f32 %v4437, %v4500
        %v4548 = vadd.f32 %v4439, %v4504
        %v4549 = vadd.f32 %v4441, %v4500
        %v4550 = vadd.f32 %v4443, %v4504
        %v4551 = vadd.f32 %v4447, %v4500
        %v4552 = vadd.f32 %v4449, %v4504
        %v4553 = vadd.f32 %v4451, %v4500
        %v4554 = vadd.f32 %v4453, %v4504
        %v4555 = vadd.f32 %v4457, %v4500
        %v4556 = vadd.f32 %v4459, %v4504
        %v4557 = vadd.f32 %v4461, %v4500
        %v4558 = vadd.f32 %v4463, %v4504
        %v4559 = vadd.f32 %v4467, %v4500
        %v4560 = vadd.f32 %v4469, %v4504
        %v4561 = vadd.f32 %v4471, %v4500
        %v4562 = vadd.f32 %v4473, %v4504
        %v4563 = vadd.f32 %v4477, %v4500
        %v4564 = vadd.f32 %v4479, %v4504
        %v4565 = vadd.f32 %v4481, %v4500
        %v4566 = vadd.f32 %v4483, %v4504
        %v4567 = vadd.f32 %v4487, %v4500
        %v4568 = vadd.f32 %v4489, %v4504
        %v4569 = vadd.f32 %v4491, %v4500
        %v4570 = vadd.f32 %v4493, %v4504
        %v4571 = vmax.f32 %v4507, 0.0
        %v4572 = vmax.f32 %v4508, 0.0
        %v4573 = vmax.f32 %v4509, 0.0
        %v4574 = vmax.f32 %v4510, 0.0
        %v4575 = vmax.f32 %v4511, 0.0
        %v4576 = vmax.f32 %v4512, 0.0
        %v4577 = vmax.f32 %v4513, 0.0
        %v4578 = vmax.f32 %v4514, 0.0
        %v4579 = vmax.f32 %v4515, 0.0
        %v4580 = vmax.f32 %v4516, 0.0
        %v4581 = vmax.f32 %v4517, 0.0
        %v4582 = vmax.f32 %v4518, 0.0
        %v4583 = vmax.f32 %v4519, 0.0
        %v4584 = vmax.f32 %v4520, 0.0
        %v4585 = vmax.f32 %v4521, 0.0
        %v4586 = vmax.f32 %v4522, 0.0
        %v4587 = vmax.f32 %v4523, 0.0
        %v4588 = vmax.f32 %v4524, 0.0
        %v4589 = vmax.f32 %v4525, 0.0
        %v4590 = vmax.f32 %v4526, 0.0
        %v4591 = vmax.f32 %v4527, 0.0
        %v4592 = vmax.f32 %v4528, 0.0
        %v4593 = vmax.f32 %v4529, 0.0
        %v4594 = vmax.f32 %v4530, 0.0
        %v4595 = vmax.f32 %v4531, 0.0
        %v4596 = vmax.f32 %v4532, 0.0
        %v4597 = vmax.f32 %v4533, 0.0
        %v4598 = vmax.f32 %v4534, 0.0
        %v4599 = vmax.f32 %v4535, 0.0
        %v4600 = vmax.f32 %v4536, 0.0
        %v4601 = vmax.f32 %v4537, 0.0
        %v4602 = vmax.f32 %v4538, 0.0
        %v4603 = vmax.f32 %v4539, 0.0
        %v4604 = vmax.f32 %v4540, 0.0
        %v4605 = vmax.f32 %v4541, 0.0
        %v4606 = vmax.f32 %v4542, 0.0
        %v4607 = vmax.f32 %v4543, 0.0
        %v4608 = vmax.f32 %v4544, 0.0
        %v4609 = vmax.f32 %v4545, 0.0
        %v4610 = vmax.f32 %v4546, 0.0
        %v4611 = vmax.f32 %v4547, 0.0
        %v4612 = vmax.f32 %v4548, 0.0
        %v4613 = vmax.f32 %v4549, 0.0
        %v4614 = vmax.f32 %v4550, 0.0
        %v4615 = vmax.f32 %v4551, 0.0
        %v4616 = vmax.f32 %v4552, 0.0
        %v4617 = vmax.f32 %v4553, 0.0
        %v4618 = vmax.f32 %v4554, 0.0
        %v4619 = vmax.f32 %v4555, 0.0
        %v4620 = vmax.f32 %v4556, 0.0
        %v4621 = vmax.f32 %v4557, 0.0
        %v4622 = vmax.f32 %v4558, 0.0
        %v4623 = vmax.f32 %v4559, 0.0
        %v4624 = vmax.f32 %v4560, 0.0
        %v4625 = vmax.f32 %v4561, 0.0
        %v4626 = vmax.f32 %v4562, 0.0
        %v4627 = vmax.f32 %v4563, 0.0
        %v4628 = vmax.f32 %v4564, 0.0
        %v4629 = vmax.f32 %v4565, 0.0
        %v4630 = vmax.f32 %v4566, 0.0
        %v4631 = vmax.f32 %v4567, 0.0
        %v4632 = vmax.f32 %v4568, 0.0
        %v4633 = vmax.f32 %v4569, 0.0
        %v4634 = vmax.f32 %v4570, 0.0
        %v4635 = vpack.c.bf16 %v4573, %v4571
        %v4636 = vpack.c.bf16 %v4574, %v4572
        %v4637 = vpack.c.bf16 %v4577, %v4575
        %v4638 = vpack.c.bf16 %v4578, %v4576
        %v4639 = vpack.c.bf16 %v4581, %v4579
        %v4640 = vpack.c.bf16 %v4582, %v4580
        %v4641 = vpack.c.bf16 %v4585, %v4583
        %v4642 = vpack.c.bf16 %v4586, %v4584
        %v4643 = vpack.c.bf16 %v4589, %v4587
        %v4644 = vpack.c.bf16 %v4590, %v4588
        %v4645 = vpack.c.bf16 %v4593, %v4591
        %v4646 = vpack.c.bf16 %v4594, %v4592
        %v4647 = vpack.c.bf16 %v4597, %v4595
        %v4648 = vpack.c.bf16 %v4598, %v4596
        %v4649 = vpack.c.bf16 %v4601, %v4599
        %v4650 = vpack.c.bf16 %v4602, %v4600
        %v4651 = vpack.c.bf16 %v4605, %v4603
        %v4652 = vpack.c.bf16 %v4606, %v4604
        %v4653 = vpack.c.bf16 %v4609, %v4607
        %v4654 = vpack.c.bf16 %v4610, %v4608
        %v4655 = vpack.c.bf16 %v4613, %v4611
        %v4656 = vpack.c.bf16 %v4614, %v4612
        %v4657 = vpack.c.bf16 %v4617, %v4615
        %v4658 = vpack.c.bf16 %v4618, %v4616
        %v4659 = vpack.c.bf16 %v4621, %v4619
        %v4660 = vpack.c.bf16 %v4622, %v4620
        %v4661 = vpack.c.bf16 %v4625, %v4623
        %v4662 = vpack.c.bf16 %v4626, %v4624
        %v4663 = vpack.c.bf16 %v4629, %v4627
        %v4664 = vpack.c.bf16 %v4630, %v4628
        %v4665 = vpack.c.bf16 %v4633, %v4631
        %v4666 = vpack.c.bf16 %v4634, %v4632
        %4667 = vmatprep.subr.bf16.mxu0 %v4636
        %4668 = vmatpush1.bf16.msra.mxu0 %v4635
        %4669 = vmatprep.subr.bf16.mxu0 %v4638
        %4670 = vmatpush1.bf16.msra.mxu0 %v4637
        %4671 = vmatprep.subr.bf16.mxu0 %v4640
        %4672 = vmatpush1.bf16.msra.mxu0 %v4639
        %4673 = vmatprep.subr.bf16.mxu0 %v4642
        %4674 = vmatpush1.bf16.msra.mxu0 %v4641
        %4675 = vmatprep.subr.bf16.mxu0 %v4644
        %4676 = vmatpush1.bf16.msra.mxu0 %v4643
        %4677 = vmatprep.subr.bf16.mxu0 %v4646
        %4678 = vmatpush1.bf16.msra.mxu0 %v4645
        %4679 = vmatprep.subr.bf16.mxu0 %v4648
        %4680 = vmatpush1.bf16.msra.mxu0 %v4647
        %4681 = vmatprep.subr.bf16.mxu0 %v4650
        %4682 = vmatpush1.bf16.msra.mxu0 %v4649
        %4683 = vmatprep.subr.bf16.mxu0 %v4652
        %4684 = vmatpush1.bf16.msra.mxu0 %v4651
        %4685 = vmatprep.subr.bf16.mxu0 %v4654
        %4686 = vmatpush1.bf16.msra.mxu0 %v4653
        %4687 = vmatprep.subr.bf16.mxu0 %v4656
        %4688 = vmatpush1.bf16.msra.mxu0 %v4655
        %4689 = vmatprep.subr.bf16.mxu0 %v4658
        %4690 = vmatpush1.bf16.msra.mxu0 %v4657
        %4691 = vmatprep.subr.bf16.mxu0 %v4660
        %4692 = vmatpush1.bf16.msra.mxu0 %v4659
        %4693 = vmatprep.subr.bf16.mxu0 %v4662
        %4694 = vmatpush1.bf16.msra.mxu0 %v4661
        %4695 = vmatprep.subr.bf16.mxu0 %v4664
        %4696 = vmatpush1.bf16.msra.mxu0 %v4663
        %4697 = vmatprep.subr.bf16.mxu0 %v4666
        %4698 = vmatpush1.bf16.msra.mxu0 %v4665
        %4699 = vmatprep.mubr.bf16.mxu0 %v998
        %4700 = vmatmul.mubr.bf16.gmra.mrb[0].mxu0 %v997
        %v4701 = vpop.f32.mrb[0].mxu0
        %v4702 = vadd.f32 0.0, %v4701
        %v4703 = vpop.f32.mrb[0].mxu0
        %v4704 = vadd.f32 0.0, %v4703
        %v4705 = vpop.f32.mrb[0].mxu0
        %v4706 = vadd.f32 0.0, %v4705
        %v4707 = vpop.f32.mrb[0].mxu0
        %v4708 = vadd.f32 0.0, %v4707
        %4709 = vmatprep.mubr.bf16.mxu0 %v1000
        %4710 = vmatmul.mubr.bf16.gmra.mrb[0].mxu0 %v999
        %v4711 = vpop.f32.mrb[0].mxu0
        %v4712 = vadd.f32 0.0, %v4711
        %v4713 = vpop.f32.mrb[0].mxu0
        %v4714 = vadd.f32 0.0, %v4713
        %v4715 = vpop.f32.mrb[0].mxu0
        %v4716 = vadd.f32 0.0, %v4715
        %v4717 = vpop.f32.mrb[0].mxu0
        %v4718 = vadd.f32 0.0, %v4717
        %4719 = vmatprep.mubr.bf16.mxu0 %v1002
        %4720 = vmatmul.mubr.bf16.gmra.mrb[0].mxu0 %v1001
        %v4721 = vpop.f32.mrb[0].mxu0
        %v4722 = vadd.f32 0.0, %v4721
        %v4723 = vpop.f32.mrb[0].mxu0
        %v4724 = vadd.f32 0.0, %v4723
        %v4725 = vpop.f32.mrb[0].mxu0
        %v4726 = vadd.f32 0.0, %v4725
        %v4727 = vpop.f32.mrb[0].mxu0
        %v4728 = vadd.f32 0.0, %v4727
        %4729 = vmatprep.mubr.bf16.mxu0 %v1004
        %4730 = vmatmul.mubr.bf16.gmra.mrb[0].mxu0 %v1003
        %v4731 = vpop.f32.mrb[0].mxu0
        %v4732 = vadd.f32 0.0, %v4731
        %v4733 = vpop.f32.mrb[0].mxu0
        %v4734 = vadd.f32 0.0, %v4733
        %v4735 = vpop.f32.mrb[0].mxu0
        %v4736 = vadd.f32 0.0, %v4735
        %v4737 = vpop.f32.mrb[0].mxu0
        %v4738 = vadd.f32 0.0, %v4737
        %4739 = vmatprep.mubr.bf16.mxu0 %v1006
        %4740 = vmatmul.mubr.bf16.gmra.mrb[0].mxu0 %v1005
        %v4741 = vpop.f32.mrb[0].mxu0
        %v4742 = vadd.f32 0.0, %v4741
        %v4743 = vpop.f32.mrb[0].mxu0
        %v4744 = vadd.f32 0.0, %v4743
        %v4745 = vpop.f32.mrb[0].mxu0
        %v4746 = vadd.f32 0.0, %v4745
        %v4747 = vpop.f32.mrb[0].mxu0
        %v4748 = vadd.f32 0.0, %v4747
        %4749 = vmatprep.mubr.bf16.mxu0 %v1008
        %4750 = vmatmul.mubr.bf16.gmra.mrb[0].mxu0 %v1007
        %v4751 = vpop.f32.mrb[0].mxu0
        %v4752 = vadd.f32 0.0, %v4751
        %v4753 = vpop.f32.mrb[0].mxu0
        %v4754 = vadd.f32 0.0, %v4753
        %v4755 = vpop.f32.mrb[0].mxu0
        %v4756 = vadd.f32 0.0, %v4755
        %v4757 = vpop.f32.mrb[0].mxu0
        %v4758 = vadd.f32 0.0, %v4757
        %4759 = vmatprep.mubr.bf16.mxu0 %v1010
        %4760 = vmatmul.mubr.bf16.gmra.mrb[0].mxu0 %v1009
        %v4761 = vpop.f32.mrb[0].mxu0
        %v4762 = vadd.f32 0.0, %v4761
        %v4763 = vpop.f32.mrb[0].mxu0
        %v4764 = vadd.f32 0.0, %v4763
        %v4765 = vpop.f32.mrb[0].mxu0
        %v4766 = vadd.f32 0.0, %v4765
        %v4767 = vpop.f32.mrb[0].mxu0
        %v4768 = vadd.f32 0.0, %v4767
        %4769 = vmatprep.mubr.bf16.mxu0 %v1012
        %4770 = vmatmul.mubr.bf16.gmra.mrb[0].mxu0 %v1011
        %v4771 = vpop.f32.mrb[0].mxu0
        %v4772 = vadd.f32 0.0, %v4771
        %v4773 = vpop.f32.mrb[0].mxu0
        %v4774 = vadd.f32 0.0, %v4773
        %v4775 = vpop.f32.mrb[0].mxu0
        %v4776 = vadd.f32 0.0, %v4775
        %v4777 = vpop.f32.mrb[0].mxu0
        %v4778 = vadd.f32 0.0, %v4777
        %4779 = vmatprep.mubr.bf16.mxu0 %v1014
        %4780 = vmatmul.mubr.bf16.gmra.mrb[0].mxu0 %v1013
        %v4781 = vpop.f32.mrb[0].mxu0
        %v4782 = vadd.f32 0.0, %v4781
        %v4783 = vpop.f32.mrb[0].mxu0
        %v4784 = vadd.f32 0.0, %v4783
        %v4785 = vpop.f32.mrb[0].mxu0
        %v4786 = vadd.f32 0.0, %v4785
        %v4787 = vpop.f32.mrb[0].mxu0
        %v4788 = vadd.f32 0.0, %v4787
        %4789 = vmatprep.mubr.bf16.mxu0 %v1016
        %4790 = vmatmul.mubr.bf16.gmra.mrb[0].mxu0 %v1015
        %v4791 = vpop.f32.mrb[0].mxu0
        %v4792 = vadd.f32 0.0, %v4791
        %v4793 = vpop.f32.mrb[0].mxu0
        %v4794 = vadd.f32 0.0, %v4793
        %v4795 = vpop.f32.mrb[0].mxu0
        %v4796 = vadd.f32 0.0, %v4795
        %v4797 = vpop.f32.mrb[0].mxu0
        %v4798 = vadd.f32 0.0, %v4797
        %4799 = vmatprep.mubr.bf16.mxu0 %v1018
        %4800 = vmatmul.mubr.bf16.gmra.mrb[0].mxu0 %v1017
        %v4801 = vpop.f32.mrb[0].mxu0
        %v4802 = vadd.f32 0.0, %v4801
        %v4803 = vpop.f32.mrb[0].mxu0
        %v4804 = vadd.f32 0.0, %v4803
        %v4805 = vpop.f32.mrb[0].mxu0
        %v4806 = vadd.f32 0.0, %v4805
        %v4807 = vpop.f32.mrb[0].mxu0
        %v4808 = vadd.f32 0.0, %v4807
        %4809 = vmatprep.mubr.bf16.mxu0 %v1020
        %4810 = vmatmul.mubr.bf16.gmra.mrb[0].mxu0 %v1019
        %v4811 = vpop.f32.mrb[0].mxu0
        %v4812 = vadd.f32 0.0, %v4811
        %v4813 = vpop.f32.mrb[0].mxu0
        %v4814 = vadd.f32 0.0, %v4813
        %v4815 = vpop.f32.mrb[0].mxu0
        %v4816 = vadd.f32 0.0, %v4815
        %v4817 = vpop.f32.mrb[0].mxu0
        %v4818 = vadd.f32 0.0, %v4817
        %4819 = vmatprep.mubr.bf16.mxu0 %v1022
        %4820 = vmatmul.mubr.bf16.gmra.mrb[0].mxu0 %v1021
        %v4821 = vpop.f32.mrb[0].mxu0
        %v4822 = vadd.f32 0.0, %v4821
        %v4823 = vpop.f32.mrb[0].mxu0
        %v4824 = vadd.f32 0.0, %v4823
        %v4825 = vpop.f32.mrb[0].mxu0
        %v4826 = vadd.f32 0.0, %v4825
        %v4827 = vpop.f32.mrb[0].mxu0
        %v4828 = vadd.f32 0.0, %v4827
        %4829 = vmatprep.mubr.bf16.mxu0 %v1024
        %4830 = vmatmul.mubr.bf16.gmra.mrb[0].mxu0 %v1023
        %v4831 = vpop.f32.mrb[0].mxu0
        %v4832 = vadd.f32 0.0, %v4831
        %v4833 = vpop.f32.mrb[0].mxu0
        %v4834 = vadd.f32 0.0, %v4833
        %v4835 = vpop.f32.mrb[0].mxu0
        %v4836 = vadd.f32 0.0, %v4835
        %v4837 = vpop.f32.mrb[0].mxu0
        %v4838 = vadd.f32 0.0, %v4837
        %4839 = vmatprep.mubr.bf16.mxu0 %v1026
        %4840 = vmatmul.mubr.bf16.gmra.mrb[0].mxu0 %v1025
        %v4841 = vpop.f32.mrb[0].mxu0
        %v4842 = vadd.f32 0.0, %v4841
        %v4843 = vpop.f32.mrb[0].mxu0
        %v4844 = vadd.f32 0.0, %v4843
        %v4845 = vpop.f32.mrb[0].mxu0
        %v4846 = vadd.f32 0.0, %v4845
        %v4847 = vpop.f32.mrb[0].mxu0
        %v4848 = vadd.f32 0.0, %v4847
        %4849 = vmatprep.mubr.bf16.mxu0 %v1028
        %4850 = vmatmul.mubr.bf16.gmra.mrb[0].mxu0 %v1027
        %v4851 = vpop.f32.mrb[0].mxu0
        %v4852 = vadd.f32 0.0, %v4851
        %v4853 = vpop.f32.mrb[0].mxu0
        %v4854 = vadd.f32 0.0, %v4853
        %v4855 = vpop.f32.mrb[0].mxu0
        %v4856 = vadd.f32 0.0, %v4855
        %v4857 = vpop.f32.mrb[0].mxu0
        %v4858 = vadd.f32 0.0, %v4857
        %4859 = vdwg.mxu0
        %v4860 = vmul.f32 %v4702, %v1321
        %v4861 = vmul.f32 %v4704, %v1321
        %v4862 = vmul.f32 %v4706, %v1326
        %v4863 = vmul.f32 %v4708, %v1326
        %v4864 = vmul.f32 %v4712, %v1331
        %v4865 = vmul.f32 %v4714, %v1331
        %v4866 = vmul.f32 %v4716, %v1336
        %v4867 = vmul.f32 %v4718, %v1336
        %v4868 = vmul.f32 %v4722, %v1341
        %v4869 = vmul.f32 %v4724, %v1341
        %v4870 = vmul.f32 %v4726, %v1346
        %v4871 = vmul.f32 %v4728, %v1346
        %v4872 = vmul.f32 %v4732, %v1351
        %v4873 = vmul.f32 %v4734, %v1351
        %v4874 = vmul.f32 %v4736, %v1356
        %v4875 = vmul.f32 %v4738, %v1356
        %v4876 = vmul.f32 %v4742, %v1361
        %v4877 = vmul.f32 %v4744, %v1361
        %v4878 = vmul.f32 %v4746, %v1366
        %v4879 = vmul.f32 %v4748, %v1366
        %v4880 = vmul.f32 %v4752, %v1371
        %v4881 = vmul.f32 %v4754, %v1371
        %v4882 = vmul.f32 %v4756, %v1376
        %v4883 = vmul.f32 %v4758, %v1376
        %v4884 = vmul.f32 %v4762, %v1381
        %v4885 = vmul.f32 %v4764, %v1381
        %v4886 = vmul.f32 %v4766, %v1386
        %v4887 = vmul.f32 %v4768, %v1386
        %v4888 = vmul.f32 %v4772, %v1391
        %v4889 = vmul.f32 %v4774, %v1391
        %v4890 = vmul.f32 %v4776, %v1396
        %v4891 = vmul.f32 %v4778, %v1396
        %v4892 = vmul.f32 %v4782, %v1401
        %v4893 = vmul.f32 %v4784, %v1401
        %v4894 = vmul.f32 %v4786, %v1406
        %v4895 = vmul.f32 %v4788, %v1406
        %v4896 = vmul.f32 %v4792, %v1411
        %v4897 = vmul.f32 %v4794, %v1411
        %v4898 = vmul.f32 %v4796, %v1416
        %v4899 = vmul.f32 %v4798, %v1416
        %v4900 = vmul.f32 %v4802, %v1421
        %v4901 = vmul.f32 %v4804, %v1421
        %v4902 = vmul.f32 %v4806, %v1426
        %v4903 = vmul.f32 %v4808, %v1426
        %v4904 = vmul.f32 %v4812, %v1431
        %v4905 = vmul.f32 %v4814, %v1431
        %v4906 = vmul.f32 %v4816, %v1436
        %v4907 = vmul.f32 %v4818, %v1436
        %v4908 = vmul.f32 %v4822, %v1441
        %v4909 = vmul.f32 %v4824, %v1441
        %v4910 = vmul.f32 %v4826, %v1446
        %v4911 = vmul.f32 %v4828, %v1446
        %v4912 = vmul.f32 %v4832, %v1451
        %v4913 = vmul.f32 %v4834, %v1451
        %v4914 = vmul.f32 %v4836, %v1456
        %v4915 = vmul.f32 %v4838, %v1456
        %v4916 = vmul.f32 %v4842, %v1461
        %v4917 = vmul.f32 %v4844, %v1461
        %v4918 = vmul.f32 %v4846, %v1466
        %v4919 = vmul.f32 %v4848, %v1466
        %v4920 = vmul.f32 %v4852, %v1471
        %v4921 = vmul.f32 %v4854, %v1471
        %v4922 = vmul.f32 %v4856, %v1476
        %v4923 = vmul.f32 %v4858, %v1476
        %v4924 = vpack.c.bf16 %v4862, %v4860
        %v4925 = vpack.c.bf16 %v4863, %v4861
        %v4926 = vpack.c.bf16 %v4866, %v4864
        %v4927 = vpack.c.bf16 %v4867, %v4865
        %v4928 = vpack.c.bf16 %v4870, %v4868
        %v4929 = vpack.c.bf16 %v4871, %v4869
        %v4930 = vpack.c.bf16 %v4874, %v4872
        %v4931 = vpack.c.bf16 %v4875, %v4873
        %v4932 = vpack.c.bf16 %v4878, %v4876
        %v4933 = vpack.c.bf16 %v4879, %v4877
        %v4934 = vpack.c.bf16 %v4882, %v4880
        %v4935 = vpack.c.bf16 %v4883, %v4881
        %v4936 = vpack.c.bf16 %v4886, %v4884
        %v4937 = vpack.c.bf16 %v4887, %v4885
        %v4938 = vpack.c.bf16 %v4890, %v4888
        %v4939 = vpack.c.bf16 %v4891, %v4889
        %v4940 = vpack.c.bf16 %v4894, %v4892
        %v4941 = vpack.c.bf16 %v4895, %v4893
        %v4942 = vpack.c.bf16 %v4898, %v4896
        %v4943 = vpack.c.bf16 %v4899, %v4897
        %v4944 = vpack.c.bf16 %v4902, %v4900
        %v4945 = vpack.c.bf16 %v4903, %v4901
        %v4946 = vpack.c.bf16 %v4906, %v4904
        %v4947 = vpack.c.bf16 %v4907, %v4905
        %v4948 = vpack.c.bf16 %v4910, %v4908
        %v4949 = vpack.c.bf16 %v4911, %v4909
        %v4950 = vpack.c.bf16 %v4914, %v4912
        %v4951 = vpack.c.bf16 %v4915, %v4913
        %v4952 = vpack.c.bf16 %v4918, %v4916
        %v4953 = vpack.c.bf16 %v4919, %v4917
        %v4954 = vpack.c.bf16 %v4922, %v4920
        %v4955 = vpack.c.bf16 %v4923, %v4921
        %v4956 = vld [vmem:[#allocation8] sm:$0xff]
        %v4957 = vld [vmem:[#allocation8 + $0x8] sm:$0xff]
        %v4958 = vld [vmem:[#allocation8 + $0x10] sm:$0xff]
        %v4959 = vld [vmem:[#allocation8 + $0x18] sm:$0xff]
        %v4960 = vld [vmem:[#allocation8 + $0x20] sm:$0xff]
        %v4961 = vld [vmem:[#allocation8 + $0x28] sm:$0xff]
        %v4962 = vld [vmem:[#allocation8 + $0x30] sm:$0xff]
        %v4963 = vld [vmem:[#allocation8 + $0x38] sm:$0xff]
        %v4964 = vld [vmem:[#allocation8 + $0x40] sm:$0xff]
        %v4965 = vld [vmem:[#allocation8 + $0x48] sm:$0xff]
        %v4966 = vld [vmem:[#allocation8 + $0x50] sm:$0xff]
        %v4967 = vld [vmem:[#allocation8 + $0x58] sm:$0xff]
        %v4968 = vld [vmem:[#allocation8 + $0x60] sm:$0xff]
        %v4969 = vld [vmem:[#allocation8 + $0x68] sm:$0xff]
        %v4970 = vld [vmem:[#allocation8 + $0x70] sm:$0xff]
        %v4971 = vld [vmem:[#allocation8 + $0x78] sm:$0xff]
        %v4972 = vld [vmem:[#allocation8 + $0x80] sm:$0xff]
        %v4973 = vld [vmem:[#allocation8 + $0x88] sm:$0xff]
        %v4974 = vld [vmem:[#allocation8 + $0x90] sm:$0xff]
        %v4975 = vld [vmem:[#allocation8 + $0x98] sm:$0xff]
        %v4976 = vld [vmem:[#allocation8 + $0xa0] sm:$0xff]
        %v4977 = vld [vmem:[#allocation8 + $0xa8] sm:$0xff]
        %v4978 = vld [vmem:[#allocation8 + $0xb0] sm:$0xff]
        %v4979 = vld [vmem:[#allocation8 + $0xb8] sm:$0xff]
        %v4980 = vld [vmem:[#allocation8 + $0xc0] sm:$0xff]
        %v4981 = vld [vmem:[#allocation8 + $0xc8] sm:$0xff]
        %v4982 = vld [vmem:[#allocation8 + $0xd0] sm:$0xff]
        %v4983 = vld [vmem:[#allocation8 + $0xd8] sm:$0xff]
        %v4984 = vld [vmem:[#allocation8 + $0xe0] sm:$0xff]
        %v4985 = vld [vmem:[#allocation8 + $0xe8] sm:$0xff]
        %v4986 = vld [vmem:[#allocation8 + $0xf0] sm:$0xff]
        %v4987 = vld [vmem:[#allocation8 + $0xf8] sm:$0xff]
        %v4988 = vld [vmem:[#allocation10] sm:$0xff]
        %v4989 = vld [vmem:[#allocation10 + $0x8] sm:$0xff]
        %v4990 = vld [vmem:[#allocation10 + $0x10] sm:$0xff]
        %v4991 = vld [vmem:[#allocation10 + $0x18] sm:$0xff]
        %v4992 = vld [vmem:[#allocation10 + $0x20] sm:$0xff]
        %v4993 = vld [vmem:[#allocation10 + $0x28] sm:$0xff]
        %v4994 = vld [vmem:[#allocation10 + $0x30] sm:$0xff]
        %v4995 = vld [vmem:[#allocation10 + $0x38] sm:$0xff]
        %v4996 = vld [vmem:[#allocation10 + $0x40] sm:$0xff]
        %v4997 = vld [vmem:[#allocation10 + $0x48] sm:$0xff]
        %v4998 = vld [vmem:[#allocation10 + $0x50] sm:$0xff]
        %v4999 = vld [vmem:[#allocation10 + $0x58] sm:$0xff]
        %v5000 = vld [vmem:[#allocation10 + $0x60] sm:$0xff]
        %v5001 = vld [vmem:[#allocation10 + $0x68] sm:$0xff]
        %v5002 = vld [vmem:[#allocation10 + $0x70] sm:$0xff]
        %v5003 = vld [vmem:[#allocation10 + $0x78] sm:$0xff]
        %v5004 = vld [vmem:[#allocation10 + $0x80] sm:$0xff]
        %v5005 = vld [vmem:[#allocation10 + $0x88] sm:$0xff]
        %v5006 = vld [vmem:[#allocation10 + $0x90] sm:$0xff]
        %v5007 = vld [vmem:[#allocation10 + $0x98] sm:$0xff]
        %v5008 = vld [vmem:[#allocation10 + $0xa0] sm:$0xff]
        %v5009 = vld [vmem:[#allocation10 + $0xa8] sm:$0xff]
        %v5010 = vld [vmem:[#allocation10 + $0xb0] sm:$0xff]
        %v5011 = vld [vmem:[#allocation10 + $0xb8] sm:$0xff]
        %v5012 = vld [vmem:[#allocation10 + $0xc0] sm:$0xff]
        %v5013 = vld [vmem:[#allocation10 + $0xc8] sm:$0xff]
        %v5014 = vld [vmem:[#allocation10 + $0xd0] sm:$0xff]
        %v5015 = vld [vmem:[#allocation10 + $0xd8] sm:$0xff]
        %v5016 = vld [vmem:[#allocation10 + $0xe0] sm:$0xff]
        %v5017 = vld [vmem:[#allocation10 + $0xe8] sm:$0xff]
        %v5018 = vld [vmem:[#allocation10 + $0xf0] sm:$0xff]
        %v5019 = vld [vmem:[#allocation10 + $0xf8] sm:$0xff]
        %v5052 = vunpack.c.l.b16 %v4988
        %v5053 = vunpack.c.h.b16 %v4988
        %v5054 = vunpack.c.l.b16 %v4989
        %v5055 = vunpack.c.h.b16 %v4989
        %v5056 = vunpack.c.l.b16 %v4990
        %v5057 = vunpack.c.h.b16 %v4990
        %v5058 = vunpack.c.l.b16 %v4991
        %v5059 = vunpack.c.h.b16 %v4991
        %v5060 = vunpack.c.l.b16 %v4992
        %v5061 = vunpack.c.h.b16 %v4992
        %v5062 = vunpack.c.l.b16 %v4993
        %v5063 = vunpack.c.h.b16 %v4993
        %v5064 = vunpack.c.l.b16 %v4994
        %v5065 = vunpack.c.h.b16 %v4994
        %v5066 = vunpack.c.l.b16 %v4995
        %v5067 = vunpack.c.h.b16 %v4995
        %v5068 = vunpack.c.l.b16 %v4996
        %v5069 = vunpack.c.h.b16 %v4996
        %v5070 = vunpack.c.l.b16 %v4997
        %v5071 = vunpack.c.h.b16 %v4997
        %v5072 = vunpack.c.l.b16 %v4998
        %v5073 = vunpack.c.h.b16 %v4998
        %v5074 = vunpack.c.l.b16 %v4999
        %v5075 = vunpack.c.h.b16 %v4999
        %v5076 = vunpack.c.l.b16 %v5000
        %v5077 = vunpack.c.h.b16 %v5000
        %v5078 = vunpack.c.l.b16 %v5001
        %v5079 = vunpack.c.h.b16 %v5001
        %v5080 = vunpack.c.l.b16 %v5002
        %v5081 = vunpack.c.h.b16 %v5002
        %v5082 = vunpack.c.l.b16 %v5003
        %v5083 = vunpack.c.h.b16 %v5003
        %v5084 = vunpack.c.l.b16 %v5004
        %v5085 = vunpack.c.h.b16 %v5004
        %v5086 = vunpack.c.l.b16 %v5005
        %v5087 = vunpack.c.h.b16 %v5005
        %v5088 = vunpack.c.l.b16 %v5006
        %v5089 = vunpack.c.h.b16 %v5006
        %v5090 = vunpack.c.l.b16 %v5007
        %v5091 = vunpack.c.h.b16 %v5007
        %v5092 = vunpack.c.l.b16 %v5008
        %v5093 = vunpack.c.h.b16 %v5008
        %v5094 = vunpack.c.l.b16 %v5009
        %v5095 = vunpack.c.h.b16 %v5009
        %v5096 = vunpack.c.l.b16 %v5010
        %v5097 = vunpack.c.h.b16 %v5010
        %v5098 = vunpack.c.l.b16 %v5011
        %v5099 = vunpack.c.h.b16 %v5011
        %v5100 = vunpack.c.l.b16 %v5012
        %v5101 = vunpack.c.h.b16 %v5012
        %v5102 = vunpack.c.l.b16 %v5013
        %v5103 = vunpack.c.h.b16 %v5013
        %v5104 = vunpack.c.l.b16 %v5014
        %v5105 = vunpack.c.h.b16 %v5014
        %v5106 = vunpack.c.l.b16 %v5015
        %v5107 = vunpack.c.h.b16 %v5015
        %v5108 = vunpack.c.l.b16 %v5016
        %v5109 = vunpack.c.h.b16 %v5016
        %v5110 = vunpack.c.l.b16 %v5017
        %v5111 = vunpack.c.h.b16 %v5017
        %v5112 = vunpack.c.l.b16 %v5018
        %v5113 = vunpack.c.h.b16 %v5018
        %v5114 = vunpack.c.l.b16 %v5019
        %v5115 = vunpack.c.h.b16 %v5019
        %v5116 = vpack.c.b16 %v5054, %v5052
        %v5117 = vpack.c.b16 %v5055, %v5053
        %v5118 = vpack.c.b16 %v5058, %v5056
        %v5119 = vpack.c.b16 %v5059, %v5057
        %v5120 = vpack.c.b16 %v5062, %v5060
        %v5121 = vpack.c.b16 %v5063, %v5061
        %v5122 = vpack.c.b16 %v5066, %v5064
        %v5123 = vpack.c.b16 %v5067, %v5065
        %v5124 = vpack.c.b16 %v5070, %v5068
        %v5125 = vpack.c.b16 %v5071, %v5069
        %v5126 = vpack.c.b16 %v5074, %v5072
        %v5127 = vpack.c.b16 %v5075, %v5073
        %v5128 = vpack.c.b16 %v5078, %v5076
        %v5129 = vpack.c.b16 %v5079, %v5077
        %v5130 = vpack.c.b16 %v5082, %v5080
        %v5131 = vpack.c.b16 %v5083, %v5081
        %v5132 = vpack.c.b16 %v5086, %v5084
        %v5133 = vpack.c.b16 %v5087, %v5085
        %v5134 = vpack.c.b16 %v5090, %v5088
        %v5135 = vpack.c.b16 %v5091, %v5089
        %v5136 = vpack.c.b16 %v5094, %v5092
        %v5137 = vpack.c.b16 %v5095, %v5093
        %v5138 = vpack.c.b16 %v5098, %v5096
        %v5139 = vpack.c.b16 %v5099, %v5097
        %v5140 = vpack.c.b16 %v5102, %v5100
        %v5141 = vpack.c.b16 %v5103, %v5101
        %v5142 = vpack.c.b16 %v5106, %v5104
        %v5143 = vpack.c.b16 %v5107, %v5105
        %v5144 = vpack.c.b16 %v5110, %v5108
        %v5145 = vpack.c.b16 %v5111, %v5109
        %v5146 = vpack.c.b16 %v5114, %v5112
        %v5147 = vpack.c.b16 %v5115, %v5113
        %5180 = vmatprep.subr.bf16.mxu0 %v5117
        %5181 = vmatpush1.bf16.msra.mxu0 %v5116
        %5182 = vmatprep.subr.bf16.mxu0 %v5119
        %5183 = vmatpush1.bf16.msra.mxu0 %v5118
        %5184 = vmatprep.subr.bf16.mxu0 %v5121
        %5185 = vmatpush1.bf16.msra.mxu0 %v5120
        %5186 = vmatprep.subr.bf16.mxu0 %v5123
        %5187 = vmatpush1.bf16.msra.mxu0 %v5122
        %5188 = vmatprep.subr.bf16.mxu0 %v5125
        %5189 = vmatpush1.bf16.msra.mxu0 %v5124
        %5190 = vmatprep.subr.bf16.mxu0 %v5127
        %5191 = vmatpush1.bf16.msra.mxu0 %v5126
        %5192 = vmatprep.subr.bf16.mxu0 %v5129
        %5193 = vmatpush1.bf16.msra.mxu0 %v5128
        %5194 = vmatprep.subr.bf16.mxu0 %v5131
        %5195 = vmatpush1.bf16.msra.mxu0 %v5130
        %5196 = vmatprep.subr.bf16.mxu0 %v5133
        %5197 = vmatpush1.bf16.msra.mxu0 %v5132
        %5198 = vmatprep.subr.bf16.mxu0 %v5135
        %5199 = vmatpush1.bf16.msra.mxu0 %v5134
        %5200 = vmatprep.subr.bf16.mxu0 %v5137
        %5201 = vmatpush1.bf16.msra.mxu0 %v5136
        %5202 = vmatprep.subr.bf16.mxu0 %v5139
        %5203 = vmatpush1.bf16.msra.mxu0 %v5138
        %5204 = vmatprep.subr.bf16.mxu0 %v5141
        %5205 = vmatpush1.bf16.msra.mxu0 %v5140
        %5206 = vmatprep.subr.bf16.mxu0 %v5143
        %5207 = vmatpush1.bf16.msra.mxu0 %v5142
        %5208 = vmatprep.subr.bf16.mxu0 %v5145
        %5209 = vmatpush1.bf16.msra.mxu0 %v5144
        %5210 = vmatprep.subr.bf16.mxu0 %v5147
        %5211 = vmatpush1.bf16.msra.mxu0 %v5146
        %5212 = vmatprep.mubr.bf16.mxu0 %v4636
        %5213 = vmatmul.mubr.bf16.gmra.mrb[0].mxu0 %v4635
        %v5214 = vpop.f32.mrb[0].mxu0
        %v5215 = vadd.f32 0.0, %v5214
        %v5216 = vpop.f32.mrb[0].mxu0
        %v5217 = vadd.f32 0.0, %v5216
        %v5218 = vpop.f32.mrb[0].mxu0
        %v5219 = vadd.f32 0.0, %v5218
        %v5220 = vpop.f32.mrb[0].mxu0
        %v5221 = vadd.f32 0.0, %v5220
        %5222 = vmatprep.mubr.bf16.mxu0 %v4638
        %5223 = vmatmul.mubr.bf16.gmra.mrb[0].mxu0 %v4637
        %v5224 = vpop.f32.mrb[0].mxu0
        %v5225 = vadd.f32 0.0, %v5224
        %v5226 = vpop.f32.mrb[0].mxu0
        %v5227 = vadd.f32 0.0, %v5226
        %v5228 = vpop.f32.mrb[0].mxu0
        %v5229 = vadd.f32 0.0, %v5228
        %v5230 = vpop.f32.mrb[0].mxu0
        %v5231 = vadd.f32 0.0, %v5230
        %5232 = vmatprep.mubr.bf16.mxu0 %v4640
        %5233 = vmatmul.mubr.bf16.gmra.mrb[0].mxu0 %v4639
        %v5234 = vpop.f32.mrb[0].mxu0
        %v5235 = vadd.f32 0.0, %v5234
        %v5236 = vpop.f32.mrb[0].mxu0
        %v5237 = vadd.f32 0.0, %v5236
        %v5238 = vpop.f32.mrb[0].mxu0
        %v5239 = vadd.f32 0.0, %v5238
        %v5240 = vpop.f32.mrb[0].mxu0
        %v5241 = vadd.f32 0.0, %v5240
        %5242 = vmatprep.mubr.bf16.mxu0 %v4642
        %5243 = vmatmul.mubr.bf16.gmra.mrb[0].mxu0 %v4641
        %v5244 = vpop.f32.mrb[0].mxu0
        %v5245 = vadd.f32 0.0, %v5244
        %v5246 = vpop.f32.mrb[0].mxu0
        %v5247 = vadd.f32 0.0, %v5246
        %v5248 = vpop.f32.mrb[0].mxu0
        %v5249 = vadd.f32 0.0, %v5248
        %v5250 = vpop.f32.mrb[0].mxu0
        %v5251 = vadd.f32 0.0, %v5250
        %5252 = vmatprep.mubr.bf16.mxu0 %v4644
        %5253 = vmatmul.mubr.bf16.gmra.mrb[0].mxu0 %v4643
        %v5254 = vpop.f32.mrb[0].mxu0
        %v5255 = vadd.f32 0.0, %v5254
        %v5256 = vpop.f32.mrb[0].mxu0
        %v5257 = vadd.f32 0.0, %v5256
        %v5258 = vpop.f32.mrb[0].mxu0
        %v5259 = vadd.f32 0.0, %v5258
        %v5260 = vpop.f32.mrb[0].mxu0
        %v5261 = vadd.f32 0.0, %v5260
        %5262 = vmatprep.mubr.bf16.mxu0 %v4646
        %5263 = vmatmul.mubr.bf16.gmra.mrb[0].mxu0 %v4645
        %v5264 = vpop.f32.mrb[0].mxu0
        %v5265 = vadd.f32 0.0, %v5264
        %v5266 = vpop.f32.mrb[0].mxu0
        %v5267 = vadd.f32 0.0, %v5266
        %v5268 = vpop.f32.mrb[0].mxu0
        %v5269 = vadd.f32 0.0, %v5268
        %v5270 = vpop.f32.mrb[0].mxu0
        %v5271 = vadd.f32 0.0, %v5270
        %5272 = vmatprep.mubr.bf16.mxu0 %v4648
        %5273 = vmatmul.mubr.bf16.gmra.mrb[0].mxu0 %v4647
        %v5274 = vpop.f32.mrb[0].mxu0
        %v5275 = vadd.f32 0.0, %v5274
        %v5276 = vpop.f32.mrb[0].mxu0
        %v5277 = vadd.f32 0.0, %v5276
        %v5278 = vpop.f32.mrb[0].mxu0
        %v5279 = vadd.f32 0.0, %v5278
        %v5280 = vpop.f32.mrb[0].mxu0
        %v5281 = vadd.f32 0.0, %v5280
        %5282 = vmatprep.mubr.bf16.mxu0 %v4650
        %5283 = vmatmul.mubr.bf16.gmra.mrb[0].mxu0 %v4649
        %v5284 = vpop.f32.mrb[0].mxu0
        %v5285 = vadd.f32 0.0, %v5284
        %v5286 = vpop.f32.mrb[0].mxu0
        %v5287 = vadd.f32 0.0, %v5286
        %v5288 = vpop.f32.mrb[0].mxu0
        %v5289 = vadd.f32 0.0, %v5288
        %v5290 = vpop.f32.mrb[0].mxu0
        %v5291 = vadd.f32 0.0, %v5290
        %5292 = vmatprep.mubr.bf16.mxu0 %v4652
        %5293 = vmatmul.mubr.bf16.gmra.mrb[0].mxu0 %v4651
        %v5294 = vpop.f32.mrb[0].mxu0
        %v5295 = vadd.f32 0.0, %v5294
        %v5296 = vpop.f32.mrb[0].mxu0
        %v5297 = vadd.f32 0.0, %v5296
        %v5298 = vpop.f32.mrb[0].mxu0
        %v5299 = vadd.f32 0.0, %v5298
        %v5300 = vpop.f32.mrb[0].mxu0
        %v5301 = vadd.f32 0.0, %v5300
        %5302 = vmatprep.mubr.bf16.mxu0 %v4654
        %5303 = vmatmul.mubr.bf16.gmra.mrb[0].mxu0 %v4653
        %v5304 = vpop.f32.mrb[0].mxu0
        %v5305 = vadd.f32 0.0, %v5304
        %v5306 = vpop.f32.mrb[0].mxu0
        %v5307 = vadd.f32 0.0, %v5306
        %v5308 = vpop.f32.mrb[0].mxu0
        %v5309 = vadd.f32 0.0, %v5308
        %v5310 = vpop.f32.mrb[0].mxu0
        %v5311 = vadd.f32 0.0, %v5310
        %5312 = vmatprep.mubr.bf16.mxu0 %v4656
        %5313 = vmatmul.mubr.bf16.gmra.mrb[0].mxu0 %v4655
        %v5314 = vpop.f32.mrb[0].mxu0
        %v5315 = vadd.f32 0.0, %v5314
        %v5316 = vpop.f32.mrb[0].mxu0
        %v5317 = vadd.f32 0.0, %v5316
        %v5318 = vpop.f32.mrb[0].mxu0
        %v5319 = vadd.f32 0.0, %v5318
        %v5320 = vpop.f32.mrb[0].mxu0
        %v5321 = vadd.f32 0.0, %v5320
        %5322 = vmatprep.mubr.bf16.mxu0 %v4658
        %5323 = vmatmul.mubr.bf16.gmra.mrb[0].mxu0 %v4657
        %v5324 = vpop.f32.mrb[0].mxu0
        %v5325 = vadd.f32 0.0, %v5324
        %v5326 = vpop.f32.mrb[0].mxu0
        %v5327 = vadd.f32 0.0, %v5326
        %v5328 = vpop.f32.mrb[0].mxu0
        %v5329 = vadd.f32 0.0, %v5328
        %v5330 = vpop.f32.mrb[0].mxu0
        %v5331 = vadd.f32 0.0, %v5330
        %5332 = vmatprep.mubr.bf16.mxu0 %v4660
        %5333 = vmatmul.mubr.bf16.gmra.mrb[0].mxu0 %v4659
        %v5334 = vpop.f32.mrb[0].mxu0
        %v5335 = vadd.f32 0.0, %v5334
        %v5336 = vpop.f32.mrb[0].mxu0
        %v5337 = vadd.f32 0.0, %v5336
        %v5338 = vpop.f32.mrb[0].mxu0
        %v5339 = vadd.f32 0.0, %v5338
        %v5340 = vpop.f32.mrb[0].mxu0
        %v5341 = vadd.f32 0.0, %v5340
        %5342 = vmatprep.mubr.bf16.mxu0 %v4662
        %5343 = vmatmul.mubr.bf16.gmra.mrb[0].mxu0 %v4661
        %v5344 = vpop.f32.mrb[0].mxu0
        %v5345 = vadd.f32 0.0, %v5344
        %v5346 = vpop.f32.mrb[0].mxu0
        %v5347 = vadd.f32 0.0, %v5346
        %v5348 = vpop.f32.mrb[0].mxu0
        %v5349 = vadd.f32 0.0, %v5348
        %v5350 = vpop.f32.mrb[0].mxu0
        %v5351 = vadd.f32 0.0, %v5350
        %5352 = vmatprep.mubr.bf16.mxu0 %v4664
        %5353 = vmatmul.mubr.bf16.gmra.mrb[0].mxu0 %v4663
        %v5354 = vpop.f32.mrb[0].mxu0
        %v5355 = vadd.f32 0.0, %v5354
        %v5356 = vpop.f32.mrb[0].mxu0
        %v5357 = vadd.f32 0.0, %v5356
        %v5358 = vpop.f32.mrb[0].mxu0
        %v5359 = vadd.f32 0.0, %v5358
        %v5360 = vpop.f32.mrb[0].mxu0
        %v5361 = vadd.f32 0.0, %v5360
        %5362 = vmatprep.mubr.bf16.mxu0 %v4666
        %5363 = vmatmul.mubr.bf16.gmra.mrb[0].mxu0 %v4665
        %v5364 = vpop.f32.mrb[0].mxu0
        %v5365 = vadd.f32 0.0, %v5364
        %v5366 = vpop.f32.mrb[0].mxu0
        %v5367 = vadd.f32 0.0, %v5366
        %v5368 = vpop.f32.mrb[0].mxu0
        %v5369 = vadd.f32 0.0, %v5368
        %v5370 = vpop.f32.mrb[0].mxu0
        %v5371 = vadd.f32 0.0, %v5370
        %5372 = vdwg.mxu0
        %v5405 = vunpack.c.l.b16 %v4956
        %v5406 = vunpack.c.h.b16 %v4956
        %v5407 = vunpack.c.l.b16 %v4957
        %v5408 = vunpack.c.h.b16 %v4957
        %v5409 = vunpack.c.l.b16 %v4958
        %v5410 = vunpack.c.h.b16 %v4958
        %v5411 = vunpack.c.l.b16 %v4959
        %v5412 = vunpack.c.h.b16 %v4959
        %v5413 = vunpack.c.l.b16 %v4960
        %v5414 = vunpack.c.h.b16 %v4960
        %v5415 = vunpack.c.l.b16 %v4961
        %v5416 = vunpack.c.h.b16 %v4961
        %v5417 = vunpack.c.l.b16 %v4962
        %v5418 = vunpack.c.h.b16 %v4962
        %v5419 = vunpack.c.l.b16 %v4963
        %v5420 = vunpack.c.h.b16 %v4963
        %v5421 = vunpack.c.l.b16 %v4964
        %v5422 = vunpack.c.h.b16 %v4964
        %v5423 = vunpack.c.l.b16 %v4965
        %v5424 = vunpack.c.h.b16 %v4965
        %v5425 = vunpack.c.l.b16 %v4966
        %v5426 = vunpack.c.h.b16 %v4966
        %v5427 = vunpack.c.l.b16 %v4967
        %v5428 = vunpack.c.h.b16 %v4967
        %v5429 = vunpack.c.l.b16 %v4968
        %v5430 = vunpack.c.h.b16 %v4968
        %v5431 = vunpack.c.l.b16 %v4969
        %v5432 = vunpack.c.h.b16 %v4969
        %v5433 = vunpack.c.l.b16 %v4970
        %v5434 = vunpack.c.h.b16 %v4970
        %v5435 = vunpack.c.l.b16 %v4971
        %v5436 = vunpack.c.h.b16 %v4971
        %v5437 = vunpack.c.l.b16 %v4972
        %v5438 = vunpack.c.h.b16 %v4972
        %v5439 = vunpack.c.l.b16 %v4973
        %v5440 = vunpack.c.h.b16 %v4973
        %v5441 = vunpack.c.l.b16 %v4974
        %v5442 = vunpack.c.h.b16 %v4974
        %v5443 = vunpack.c.l.b16 %v4975
        %v5444 = vunpack.c.h.b16 %v4975
        %v5445 = vunpack.c.l.b16 %v4976
        %v5446 = vunpack.c.h.b16 %v4976
        %v5447 = vunpack.c.l.b16 %v4977
        %v5448 = vunpack.c.h.b16 %v4977
        %v5449 = vunpack.c.l.b16 %v4978
        %v5450 = vunpack.c.h.b16 %v4978
        %v5451 = vunpack.c.l.b16 %v4979
        %v5452 = vunpack.c.h.b16 %v4979
        %v5453 = vunpack.c.l.b16 %v4980
        %v5454 = vunpack.c.h.b16 %v4980
        %v5455 = vunpack.c.l.b16 %v4981
        %v5456 = vunpack.c.h.b16 %v4981
        %v5457 = vunpack.c.l.b16 %v4982
        %v5458 = vunpack.c.h.b16 %v4982
        %v5459 = vunpack.c.l.b16 %v4983
        %v5460 = vunpack.c.h.b16 %v4983
        %v5461 = vunpack.c.l.b16 %v4984
        %v5462 = vunpack.c.h.b16 %v4984
        %v5463 = vunpack.c.l.b16 %v4985
        %v5464 = vunpack.c.h.b16 %v4985
        %v5465 = vunpack.c.l.b16 %v4986
        %v5466 = vunpack.c.h.b16 %v4986
        %v5467 = vunpack.c.l.b16 %v4987
        %v5468 = vunpack.c.h.b16 %v4987
        %v5469 = vpack.c.b16 %v5407, %v5405
        %v5470 = vpack.c.b16 %v5408, %v5406
        %v5471 = vpack.c.b16 %v5411, %v5409
        %v5472 = vpack.c.b16 %v5412, %v5410
        %v5473 = vpack.c.b16 %v5415, %v5413
        %v5474 = vpack.c.b16 %v5416, %v5414
        %v5475 = vpack.c.b16 %v5419, %v5417
        %v5476 = vpack.c.b16 %v5420, %v5418
        %v5477 = vpack.c.b16 %v5423, %v5421
        %v5478 = vpack.c.b16 %v5424, %v5422
        %v5479 = vpack.c.b16 %v5427, %v5425
        %v5480 = vpack.c.b16 %v5428, %v5426
        %v5481 = vpack.c.b16 %v5431, %v5429
        %v5482 = vpack.c.b16 %v5432, %v5430
        %v5483 = vpack.c.b16 %v5435, %v5433
        %v5484 = vpack.c.b16 %v5436, %v5434
        %v5485 = vpack.c.b16 %v5439, %v5437
        %v5486 = vpack.c.b16 %v5440, %v5438
        %v5487 = vpack.c.b16 %v5443, %v5441
        %v5488 = vpack.c.b16 %v5444, %v5442
        %v5489 = vpack.c.b16 %v5447, %v5445
        %v5490 = vpack.c.b16 %v5448, %v5446
        %v5491 = vpack.c.b16 %v5451, %v5449
        %v5492 = vpack.c.b16 %v5452, %v5450
        %v5493 = vpack.c.b16 %v5455, %v5453
        %v5494 = vpack.c.b16 %v5456, %v5454
        %v5495 = vpack.c.b16 %v5459, %v5457
        %v5496 = vpack.c.b16 %v5460, %v5458
        %v5497 = vpack.c.b16 %v5463, %v5461
        %v5498 = vpack.c.b16 %v5464, %v5462
        %v5499 = vpack.c.b16 %v5467, %v5465
        %v5500 = vpack.c.b16 %v5468, %v5466
        %5533 = vmatprep.subr.bf16.mxu0 %v5470
        %5534 = vmatpush1.bf16.msra.mxu0 %v5469
        %5535 = vmatprep.subr.bf16.mxu0 %v5472
        %5536 = vmatpush1.bf16.msra.mxu0 %v5471
        %5537 = vmatprep.subr.bf16.mxu0 %v5474
        %5538 = vmatpush1.bf16.msra.mxu0 %v5473
        %5539 = vmatprep.subr.bf16.mxu0 %v5476
        %5540 = vmatpush1.bf16.msra.mxu0 %v5475
        %5541 = vmatprep.subr.bf16.mxu0 %v5478
        %5542 = vmatpush1.bf16.msra.mxu0 %v5477
        %5543 = vmatprep.subr.bf16.mxu0 %v5480
        %5544 = vmatpush1.bf16.msra.mxu0 %v5479
        %5545 = vmatprep.subr.bf16.mxu0 %v5482
        %5546 = vmatpush1.bf16.msra.mxu0 %v5481
        %5547 = vmatprep.subr.bf16.mxu0 %v5484
        %5548 = vmatpush1.bf16.msra.mxu0 %v5483
        %5549 = vmatprep.subr.bf16.mxu0 %v5486
        %5550 = vmatpush1.bf16.msra.mxu0 %v5485
        %5551 = vmatprep.subr.bf16.mxu0 %v5488
        %5552 = vmatpush1.bf16.msra.mxu0 %v5487
        %5553 = vmatprep.subr.bf16.mxu0 %v5490
        %5554 = vmatpush1.bf16.msra.mxu0 %v5489
        %5555 = vmatprep.subr.bf16.mxu0 %v5492
        %5556 = vmatpush1.bf16.msra.mxu0 %v5491
        %5557 = vmatprep.subr.bf16.mxu0 %v5494
        %5558 = vmatpush1.bf16.msra.mxu0 %v5493
        %5559 = vmatprep.subr.bf16.mxu0 %v5496
        %5560 = vmatpush1.bf16.msra.mxu0 %v5495
        %5561 = vmatprep.subr.bf16.mxu0 %v5498
        %5562 = vmatpush1.bf16.msra.mxu0 %v5497
        %5563 = vmatprep.subr.bf16.mxu0 %v5500
        %5564 = vmatpush1.bf16.msra.mxu0 %v5499
        %5565 = vmatprep.mubr.bf16.mxu0 %v4925
        %5566 = vmatmul.mubr.bf16.gmra.mrb[0].mxu0 %v4924
        %v5567 = vpop.f32.mrb[0].mxu0
        %v5568 = vadd.f32 %v5215, %v5567
        %v5569 = vpop.f32.mrb[0].mxu0
        %v5570 = vadd.f32 %v5217, %v5569
        %v5571 = vpop.f32.mrb[0].mxu0
        %v5572 = vadd.f32 %v5219, %v5571
        %v5573 = vpop.f32.mrb[0].mxu0
        %v5574 = vadd.f32 %v5221, %v5573
        %5575 = vmatprep.mubr.bf16.mxu0 %v4927
        %5576 = vmatmul.mubr.bf16.gmra.mrb[0].mxu0 %v4926
        %v5577 = vpop.f32.mrb[0].mxu0
        %v5578 = vadd.f32 %v5225, %v5577
        %v5579 = vpop.f32.mrb[0].mxu0
        %v5580 = vadd.f32 %v5227, %v5579
        %v5581 = vpop.f32.mrb[0].mxu0
        %v5582 = vadd.f32 %v5229, %v5581
        %v5583 = vpop.f32.mrb[0].mxu0
        %v5584 = vadd.f32 %v5231, %v5583
        %5585 = vmatprep.mubr.bf16.mxu0 %v4929
        %5586 = vmatmul.mubr.bf16.gmra.mrb[0].mxu0 %v4928
        %v5587 = vpop.f32.mrb[0].mxu0
        %v5588 = vadd.f32 %v5235, %v5587
        %v5589 = vpop.f32.mrb[0].mxu0
        %v5590 = vadd.f32 %v5237, %v5589
        %v5591 = vpop.f32.mrb[0].mxu0
        %v5592 = vadd.f32 %v5239, %v5591
        %v5593 = vpop.f32.mrb[0].mxu0
        %v5594 = vadd.f32 %v5241, %v5593
        %5595 = vmatprep.mubr.bf16.mxu0 %v4931
        %5596 = vmatmul.mubr.bf16.gmra.mrb[0].mxu0 %v4930
        %v5597 = vpop.f32.mrb[0].mxu0
        %v5598 = vadd.f32 %v5245, %v5597
        %v5599 = vpop.f32.mrb[0].mxu0
        %v5600 = vadd.f32 %v5247, %v5599
        %v5601 = vpop.f32.mrb[0].mxu0
        %v5602 = vadd.f32 %v5249, %v5601
        %v5603 = vpop.f32.mrb[0].mxu0
        %v5604 = vadd.f32 %v5251, %v5603
        %5605 = vmatprep.mubr.bf16.mxu0 %v4933
        %5606 = vmatmul.mubr.bf16.gmra.mrb[0].mxu0 %v4932
        %v5607 = vpop.f32.mrb[0].mxu0
        %v5608 = vadd.f32 %v5255, %v5607
        %v5609 = vpop.f32.mrb[0].mxu0
        %v5610 = vadd.f32 %v5257, %v5609
        %v5611 = vpop.f32.mrb[0].mxu0
        %v5612 = vadd.f32 %v5259, %v5611
        %v5613 = vpop.f32.mrb[0].mxu0
        %v5614 = vadd.f32 %v5261, %v5613
        %5615 = vmatprep.mubr.bf16.mxu0 %v4935
        %5616 = vmatmul.mubr.bf16.gmra.mrb[0].mxu0 %v4934
        %v5617 = vpop.f32.mrb[0].mxu0
        %v5618 = vadd.f32 %v5265, %v5617
        %v5619 = vpop.f32.mrb[0].mxu0
        %v5620 = vadd.f32 %v5267, %v5619
        %v5621 = vpop.f32.mrb[0].mxu0
        %v5622 = vadd.f32 %v5269, %v5621
        %v5623 = vpop.f32.mrb[0].mxu0
        %v5624 = vadd.f32 %v5271, %v5623
        %5625 = vmatprep.mubr.bf16.mxu0 %v4937
        %5626 = vmatmul.mubr.bf16.gmra.mrb[0].mxu0 %v4936
        %v5627 = vpop.f32.mrb[0].mxu0
        %v5628 = vadd.f32 %v5275, %v5627
        %v5629 = vpop.f32.mrb[0].mxu0
        %v5630 = vadd.f32 %v5277, %v5629
        %v5631 = vpop.f32.mrb[0].mxu0
        %v5632 = vadd.f32 %v5279, %v5631
        %v5633 = vpop.f32.mrb[0].mxu0
        %v5634 = vadd.f32 %v5281, %v5633
        %5635 = vmatprep.mubr.bf16.mxu0 %v4939
        %5636 = vmatmul.mubr.bf16.gmra.mrb[0].mxu0 %v4938
        %v5637 = vpop.f32.mrb[0].mxu0
        %v5638 = vadd.f32 %v5285, %v5637
        %v5639 = vpop.f32.mrb[0].mxu0
        %v5640 = vadd.f32 %v5287, %v5639
        %v5641 = vpop.f32.mrb[0].mxu0
        %v5642 = vadd.f32 %v5289, %v5641
        %v5643 = vpop.f32.mrb[0].mxu0
        %v5644 = vadd.f32 %v5291, %v5643
        %5645 = vmatprep.mubr.bf16.mxu0 %v4941
        %5646 = vmatmul.mubr.bf16.gmra.mrb[0].mxu0 %v4940
        %v5647 = vpop.f32.mrb[0].mxu0
        %v5648 = vadd.f32 %v5295, %v5647
        %v5649 = vpop.f32.mrb[0].mxu0
        %v5650 = vadd.f32 %v5297, %v5649
        %v5651 = vpop.f32.mrb[0].mxu0
        %v5652 = vadd.f32 %v5299, %v5651
        %v5653 = vpop.f32.mrb[0].mxu0
        %v5654 = vadd.f32 %v5301, %v5653
        %5655 = vmatprep.mubr.bf16.mxu0 %v4943
        %5656 = vmatmul.mubr.bf16.gmra.mrb[0].mxu0 %v4942
        %v5657 = vpop.f32.mrb[0].mxu0
        %v5658 = vadd.f32 %v5305, %v5657
        %v5659 = vpop.f32.mrb[0].mxu0
        %v5660 = vadd.f32 %v5307, %v5659
        %v5661 = vpop.f32.mrb[0].mxu0
        %v5662 = vadd.f32 %v5309, %v5661
        %v5663 = vpop.f32.mrb[0].mxu0
        %v5664 = vadd.f32 %v5311, %v5663
        %5665 = vmatprep.mubr.bf16.mxu0 %v4945
        %5666 = vmatmul.mubr.bf16.gmra.mrb[0].mxu0 %v4944
        %v5667 = vpop.f32.mrb[0].mxu0
        %v5668 = vadd.f32 %v5315, %v5667
        %v5669 = vpop.f32.mrb[0].mxu0
        %v5670 = vadd.f32 %v5317, %v5669
        %v5671 = vpop.f32.mrb[0].mxu0
        %v5672 = vadd.f32 %v5319, %v5671
        %v5673 = vpop.f32.mrb[0].mxu0
        %v5674 = vadd.f32 %v5321, %v5673
        %5675 = vmatprep.mubr.bf16.mxu0 %v4947
        %5676 = vmatmul.mubr.bf16.gmra.mrb[0].mxu0 %v4946
        %v5677 = vpop.f32.mrb[0].mxu0
        %v5678 = vadd.f32 %v5325, %v5677
        %v5679 = vpop.f32.mrb[0].mxu0
        %v5680 = vadd.f32 %v5327, %v5679
        %v5681 = vpop.f32.mrb[0].mxu0
        %v5682 = vadd.f32 %v5329, %v5681
        %v5683 = vpop.f32.mrb[0].mxu0
        %v5684 = vadd.f32 %v5331, %v5683
        %5685 = vmatprep.mubr.bf16.mxu0 %v4949
        %5686 = vmatmul.mubr.bf16.gmra.mrb[0].mxu0 %v4948
        %v5687 = vpop.f32.mrb[0].mxu0
        %v5688 = vadd.f32 %v5335, %v5687
        %v5689 = vpop.f32.mrb[0].mxu0
        %v5690 = vadd.f32 %v5337, %v5689
        %v5691 = vpop.f32.mrb[0].mxu0
        %v5692 = vadd.f32 %v5339, %v5691
        %v5693 = vpop.f32.mrb[0].mxu0
        %v5694 = vadd.f32 %v5341, %v5693
        %5695 = vmatprep.mubr.bf16.mxu0 %v4951
        %5696 = vmatmul.mubr.bf16.gmra.mrb[0].mxu0 %v4950
        %v5697 = vpop.f32.mrb[0].mxu0
        %v5698 = vadd.f32 %v5345, %v5697
        %v5699 = vpop.f32.mrb[0].mxu0
        %v5700 = vadd.f32 %v5347, %v5699
        %v5701 = vpop.f32.mrb[0].mxu0
        %v5702 = vadd.f32 %v5349, %v5701
        %v5703 = vpop.f32.mrb[0].mxu0
        %v5704 = vadd.f32 %v5351, %v5703
        %5705 = vmatprep.mubr.bf16.mxu0 %v4953
        %5706 = vmatmul.mubr.bf16.gmra.mrb[0].mxu0 %v4952
        %v5707 = vpop.f32.mrb[0].mxu0
        %v5708 = vadd.f32 %v5355, %v5707
        %v5709 = vpop.f32.mrb[0].mxu0
        %v5710 = vadd.f32 %v5357, %v5709
        %v5711 = vpop.f32.mrb[0].mxu0
        %v5712 = vadd.f32 %v5359, %v5711
        %v5713 = vpop.f32.mrb[0].mxu0
        %v5714 = vadd.f32 %v5361, %v5713
        %5715 = vmatprep.mubr.bf16.mxu0 %v4955
        %5716 = vmatmul.mubr.bf16.gmra.mrb[0].mxu0 %v4954
        %v5717 = vpop.f32.mrb[0].mxu0
        %v5718 = vadd.f32 %v5365, %v5717
        %v5719 = vpop.f32.mrb[0].mxu0
        %v5720 = vadd.f32 %v5367, %v5719
        %v5721 = vpop.f32.mrb[0].mxu0
        %v5722 = vadd.f32 %v5369, %v5721
        %v5723 = vpop.f32.mrb[0].mxu0
        %v5724 = vadd.f32 %v5371, %v5723
        %5725 = vdwg.mxu0
        %v5726 = vld [vmem:[%s16] sm:$0x3]
        %v5728 = vlaneseq
        %v5729 = vshrl.u32 %v5728, 7
        %v5730 = vsub.s32 0, %v5729
        %v5731 = vrot.slane %v5726, %v5730
        %v5732 = vlaneseq
        %v5733 = vshrl.u32 %v5732, 7
        %v5734 = vsub.s32 1, %v5733
        %v5735 = vrot.slane %v5726, %v5734
        %v5738 = vadd.f32 %v5568, %v5731
        %v5739 = vadd.f32 %v5570, %v5735
        %v5740 = vadd.f32 %v5572, %v5731
        %v5741 = vadd.f32 %v5574, %v5735
        %v5742 = vadd.f32 %v5578, %v5731
        %v5743 = vadd.f32 %v5580, %v5735
        %v5744 = vadd.f32 %v5582, %v5731
        %v5745 = vadd.f32 %v5584, %v5735
        %v5746 = vadd.f32 %v5588, %v5731
        %v5747 = vadd.f32 %v5590, %v5735
        %v5748 = vadd.f32 %v5592, %v5731
        %v5749 = vadd.f32 %v5594, %v5735
        %v5750 = vadd.f32 %v5598, %v5731
        %v5751 = vadd.f32 %v5600, %v5735
        %v5752 = vadd.f32 %v5602, %v5731
        %v5753 = vadd.f32 %v5604, %v5735
        %v5754 = vadd.f32 %v5608, %v5731
        %v5755 = vadd.f32 %v5610, %v5735
        %v5756 = vadd.f32 %v5612, %v5731
        %v5757 = vadd.f32 %v5614, %v5735
        %v5758 = vadd.f32 %v5618, %v5731
        %v5759 = vadd.f32 %v5620, %v5735
        %v5760 = vadd.f32 %v5622, %v5731
        %v5761 = vadd.f32 %v5624, %v5735
        %v5762 = vadd.f32 %v5628, %v5731
        %v5763 = vadd.f32 %v5630, %v5735
        %v5764 = vadd.f32 %v5632, %v5731
        %v5765 = vadd.f32 %v5634, %v5735
        %v5766 = vadd.f32 %v5638, %v5731
        %v5767 = vadd.f32 %v5640, %v5735
        %v5768 = vadd.f32 %v5642, %v5731
        %v5769 = vadd.f32 %v5644, %v5735
        %v5770 = vadd.f32 %v5648, %v5731
        %v5771 = vadd.f32 %v5650, %v5735
        %v5772 = vadd.f32 %v5652, %v5731
        %v5773 = vadd.f32 %v5654, %v5735
        %v5774 = vadd.f32 %v5658, %v5731
        %v5775 = vadd.f32 %v5660, %v5735
        %v5776 = vadd.f32 %v5662, %v5731
        %v5777 = vadd.f32 %v5664, %v5735
        %v5778 = vadd.f32 %v5668, %v5731
        %v5779 = vadd.f32 %v5670, %v5735
        %v5780 = vadd.f32 %v5672, %v5731
        %v5781 = vadd.f32 %v5674, %v5735
        %v5782 = vadd.f32 %v5678, %v5731
        %v5783 = vadd.f32 %v5680, %v5735
        %v5784 = vadd.f32 %v5682, %v5731
        %v5785 = vadd.f32 %v5684, %v5735
        %v5786 = vadd.f32 %v5688, %v5731
        %v5787 = vadd.f32 %v5690, %v5735
        %v5788 = vadd.f32 %v5692, %v5731
        %v5789 = vadd.f32 %v5694, %v5735
        %v5790 = vadd.f32 %v5698, %v5731
        %v5791 = vadd.f32 %v5700, %v5735
        %v5792 = vadd.f32 %v5702, %v5731
        %v5793 = vadd.f32 %v5704, %v5735
        %v5794 = vadd.f32 %v5708, %v5731
        %v5795 = vadd.f32 %v5710, %v5735
        %v5796 = vadd.f32 %v5712, %v5731
        %v5797 = vadd.f32 %v5714, %v5735
        %v5798 = vadd.f32 %v5718, %v5731
        %v5799 = vadd.f32 %v5720, %v5735
        %v5800 = vadd.f32 %v5722, %v5731
        %v5801 = vadd.f32 %v5724, %v5735
        %v5802 = vmax.f32 %v5738, 0.0
        %v5803 = vmax.f32 %v5739, 0.0
        %v5804 = vmax.f32 %v5740, 0.0
        %v5805 = vmax.f32 %v5741, 0.0
        %v5806 = vmax.f32 %v5742, 0.0
        %v5807 = vmax.f32 %v5743, 0.0
        %v5808 = vmax.f32 %v5744, 0.0
        %v5809 = vmax.f32 %v5745, 0.0
        %v5810 = vmax.f32 %v5746, 0.0
        %v5811 = vmax.f32 %v5747, 0.0
        %v5812 = vmax.f32 %v5748, 0.0
        %v5813 = vmax.f32 %v5749, 0.0
        %v5814 = vmax.f32 %v5750, 0.0
        %v5815 = vmax.f32 %v5751, 0.0
        %v5816 = vmax.f32 %v5752, 0.0
        %v5817 = vmax.f32 %v5753, 0.0
        %v5818 = vmax.f32 %v5754, 0.0
        %v5819 = vmax.f32 %v5755, 0.0
        %v5820 = vmax.f32 %v5756, 0.0
        %v5821 = vmax.f32 %v5757, 0.0
        %v5822 = vmax.f32 %v5758, 0.0
        %v5823 = vmax.f32 %v5759, 0.0
        %v5824 = vmax.f32 %v5760, 0.0
        %v5825 = vmax.f32 %v5761, 0.0
        %v5826 = vmax.f32 %v5762, 0.0
        %v5827 = vmax.f32 %v5763, 0.0
        %v5828 = vmax.f32 %v5764, 0.0
        %v5829 = vmax.f32 %v5765, 0.0
        %v5830 = vmax.f32 %v5766, 0.0
        %v5831 = vmax.f32 %v5767, 0.0
        %v5832 = vmax.f32 %v5768, 0.0
        %v5833 = vmax.f32 %v5769, 0.0
        %v5834 = vmax.f32 %v5770, 0.0
        %v5835 = vmax.f32 %v5771, 0.0
        %v5836 = vmax.f32 %v5772, 0.0
        %v5837 = vmax.f32 %v5773, 0.0
        %v5838 = vmax.f32 %v5774, 0.0
        %v5839 = vmax.f32 %v5775, 0.0
        %v5840 = vmax.f32 %v5776, 0.0
        %v5841 = vmax.f32 %v5777, 0.0
        %v5842 = vmax.f32 %v5778, 0.0
        %v5843 = vmax.f32 %v5779, 0.0
        %v5844 = vmax.f32 %v5780, 0.0
        %v5845 = vmax.f32 %v5781, 0.0
        %v5846 = vmax.f32 %v5782, 0.0
        %v5847 = vmax.f32 %v5783, 0.0
        %v5848 = vmax.f32 %v5784, 0.0
        %v5849 = vmax.f32 %v5785, 0.0
        %v5850 = vmax.f32 %v5786, 0.0
        %v5851 = vmax.f32 %v5787, 0.0
        %v5852 = vmax.f32 %v5788, 0.0
        %v5853 = vmax.f32 %v5789, 0.0
        %v5854 = vmax.f32 %v5790, 0.0
        %v5855 = vmax.f32 %v5791, 0.0
        %v5856 = vmax.f32 %v5792, 0.0
        %v5857 = vmax.f32 %v5793, 0.0
        %v5858 = vmax.f32 %v5794, 0.0
        %v5859 = vmax.f32 %v5795, 0.0
        %v5860 = vmax.f32 %v5796, 0.0
        %v5861 = vmax.f32 %v5797, 0.0
        %v5862 = vmax.f32 %v5798, 0.0
        %v5863 = vmax.f32 %v5799, 0.0
        %v5864 = vmax.f32 %v5800, 0.0
        %v5865 = vmax.f32 %v5801, 0.0
        %v5866 = vpack.c.bf16 %v5804, %v5802
        %v5867 = vpack.c.bf16 %v5805, %v5803
        %v5868 = vpack.c.bf16 %v5808, %v5806
        %v5869 = vpack.c.bf16 %v5809, %v5807
        %v5870 = vpack.c.bf16 %v5812, %v5810
        %v5871 = vpack.c.bf16 %v5813, %v5811
        %v5872 = vpack.c.bf16 %v5816, %v5814
        %v5873 = vpack.c.bf16 %v5817, %v5815
        %v5874 = vpack.c.bf16 %v5820, %v5818
        %v5875 = vpack.c.bf16 %v5821, %v5819
        %v5876 = vpack.c.bf16 %v5824, %v5822
        %v5877 = vpack.c.bf16 %v5825, %v5823
        %v5878 = vpack.c.bf16 %v5828, %v5826
        %v5879 = vpack.c.bf16 %v5829, %v5827
        %v5880 = vpack.c.bf16 %v5832, %v5830
        %v5881 = vpack.c.bf16 %v5833, %v5831
        %v5882 = vpack.c.bf16 %v5836, %v5834
        %v5883 = vpack.c.bf16 %v5837, %v5835
        %v5884 = vpack.c.bf16 %v5840, %v5838
        %v5885 = vpack.c.bf16 %v5841, %v5839
        %v5886 = vpack.c.bf16 %v5844, %v5842
        %v5887 = vpack.c.bf16 %v5845, %v5843
        %v5888 = vpack.c.bf16 %v5848, %v5846
        %v5889 = vpack.c.bf16 %v5849, %v5847
        %v5890 = vpack.c.bf16 %v5852, %v5850
        %v5891 = vpack.c.bf16 %v5853, %v5851
        %v5892 = vpack.c.bf16 %v5856, %v5854
        %v5893 = vpack.c.bf16 %v5857, %v5855
        %v5894 = vpack.c.bf16 %v5860, %v5858
        %v5895 = vpack.c.bf16 %v5861, %v5859
        %v5896 = vpack.c.bf16 %v5864, %v5862
        %v5897 = vpack.c.bf16 %v5865, %v5863
        %v5898 = vld [vmem:[%s795] sm:$0xff]
        %v5900 = vunpack.c.l.b16 %v5898
        %v5901 = vunpack.c.h.b16 %v5898
        %v5902 = vpack.c.b16 %v5900, %v5900
        %v5903 = vpack.c.b16 %v5901, %v5901
        %5906 = vmatprep.subr.bf16.mxu0 %v5867
        %5907 = vmatpush1.bf16.msra.mxu0 %v5866
        %5908 = vmatprep.subr.bf16.mxu0 %v5869
        %5909 = vmatpush1.bf16.msra.mxu0 %v5868
        %5910 = vmatprep.subr.bf16.mxu0 %v5871
        %5911 = vmatpush1.bf16.msra.mxu0 %v5870
        %5912 = vmatprep.subr.bf16.mxu0 %v5873
        %5913 = vmatpush1.bf16.msra.mxu0 %v5872
        %5914 = vmatprep.subr.bf16.mxu0 %v5875
        %5915 = vmatpush1.bf16.msra.mxu0 %v5874
        %5916 = vmatprep.subr.bf16.mxu0 %v5877
        %5917 = vmatpush1.bf16.msra.mxu0 %v5876
        %5918 = vmatprep.subr.bf16.mxu0 %v5879
        %5919 = vmatpush1.bf16.msra.mxu0 %v5878
        %5920 = vmatprep.subr.bf16.mxu0 %v5881
        %5921 = vmatpush1.bf16.msra.mxu0 %v5880
        %5922 = vmatprep.subr.bf16.mxu0 %v5883
        %5923 = vmatpush1.bf16.msra.mxu0 %v5882
        %5924 = vmatprep.subr.bf16.mxu0 %v5885
        %5925 = vmatpush1.bf16.msra.mxu0 %v5884
        %5926 = vmatprep.subr.bf16.mxu0 %v5887
        %5927 = vmatpush1.bf16.msra.mxu0 %v5886
        %5928 = vmatprep.subr.bf16.mxu0 %v5889
        %5929 = vmatpush1.bf16.msra.mxu0 %v5888
        %5930 = vmatprep.subr.bf16.mxu0 %v5891
        %5931 = vmatpush1.bf16.msra.mxu0 %v5890
        %5932 = vmatprep.subr.bf16.mxu0 %v5893
        %5933 = vmatpush1.bf16.msra.mxu0 %v5892
        %5934 = vmatprep.subr.bf16.mxu0 %v5895
        %5935 = vmatpush1.bf16.msra.mxu0 %v5894
        %5936 = vmatprep.subr.bf16.mxu0 %v5897
        %5937 = vmatpush1.bf16.msra.mxu0 %v5896
        %5938 = vmatprep.mubr.bf16.mxu0 %v5903
        %5939 = vmatmul.mubr.bf16.gmra.mrb[0].mxu0 %v5902
        %v5940 = vpop.f32.mrb[0].mxu0
        %v5941 = vadd.f32 0.0, %v5940
        %v5942 = vpop.f32.mrb[0].mxu0
        %v5943 = vadd.f32 0.0, %v5942
        %v5944 = vpop.f32.mrb[0].mxu0
        %v5945 = vpop.f32.mrb[0].mxu0
        %5946 = vdwg.mxu0
        %v5947 = vld [vmem:[%s799] sm:$0xff]
        %5949 = vset.pattern.permute.xlu0 0
        %5950 = vperm.xlu0 %5949, %v5947
        %v5951 = vpop.permute.xlu0 %5950
        %v5953 = vmul.f32 %v5941, %v5951
        %v5954 = vmul.f32 %v5943, %v5951
        %5955 = vst [vmem:[%s775] sm:$0xff] %v5953
        %5956 = vst [vmem:[%s775 + $0x8] sm:$0xff] %v5954
        %v5957 = vpack.c.bf16 %v5953, %v5953
        %v5958 = vpack.c.bf16 %v5954, %v5954
        %v5959 = vld [vmem:[#allocation11] sm:$0xf]
        %v5960 = vld [vmem:[#allocation11 + $0x4] sm:$0xf]
        %v5961 = vld [vmem:[#allocation11 + $0x8] sm:$0xf]
        %v5962 = vld [vmem:[#allocation11 + $0xc] sm:$0xf]
        %v5963 = vld [vmem:[#allocation11 + $0x10] sm:$0xf]
        %v5964 = vld [vmem:[#allocation11 + $0x14] sm:$0xf]
        %v5965 = vld [vmem:[#allocation11 + $0x18] sm:$0xf]
        %v5966 = vld [vmem:[#allocation11 + $0x1c] sm:$0xf]
        %v5967 = vld [vmem:[#allocation11 + $0x20] sm:$0xf]
        %v5968 = vld [vmem:[#allocation11 + $0x24] sm:$0xf]
        %v5969 = vld [vmem:[#allocation11 + $0x28] sm:$0xf]
        %v5970 = vld [vmem:[#allocation11 + $0x2c] sm:$0xf]
        %v5971 = vld [vmem:[#allocation11 + $0x30] sm:$0xf]
        %v5972 = vld [vmem:[#allocation11 + $0x34] sm:$0xf]
        %v5973 = vld [vmem:[#allocation11 + $0x38] sm:$0xf]
        %v5974 = vld [vmem:[#allocation11 + $0x3c] sm:$0xf]
        %v5975 = vld [vmem:[#allocation11 + $0x40] sm:$0xf]
        %v5976 = vld [vmem:[#allocation11 + $0x44] sm:$0xf]
        %v5977 = vld [vmem:[#allocation11 + $0x48] sm:$0xf]
        %v5978 = vld [vmem:[#allocation11 + $0x4c] sm:$0xf]
        %v5979 = vld [vmem:[#allocation11 + $0x50] sm:$0xf]
        %v5980 = vld [vmem:[#allocation11 + $0x54] sm:$0xf]
        %v5981 = vld [vmem:[#allocation11 + $0x58] sm:$0xf]
        %v5982 = vld [vmem:[#allocation11 + $0x5c] sm:$0xf]
        %v5983 = vld [vmem:[#allocation11 + $0x60] sm:$0xf]
        %v5984 = vld [vmem:[#allocation11 + $0x64] sm:$0xf]
        %v5985 = vld [vmem:[#allocation11 + $0x68] sm:$0xf]
        %v5986 = vld [vmem:[#allocation11 + $0x6c] sm:$0xf]
        %v5987 = vld [vmem:[#allocation11 + $0x70] sm:$0xf]
        %v5988 = vld [vmem:[#allocation11 + $0x74] sm:$0xf]
        %v5989 = vld [vmem:[#allocation11 + $0x78] sm:$0xf]
        %v5990 = vld [vmem:[#allocation11 + $0x7c] sm:$0xf]
        %v5991 = vld [vmem:[%s18] sm:$0x1]
        %v5993 = vlaneseq
        %v5994 = vshrl.u32 %v5993, 7
        %v5995 = vsub.s32 0, %v5994
        %v5996 = vrot.slane %v5991, %v5995
        %v6030 = vunpack.c.l.b16 %v5959
        %v6031 = vunpack.c.l.b16 %v5960
        %v6032 = vunpack.c.l.b16 %v5961
        %v6033 = vunpack.c.l.b16 %v5962
        %v6034 = vunpack.c.l.b16 %v5963
        %v6035 = vunpack.c.l.b16 %v5964
        %v6036 = vunpack.c.l.b16 %v5965
        %v6037 = vunpack.c.l.b16 %v5966
        %v6038 = vunpack.c.l.b16 %v5967
        %v6039 = vunpack.c.l.b16 %v5968
        %v6040 = vunpack.c.l.b16 %v5969
        %v6041 = vunpack.c.l.b16 %v5970
        %v6042 = vunpack.c.l.b16 %v5971
        %v6043 = vunpack.c.l.b16 %v5972
        %v6044 = vunpack.c.l.b16 %v5973
        %v6045 = vunpack.c.l.b16 %v5974
        %v6046 = vunpack.c.l.b16 %v5975
        %v6047 = vunpack.c.l.b16 %v5976
        %v6048 = vunpack.c.l.b16 %v5977
        %v6049 = vunpack.c.l.b16 %v5978
        %v6050 = vunpack.c.l.b16 %v5979
        %v6051 = vunpack.c.l.b16 %v5980
        %v6052 = vunpack.c.l.b16 %v5981
        %v6053 = vunpack.c.l.b16 %v5982
        %v6054 = vunpack.c.l.b16 %v5983
        %v6055 = vunpack.c.l.b16 %v5984
        %v6056 = vunpack.c.l.b16 %v5985
        %v6057 = vunpack.c.l.b16 %v5986
        %v6058 = vunpack.c.l.b16 %v5987
        %v6059 = vunpack.c.l.b16 %v5988
        %v6060 = vunpack.c.l.b16 %v5989
        %v6061 = vunpack.c.l.b16 %v5990
        %v6062 = vpack.c.b16 %v6031, %v6030
        %v6063 = vpack.c.b16 %v6033, %v6032
        %v6064 = vpack.c.b16 %v6035, %v6034
        %v6065 = vpack.c.b16 %v6037, %v6036
        %v6066 = vpack.c.b16 %v6039, %v6038
        %v6067 = vpack.c.b16 %v6041, %v6040
        %v6068 = vpack.c.b16 %v6043, %v6042
        %v6069 = vpack.c.b16 %v6045, %v6044
        %v6070 = vpack.c.b16 %v6047, %v6046
        %v6071 = vpack.c.b16 %v6049, %v6048
        %v6072 = vpack.c.b16 %v6051, %v6050
        %v6073 = vpack.c.b16 %v6053, %v6052
        %v6074 = vpack.c.b16 %v6055, %v6054
        %v6075 = vpack.c.b16 %v6057, %v6056
        %v6076 = vpack.c.b16 %v6059, %v6058
        %v6077 = vpack.c.b16 %v6061, %v6060
        %6094 = vmatprep.subr.bf16.mxu0 0
        %6095 = vmatpush1.bf16.msra.mxu0 %v6062
        %6096 = vmatprep.subr.bf16.mxu0 0
        %6097 = vmatpush1.bf16.msra.mxu0 %v6063
        %6098 = vmatprep.subr.bf16.mxu0 0
        %6099 = vmatpush1.bf16.msra.mxu0 %v6064
        %6100 = vmatprep.subr.bf16.mxu0 0
        %6101 = vmatpush1.bf16.msra.mxu0 %v6065
        %6102 = vmatprep.subr.bf16.mxu0 0
        %6103 = vmatpush1.bf16.msra.mxu0 %v6066
        %6104 = vmatprep.subr.bf16.mxu0 0
        %6105 = vmatpush1.bf16.msra.mxu0 %v6067
        %6106 = vmatprep.subr.bf16.mxu0 0
        %6107 = vmatpush1.bf16.msra.mxu0 %v6068
        %6108 = vmatprep.subr.bf16.mxu0 0
        %6109 = vmatpush1.bf16.msra.mxu0 %v6069
        %6110 = vmatprep.subr.bf16.mxu0 0
        %6111 = vmatpush1.bf16.msra.mxu0 %v6070
        %6112 = vmatprep.subr.bf16.mxu0 0
        %6113 = vmatpush1.bf16.msra.mxu0 %v6071
        %6114 = vmatprep.subr.bf16.mxu0 0
        %6115 = vmatpush1.bf16.msra.mxu0 %v6072
        %6116 = vmatprep.subr.bf16.mxu0 0
        %6117 = vmatpush1.bf16.msra.mxu0 %v6073
        %6118 = vmatprep.subr.bf16.mxu0 0
        %6119 = vmatpush1.bf16.msra.mxu0 %v6074
        %6120 = vmatprep.subr.bf16.mxu0 0
        %6121 = vmatpush1.bf16.msra.mxu0 %v6075
        %6122 = vmatprep.subr.bf16.mxu0 0
        %6123 = vmatpush1.bf16.msra.mxu0 %v6076
        %6124 = vmatprep.subr.bf16.mxu0 0
        %6125 = vmatpush1.bf16.msra.mxu0 %v6077
        %6126 = vmatprep.mubr.bf16.mxu0 %v5958
        %6127 = vmatmul.mubr.bf16.gmra.mrb[0].mxu0 %v5957
        %v6128 = vpop.f32.mrb[0].mxu0
        %v6129 = vadd.f32 %v5996, %v6128
        %v6130 = vpop.f32.mrb[0].mxu0
        %v6131 = vpop.f32.mrb[0].mxu0
        %v6132 = vpop.f32.mrb[0].mxu0
        %6133 = vdwg.mxu0
        %6134 = vst [vmem:[%s803] sm:$0xff] %v6129
        %p6135 = scmp.lt.s32.totalorder %s39, 1
        %s6136 = scalar_select %p6135, %s39, 1
        %s6137 = smul.addr %s6136, 8
        %s6138 = scalar_lea.vmem %s19, %s6137
        %s6139 = sand.u32 %s497, 1
        %s6140 = scalar_lea.sflag [#allocation4], %s6139
        %s6141 = sand.u32 %s497, 1
        %s6142 = smul.addr %s6141, 16
        %s6143 = scalar_lea.vmem [#allocation13], %s6142
        // Predicated region
        $region121: #{graphsage_forward.1} parent=95 // pred_check
          %p6144 = pneg %p481
        $region122: #{graphsage_forward.1} parent=95 // pred_check_branch
          %6146 = sbr.rel (%p6144) target = $region124
        $region123: #{graphsage_forward.1} parent=95 // pred_region
          _
        $region124: #{graphsage_forward.1} parent=95 // pred_fallthru
          _
        // Predicated region
        $region125: #{graphsage_forward.1} parent=95 // pred_check
          %p6147 = pneg %p507
        $region126: #{graphsage_forward.1} parent=95 // pred_check_branch
          %6149 = sbr.rel (%p6147) target = $region128
        $region127: #{graphsage_forward.1} parent=95 // pred_region
          %s6151 = ssub.s32 256, 256
          %6152 = vsyncadd %s6140, %s6151
          %s6153 = smul.addr %s39, 2
          %s6154 = smul.addr %s6153, 128
          %s6155 = scalar_lea.hbm %s20, %s6154
          %s6157 = sshll.u32 %s6143, 4
          %s6158 = int_to_ptr.vmem [resolvable:$true] %s6157
          %6160 = dma.vmem_to_hbm [thread:$0]  %s6158, 256, %s6155, %s6140
        $region128: #{graphsage_forward.1} parent=95 // pred_fallthru
          _
      $region96: #{graphsage_forward.1} parent=5 // pred_fallthru
        _
      %p6161 = scmp.le.s32.totalorder 2, %s34
      // Predicated region
      $region129: #{graphsage_forward.1} parent=5 // pred_check
        %p6162 = pneg %p6161
      $region130: #{graphsage_forward.1} parent=5 // pred_check_branch
        %6164 = sbr.rel (%p6162) target = $region132
      $region131: #{graphsage_forward.1} parent=5 // pred_region
        %s6165 = ssub.s32 %s34, 2
        // Predicated region
        $region133: #{graphsage_forward.1} parent=131 // pred_check
          %p6166 = pneg %p487
        $region134: #{graphsage_forward.1} parent=131 // pred_check_branch
          %6168 = sbr.rel (%p6166) target = $region136
        $region135: #{graphsage_forward.1} parent=131 // pred_region
          %p6169 = scmp.lt.s32.totalorder %s40, 1
          %s6170 = scalar_select %p6169, %s40, 1
          %s6171 = smul.addr %s6170, 8
          %s6172 = scalar_lea.vmem %s19, %s6171
        $region136: #{graphsage_forward.1} parent=131 // pred_fallthru
          _
        // Predicated region
        $region137: #{graphsage_forward.1} parent=131 // pred_check
          %p6173 = pneg %p513
        $region138: #{graphsage_forward.1} parent=131 // pred_check_branch
          %6175 = sbr.rel (%p6173) target = $region140
        $region139: #{graphsage_forward.1} parent=131 // pred_region
          %s6176 = sand.u32 %s498, 1
          %s6177 = scalar_lea.sflag [#allocation4], %s6176
          %s6178 = sand.u32 %s498, 1
          %s6179 = smul.addr %s6178, 16
          %s6180 = scalar_lea.vmem [#allocation13], %s6179
          %6181 = dma.done %s6177, 256
        $region140: #{graphsage_forward.1} parent=131 // pred_fallthru
          _
      $region132: #{graphsage_forward.1} parent=5 // pred_fallthru
        _
    $region6: #{graphsage_forward.1} parent=1 // loop_footer
      %s38 = sadd.s32 1, %s34
    $region7: #{graphsage_forward.1} parent=1 // loop_footer_branch
      %33 = sbr.rel target = $region3
    $region8: #{graphsage_forward.1} parent=1 // loop_exit
      _
    %6182 = vsyncpa [#allocation3], 1
    %s6183 = scalar_lea.sflag [#allocation3], 1
    %6184 = vsyncpa %s6183, 1
    %6185 = vsyncpa [#allocation6], 1
    %6186 = vsyncpa [#allocation9], 1
    %6187 = vsyncpa [#allocation12], 1
    %6188 = vsyncpa [#allocation4], 1
    %s6189 = scalar_lea.sflag [#allocation4], 1
    %6190 = vsyncpa %s6189, 1

</llo_original>
